<compile_context>
chip_gen: v6e
topology: v6e:2x2x1
jax: 0.10.0
libtpu: 0.0.40
codegen_flags: <defaults>
</compile_context>

<pallas_src>
import jax
import jax.numpy as jnp
from jax.experimental import pallas as pl
from jax.experimental.pallas import tpu as pltpu  # noqa: F401  (TPU backend assumed)

D_MODEL = 128
N_HEADS = 2
D_HEAD = D_MODEL // N_HEADS
D_INNER = 4 * D_MODEL
N_BLOCKS = 2
VOCAB_SIZE = 26
VOCAB_PAD = 128            # lane-dense padded vocab width for the output store
BLOCK_SIZE = 16
EPS = 1e-5                 # nn.LayerNorm default eps
NEG_INF = -1e30            # finite "-inf" for masking (exp underflows to exactly 0)

_N_BLOCK_PARAMS = 11       # params per transformer block (see init_params)


def _layer_norm(x, w, b):
    # PyTorch LayerNorm: biased variance over the last dim, f32 statistics.
    mu = jnp.mean(x, axis=-1, keepdims=True)
    var = jnp.mean((x - mu) ** 2, axis=-1, keepdims=True)
    return (x - mu) * jax.lax.rsqrt(var + EPS) * w + b


# ---------------------------------------------------------------------------
# Single fused kernel: all blocks + final LN + lm_head, one invocation.
# ---------------------------------------------------------------------------
def fused_lm_kernel(x_ref, bias_ref, *refs):
    """x_ref   : (B*T, D)    token + position embeddings
       bias_ref: (B*T, B*T)  additive attention bias (0 where attendable,
                             NEG_INF across sequences / future positions)
       refs    : N_BLOCKS*11 block params, 4 head params, then the output ref."""
    o_ref = refs[-1]
    params = refs[:-1]

    x = x_ref[...]                 # (BT, D) f32, stays resident across all blocks
    bias = bias_ref[...]           # (BT, BT)
    scale = D_MODEL ** (-0.5)      # reference scales by C = d_model (not d_head)

    for blk in range(N_BLOCKS):    # static unroll over blocks
        (ln1_w, ln1_b, wqkv, wp, bp,
         ln2_w, ln2_b, w1, b1, w2, b2) = params[blk * _N_BLOCK_PARAMS:
                                                (blk + 1) * _N_BLOCK_PARAMS]

        # ---- multi-head causal self-attention on LN1(x) ----
        xn = _layer_norm(x, ln1_w[...], ln1_b[...])
        qkv = jnp.dot(xn, wqkv[...], preferred_element_type=jnp.float32)  # (BT, 3D)
        q = qkv[:, 0:D_MODEL]
        k = qkv[:, D_MODEL:2 * D_MODEL]
        v = qkv[:, 2 * D_MODEL:3 * D_MODEL]

        attn = None
        for h in range(N_HEADS):   # static unrolled; N_HEADS is tiny
            sl = slice(h * D_HEAD, (h + 1) * D_HEAD)
            qh, kh, vh = q[:, sl], k[:, sl], v[:, sl]
            # q @ k^T without an explicit transpose (MXU handles the contracted rhs dim)
            wei = jax.lax.dot_general(
                qh, kh, (((1,), (1,)), ((), ())),
                preferred_element_type=jnp.float32) * scale + bias        # (BT, BT)
            wei = wei - jnp.max(wei, axis=-1, keepdims=True)
            p = jnp.exp(wei)
            p = p * pl.reciprocal(jnp.sum(p, axis=-1, keepdims=True), approx=True)
            oh = jnp.dot(p, vh, preferred_element_type=jnp.float32)       # (BT, Dh)
            # concat(heads) @ Wp  ==  sum_h  head_h @ Wp[h*Dh:(h+1)*Dh, :]
            ph = jnp.dot(oh, wp[pl.ds(h * D_HEAD, D_HEAD), :],
                         preferred_element_type=jnp.float32)              # (BT, D)
            attn = ph if attn is None else attn + ph

        # TODO(synk): nn.Dropout layers are identity in eval mode; not emitted here.
        x = x + attn + bp[...]

        # ---- feed-forward on LN2(x) ----
        xn2 = _layer_norm(x, ln2_w[...], ln2_b[...])
        h1 = jnp.maximum(
            jnp.dot(xn2, w1[...], preferred_element_type=jnp.float32) + b1[...], 0.0)
        x = x + jnp.dot(h1, w2[...], preferred_element_type=jnp.float32) + b2[...]

    # ---- final LayerNorm + lm_head (lane-dense, padded to VOCAB_PAD) ----
    lnf_w, lnf_b, w_lm, b_lm = params[N_BLOCKS * _N_BLOCK_PARAMS:]
    xn = _layer_norm(x, lnf_w[...], lnf_b[...])
    o_ref[...] = jnp.dot(xn, w_lm[...],
                         preferred_element_type=jnp.float32) + b_lm[...]


# ---------------------------------------------------------------------------
# Wrapper
# ---------------------------------------------------------------------------
def _causal_bias(batch, seq):
    """(B*T, B*T) additive bias: 0 where key is in the same sequence and key<=query."""
    i = jnp.arange(batch * seq)
    same_seq = (i[:, None] // seq) == (i[None, :] // seq)
    causal = (i[None, :] % seq) <= (i[:, None] % seq)
    return jnp.where(same_seq & causal, 0.0, NEG_INF).astype(jnp.float32)


@jax.jit
def language_model_forward(idx, tok_emb, pos_emb, blocks, final):
    B, T = idx.shape
    # Embedding gather + position add stay as one fused XLA gather+add (glue);
    # everything downstream runs in a single fused Pallas kernel.
    x = (tok_emb[idx] + pos_emb[:T][None, :, :]).reshape(B * T, D_MODEL)
    bias = _causal_bias(B, T)          # constant-folded under jit (B, T static)

    flat = [p for blk in blocks for p in blk] + list(final)
    logits_pad = pl.pallas_call(
        fused_lm_kernel,
        out_shape=jax.ShapeDtypeStruct((B * T, VOCAB_PAD), jnp.float32),
        # no grid: one invocation; every operand is a whole-array VMEM block.
    )(x, bias, *flat)

    return logits_pad.reshape(B, T, VOCAB_PAD)[..., :VOCAB_SIZE]


# ---------------------------------------------------------------------------
# Deterministic parameter init (synthetic weights, no checkpoint)
# ---------------------------------------------------------------------------
def init_params(key):
    def nrm(k, shape, scale=0.02):
        return (scale * jax.random.normal(k, shape)).astype(jnp.float32)

    keys = jax.random.split(key, 2 + N_BLOCKS + 1)
    params = {
        "tok_emb": nrm(keys[0], (VOCAB_SIZE, D_MODEL)),
        "pos_emb": nrm(keys[1], (BLOCK_SIZE, D_MODEL)),
        "blocks": [],
    }
    for i in range(N_BLOCKS):
        bk = jax.random.split(keys[2 + i], 5)
        blk = (
            jnp.ones((1, D_MODEL), jnp.float32),              # ln1 weight
            jnp.zeros((1, D_MODEL), jnp.float32),             # ln1 bias
            nrm(bk[0], (D_MODEL, 3 * N_HEADS * D_HEAD)),      # fused Wq|Wk|Wv
            nrm(bk[1], (N_HEADS * D_HEAD, D_MODEL)),          # proj weight
            nrm(bk[2], (1, D_MODEL)),                         # proj bias
            jnp.ones((1, D_MODEL), jnp.float32),              # ln2 weight
            jnp.zeros((1, D_MODEL), jnp.float32),             # ln2 bias
            nrm(bk[3], (D_MODEL, D_INNER)),                   # ff W1
            jnp.zeros((1, D_INNER), jnp.float32),             # ff b1
            nrm(bk[4], (D_INNER, D_MODEL)),                   # ff W2
            jnp.zeros((1, D_MODEL), jnp.float32),             # ff b2
        )
        params["blocks"].append(blk)

    hk = jax.random.split(keys[-1], 2)
    w_lm = jnp.zeros((D_MODEL, VOCAB_PAD), jnp.float32)
    w_lm = w_lm.at[:, :VOCAB_SIZE].set(nrm(hk[0], (D_MODEL, VOCAB_SIZE)))
    b_lm = jnp.zeros((1, VOCAB_PAD), jnp.float32)
    b_lm = b_lm.at[:, :VOCAB_SIZE].set(nrm(hk[1], (1, VOCAB_SIZE)))
    params["final"] = (
        jnp.ones((1, D_MODEL), jnp.float32),                  # ln_f weight
        jnp.zeros((1, D_MODEL), jnp.float32),                 # ln_f bias
        w_lm,                                                 # lm_head W (lane-padded)
        b_lm,                                                 # lm_head b (lane-padded)
    )
    return params


if __name__ == "__main__":
    key = jax.random.PRNGKey(0)
    pkey, ikey = jax.random.split(key)
    params = init_params(pkey)

    B, T = 2, 8
    idx = jax.random.randint(ikey, (B, T), 0, VOCAB_SIZE, dtype=jnp.int32)

    logits = language_model_forward(
        idx, params["tok_emb"], params["pos_emb"],
        tuple(params["blocks"]), params["final"])
    jax.block_until_ready(logits)

    assert logits.shape == (B, T, VOCAB_SIZE)
    assert bool(jnp.all(jnp.isfinite(logits)))
    print("KERNEL_OK")
</pallas_src>

<mosaic_0001>
module attributes {stable_mosaic.version = 11 : i64} {
  func.func @fused_lm_kernel(%arg0: memref<16x128xf32, #tpu.memory_space<vmem>>, %arg1: memref<16x16xf32, #tpu.memory_space<vmem>>, %arg2: memref<1x128xf32, #tpu.memory_space<vmem>>, %arg3: memref<1x128xf32, #tpu.memory_space<vmem>>, %arg4: memref<128x384xf32, #tpu.memory_space<vmem>>, %arg5: memref<128x128xf32, #tpu.memory_space<vmem>>, %arg6: memref<1x128xf32, #tpu.memory_space<vmem>>, %arg7: memref<1x128xf32, #tpu.memory_space<vmem>>, %arg8: memref<1x128xf32, #tpu.memory_space<vmem>>, %arg9: memref<128x512xf32, #tpu.memory_space<vmem>>, %arg10: memref<1x512xf32, #tpu.memory_space<vmem>>, %arg11: memref<512x128xf32, #tpu.memory_space<vmem>>, %arg12: memref<1x128xf32, #tpu.memory_space<vmem>>, %arg13: memref<1x128xf32, #tpu.memory_space<vmem>>, %arg14: memref<1x128xf32, #tpu.memory_space<vmem>>, %arg15: memref<128x384xf32, #tpu.memory_space<vmem>>, %arg16: memref<128x128xf32, #tpu.memory_space<vmem>>, %arg17: memref<1x128xf32, #tpu.memory_space<vmem>>, %arg18: memref<1x128xf32, #tpu.memory_space<vmem>>, %arg19: memref<1x128xf32, #tpu.memory_space<vmem>>, %arg20: memref<128x512xf32, #tpu.memory_space<vmem>>, %arg21: memref<1x512xf32, #tpu.memory_space<vmem>>, %arg22: memref<512x128xf32, #tpu.memory_space<vmem>>, %arg23: memref<1x128xf32, #tpu.memory_space<vmem>>, %arg24: memref<1x128xf32, #tpu.memory_space<vmem>>, %arg25: memref<1x128xf32, #tpu.memory_space<vmem>>, %arg26: memref<128x128xf32, #tpu.memory_space<vmem>>, %arg27: memref<1x128xf32, #tpu.memory_space<vmem>>, %arg28: memref<16x128xf32, #tpu.memory_space<vmem>>) attributes {dimension_semantics = [], scalar_prefetch = 0 : i64, scratch_operands = 0 : i64, tpu.core_type = #tpu.core_type<tc>} {
    %c0 = arith.constant 0 : index
    %c0_0 = arith.constant 0 : index
    %0 = vector.load %arg0[%c0, %c0_0] : memref<16x128xf32, #tpu.memory_space<vmem>>, vector<16x128xf32>
    %c0_1 = arith.constant 0 : index
    %c0_2 = arith.constant 0 : index
    %1 = vector.load %arg1[%c0_1, %c0_2] : memref<16x16xf32, #tpu.memory_space<vmem>>, vector<16x16xf32>
    %c0_3 = arith.constant 0 : index
    %c0_4 = arith.constant 0 : index
    %2 = vector.load %arg2[%c0_3, %c0_4] : memref<1x128xf32, #tpu.memory_space<vmem>>, vector<1x128xf32>
    %c0_5 = arith.constant 0 : index
    %c0_6 = arith.constant 0 : index
    %3 = vector.load %arg3[%c0_5, %c0_6] : memref<1x128xf32, #tpu.memory_space<vmem>>, vector<1x128xf32>
    %cst = arith.constant dense<0.000000e+00> : vector<16xf32>
    %4 = vector.multi_reduction <add>, %0, %cst [1] : vector<16x128xf32> to vector<16xf32>
    %5 = vector.shape_cast %4 : vector<16xf32> to vector<16x1xf32>
    %cst_7 = arith.constant 1.280000e+02 : f32
    %6 = vector.broadcast %cst_7 : f32 to vector<16x1xf32>
    %7 = arith.divf %5, %6 : vector<16x1xf32>
    %8 = vector.broadcast %7 : vector<16x1xf32> to vector<16x128xf32>
    %9 = arith.subf %0, %8 : vector<16x128xf32>
    %10 = arith.mulf %9, %9 : vector<16x128xf32>
    %cst_8 = arith.constant dense<0.000000e+00> : vector<16xf32>
    %11 = vector.multi_reduction <add>, %10, %cst_8 [1] : vector<16x128xf32> to vector<16xf32>
    %12 = vector.shape_cast %11 : vector<16xf32> to vector<16x1xf32>
    %cst_9 = arith.constant 1.280000e+02 : f32
    %13 = vector.broadcast %cst_9 : f32 to vector<16x1xf32>
    %14 = arith.divf %12, %13 : vector<16x1xf32>
    %15 = vector.broadcast %7 : vector<16x1xf32> to vector<16x128xf32>
    %16 = arith.subf %0, %15 : vector<16x128xf32>
    %cst_10 = arith.constant 9.99999974E-6 : f32
    %17 = vector.broadcast %cst_10 : f32 to vector<16x1xf32>
    %18 = arith.addf %14, %17 : vector<16x1xf32>
    %19 = math.rsqrt %18 : vector<16x1xf32>
    %20 = vector.broadcast %19 : vector<16x1xf32> to vector<16x128xf32>
    %21 = arith.mulf %16, %20 : vector<16x128xf32>
    %22 = vector.broadcast %2 : vector<1x128xf32> to vector<16x128xf32>
    %23 = arith.mulf %21, %22 : vector<16x128xf32>
    %24 = vector.broadcast %3 : vector<1x128xf32> to vector<16x128xf32>
    %25 = arith.addf %23, %24 : vector<16x128xf32>
    %c0_11 = arith.constant 0 : index
    %c0_12 = arith.constant 0 : index
    %26 = vector.load %arg4[%c0_11, %c0_12] : memref<128x384xf32, #tpu.memory_space<vmem>>, vector<128x384xf32>
    %cst_13 = arith.constant dense<0.000000e+00> : vector<16x384xf32>
    %27 = tpu.matmul %25, %26, %cst_13 {dimension_numbers = #tpu.dot_dimension_numbers<[1], [0], [0], [1], [0, 0, 1, 1], [], []>} : vector<16x128xf32>, vector<128x384xf32>, vector<16x384xf32> -> vector<16x384xf32>
    %28 = vector.extract_strided_slice %27 {offsets = [0, 0], sizes = [16, 128], strides = [1, 1]} : vector<16x384xf32> to vector<16x128xf32>
    %29 = vector.extract_strided_slice %27 {offsets = [0, 128], sizes = [16, 128], strides = [1, 1]} : vector<16x384xf32> to vector<16x128xf32>
    %30 = vector.extract_strided_slice %27 {offsets = [0, 256], sizes = [16, 128], strides = [1, 1]} : vector<16x384xf32> to vector<16x128xf32>
    %31 = vector.extract_strided_slice %28 {offsets = [0, 0], sizes = [16, 64], strides = [1, 1]} : vector<16x128xf32> to vector<16x64xf32>
    %32 = vector.extract_strided_slice %29 {offsets = [0, 0], sizes = [16, 64], strides = [1, 1]} : vector<16x128xf32> to vector<16x64xf32>
    %33 = vector.extract_strided_slice %30 {offsets = [0, 0], sizes = [16, 64], strides = [1, 1]} : vector<16x128xf32> to vector<16x64xf32>
    %cst_14 = arith.constant dense<0.000000e+00> : vector<16x16xf32>
    %34 = tpu.matmul %31, %32, %cst_14 {dimension_numbers = #tpu.dot_dimension_numbers<[1], [1], [0], [0], [0, 0, 1, 0], [], []>} : vector<16x64xf32>, vector<16x64xf32>, vector<16x16xf32> -> vector<16x16xf32>
    %cst_15 = arith.constant 0.0883883461 : f32
    %35 = vector.broadcast %cst_15 : f32 to vector<16x16xf32>
    %36 = arith.mulf %34, %35 : vector<16x16xf32>
    %37 = arith.addf %36, %1 : vector<16x16xf32>
    %cst_16 = arith.constant dense<0xFF800000> : vector<16xf32>
    %38 = vector.multi_reduction <maximumf>, %37, %cst_16 [1] : vector<16x16xf32> to vector<16xf32>
    %39 = vector.shape_cast %38 : vector<16xf32> to vector<16x1xf32>
    %40 = vector.broadcast %39 : vector<16x1xf32> to vector<16x16xf32>
    %41 = arith.subf %37, %40 : vector<16x16xf32>
    %42 = math.exp %41 : vector<16x16xf32>
    %cst_17 = arith.constant dense<0.000000e+00> : vector<16xf32>
    %43 = vector.multi_reduction <add>, %42, %cst_17 [1] : vector<16x16xf32> to vector<16xf32>
    %44 = vector.shape_cast %43 : vector<16xf32> to vector<16x1xf32>
    %45 = tpu.reciprocal %44 {approx = true} : vector<16x1xf32> -> vector<16x1xf32>
    %46 = vector.broadcast %45 : vector<16x1xf32> to vector<16x16xf32>
    %47 = arith.mulf %42, %46 : vector<16x16xf32>
    %cst_18 = arith.constant dense<0.000000e+00> : vector<16x64xf32>
    %48 = tpu.matmul %47, %33, %cst_18 {dimension_numbers = #tpu.dot_dimension_numbers<[1], [0], [0], [1], [0, 0, 1, 1], [], []>} : vector<16x16xf32>, vector<16x64xf32>, vector<16x64xf32> -> vector<16x64xf32>
    %c0_19 = arith.constant 0 : index
    %c0_20 = arith.constant 0 : index
    %49 = vector.load %arg5[%c0_19, %c0_20] : memref<128x128xf32, #tpu.memory_space<vmem>>, vector<64x128xf32>
    %cst_21 = arith.constant dense<0.000000e+00> : vector<16x128xf32>
    %50 = tpu.matmul %48, %49, %cst_21 {dimension_numbers = #tpu.dot_dimension_numbers<[1], [0], [0], [1], [0, 0, 1, 1], [], []>} : vector<16x64xf32>, vector<64x128xf32>, vector<16x128xf32> -> vector<16x128xf32>
    %51 = vector.extract_strided_slice %28 {offsets = [0, 64], sizes = [16, 64], strides = [1, 1]} : vector<16x128xf32> to vector<16x64xf32>
    %52 = vector.extract_strided_slice %29 {offsets = [0, 64], sizes = [16, 64], strides = [1, 1]} : vector<16x128xf32> to vector<16x64xf32>
    %53 = vector.extract_strided_slice %30 {offsets = [0, 64], sizes = [16, 64], strides = [1, 1]} : vector<16x128xf32> to vector<16x64xf32>
    %cst_22 = arith.constant dense<0.000000e+00> : vector<16x16xf32>
    %54 = tpu.matmul %51, %52, %cst_22 {dimension_numbers = #tpu.dot_dimension_numbers<[1], [1], [0], [0], [0, 0, 1, 0], [], []>} : vector<16x64xf32>, vector<16x64xf32>, vector<16x16xf32> -> vector<16x16xf32>
    %cst_23 = arith.constant 0.0883883461 : f32
    %55 = vector.broadcast %cst_23 : f32 to vector<16x16xf32>
    %56 = arith.mulf %54, %55 : vector<16x16xf32>
    %57 = arith.addf %56, %1 : vector<16x16xf32>
    %cst_24 = arith.constant dense<0xFF800000> : vector<16xf32>
    %58 = vector.multi_reduction <maximumf>, %57, %cst_24 [1] : vector<16x16xf32> to vector<16xf32>
    %59 = vector.shape_cast %58 : vector<16xf32> to vector<16x1xf32>
    %60 = vector.broadcast %59 : vector<16x1xf32> to vector<16x16xf32>
    %61 = arith.subf %57, %60 : vector<16x16xf32>
    %62 = math.exp %61 : vector<16x16xf32>
    %cst_25 = arith.constant dense<0.000000e+00> : vector<16xf32>
    %63 = vector.multi_reduction <add>, %62, %cst_25 [1] : vector<16x16xf32> to vector<16xf32>
    %64 = vector.shape_cast %63 : vector<16xf32> to vector<16x1xf32>
    %65 = tpu.reciprocal %64 {approx = true} : vector<16x1xf32> -> vector<16x1xf32>
    %66 = vector.broadcast %65 : vector<16x1xf32> to vector<16x16xf32>
    %67 = arith.mulf %62, %66 : vector<16x16xf32>
    %cst_26 = arith.constant dense<0.000000e+00> : vector<16x64xf32>
    %68 = tpu.matmul %67, %53, %cst_26 {dimension_numbers = #tpu.dot_dimension_numbers<[1], [0], [0], [1], [0, 0, 1, 1], [], []>} : vector<16x16xf32>, vector<16x64xf32>, vector<16x64xf32> -> vector<16x64xf32>
    %c64 = arith.constant 64 : index
    %c0_27 = arith.constant 0 : index
    %69 = vector.load %arg5[%c64, %c0_27] : memref<128x128xf32, #tpu.memory_space<vmem>>, vector<64x128xf32>
    %cst_28 = arith.constant dense<0.000000e+00> : vector<16x128xf32>
    %70 = tpu.matmul %68, %69, %cst_28 {dimension_numbers = #tpu.dot_dimension_numbers<[1], [0], [0], [1], [0, 0, 1, 1], [], []>} : vector<16x64xf32>, vector<64x128xf32>, vector<16x128xf32> -> vector<16x128xf32>
    %71 = arith.addf %50, %70 : vector<16x128xf32>
    %72 = arith.addf %0, %71 : vector<16x128xf32>
    %c0_29 = arith.constant 0 : index
    %c0_30 = arith.constant 0 : index
    %73 = vector.load %arg6[%c0_29, %c0_30] : memref<1x128xf32, #tpu.memory_space<vmem>>, vector<1x128xf32>
    %74 = vector.broadcast %73 : vector<1x128xf32> to vector<16x128xf32>
    %75 = arith.addf %72, %74 : vector<16x128xf32>
    %c0_31 = arith.constant 0 : index
    %c0_32 = arith.constant 0 : index
    %76 = vector.load %arg7[%c0_31, %c0_32] : memref<1x128xf32, #tpu.memory_space<vmem>>, vector<1x128xf32>
    %c0_33 = arith.constant 0 : index
    %c0_34 = arith.constant 0 : index
    %77 = vector.load %arg8[%c0_33, %c0_34] : memref<1x128xf32, #tpu.memory_space<vmem>>, vector<1x128xf32>
    %cst_35 = arith.constant dense<0.000000e+00> : vector<16xf32>
    %78 = vector.multi_reduction <add>, %75, %cst_35 [1] : vector<16x128xf32> to vector<16xf32>
    %79 = vector.shape_cast %78 : vector<16xf32> to vector<16x1xf32>
    %cst_36 = arith.constant 1.280000e+02 : f32
    %80 = vector.broadcast %cst_36 : f32 to vector<16x1xf32>
    %81 = arith.divf %79, %80 : vector<16x1xf32>
    %82 = vector.broadcast %81 : vector<16x1xf32> to vector<16x128xf32>
    %83 = arith.subf %75, %82 : vector<16x128xf32>
    %84 = arith.mulf %83, %83 : vector<16x128xf32>
    %cst_37 = arith.constant dense<0.000000e+00> : vector<16xf32>
    %85 = vector.multi_reduction <add>, %84, %cst_37 [1] : vector<16x128xf32> to vector<16xf32>
    %86 = vector.shape_cast %85 : vector<16xf32> to vector<16x1xf32>
    %cst_38 = arith.constant 1.280000e+02 : f32
    %87 = vector.broadcast %cst_38 : f32 to vector<16x1xf32>
    %88 = arith.divf %86, %87 : vector<16x1xf32>
    %89 = vector.broadcast %81 : vector<16x1xf32> to vector<16x128xf32>
    %90 = arith.subf %75, %89 : vector<16x128xf32>
    %cst_39 = arith.constant 9.99999974E-6 : f32
    %91 = vector.broadcast %cst_39 : f32 to vector<16x1xf32>
    %92 = arith.addf %88, %91 : vector<16x1xf32>
    %93 = math.rsqrt %92 : vector<16x1xf32>
    %94 = vector.broadcast %93 : vector<16x1xf32> to vector<16x128xf32>
    %95 = arith.mulf %90, %94 : vector<16x128xf32>
    %96 = vector.broadcast %76 : vector<1x128xf32> to vector<16x128xf32>
    %97 = arith.mulf %95, %96 : vector<16x128xf32>
    %98 = vector.broadcast %77 : vector<1x128xf32> to vector<16x128xf32>
    %99 = arith.addf %97, %98 : vector<16x128xf32>
    %c0_40 = arith.constant 0 : index
    %c0_41 = arith.constant 0 : index
    %100 = vector.load %arg9[%c0_40, %c0_41] : memref<128x512xf32, #tpu.memory_space<vmem>>, vector<128x512xf32>
    %cst_42 = arith.constant dense<0.000000e+00> : vector<16x512xf32>
    %101 = tpu.matmul %99, %100, %cst_42 {dimension_numbers = #tpu.dot_dimension_numbers<[1], [0], [0], [1], [0, 0, 1, 1], [], []>} : vector<16x128xf32>, vector<128x512xf32>, vector<16x512xf32> -> vector<16x512xf32>
    %c0_43 = arith.constant 0 : index
    %c0_44 = arith.constant 0 : index
    %102 = vector.load %arg10[%c0_43, %c0_44] : memref<1x512xf32, #tpu.memory_space<vmem>>, vector<1x512xf32>
    %103 = vector.broadcast %102 : vector<1x512xf32> to vector<16x512xf32>
    %104 = arith.addf %101, %103 : vector<16x512xf32>
    %cst_45 = arith.constant 0.000000e+00 : f32
    %105 = vector.broadcast %cst_45 : f32 to vector<16x512xf32>
    %106 = arith.maximumf %104, %105 : vector<16x512xf32>
    %c0_46 = arith.constant 0 : index
    %c0_47 = arith.constant 0 : index
    %107 = vector.load %arg11[%c0_46, %c0_47] : memref<512x128xf32, #tpu.memory_space<vmem>>, vector<512x128xf32>
    %cst_48 = arith.constant dense<0.000000e+00> : vector<16x128xf32>
    %108 = tpu.matmul %106, %107, %cst_48 {dimension_numbers = #tpu.dot_dimension_numbers<[1], [0], [0], [1], [0, 0, 1, 1], [], []>} : vector<16x512xf32>, vector<512x128xf32>, vector<16x128xf32> -> vector<16x128xf32>
    %109 = arith.addf %75, %108 : vector<16x128xf32>
    %c0_49 = arith.constant 0 : index
    %c0_50 = arith.constant 0 : index
    %110 = vector.load %arg12[%c0_49, %c0_50] : memref<1x128xf32, #tpu.memory_space<vmem>>, vector<1x128xf32>
    %111 = vector.broadcast %110 : vector<1x128xf32> to vector<16x128xf32>
    %112 = arith.addf %109, %111 : vector<16x128xf32>
    %c0_51 = arith.constant 0 : index
    %c0_52 = arith.constant 0 : index
    %113 = vector.load %arg13[%c0_51, %c0_52] : memref<1x128xf32, #tpu.memory_space<vmem>>, vector<1x128xf32>
    %c0_53 = arith.constant 0 : index
    %c0_54 = arith.constant 0 : index
    %114 = vector.load %arg14[%c0_53, %c0_54] : memref<1x128xf32, #tpu.memory_space<vmem>>, vector<1x128xf32>
    %cst_55 = arith.constant dense<0.000000e+00> : vector<16xf32>
    %115 = vector.multi_reduction <add>, %112, %cst_55 [1] : vector<16x128xf32> to vector<16xf32>
    %116 = vector.shape_cast %115 : vector<16xf32> to vector<16x1xf32>
    %cst_56 = arith.constant 1.280000e+02 : f32
    %117 = vector.broadcast %cst_56 : f32 to vector<16x1xf32>
    %118 = arith.divf %116, %117 : vector<16x1xf32>
    %119 = vector.broadcast %118 : vector<16x1xf32> to vector<16x128xf32>
    %120 = arith.subf %112, %119 : vector<16x128xf32>
    %121 = arith.mulf %120, %120 : vector<16x128xf32>
    %cst_57 = arith.constant dense<0.000000e+00> : vector<16xf32>
    %122 = vector.multi_reduction <add>, %121, %cst_57 [1] : vector<16x128xf32> to vector<16xf32>
    %123 = vector.shape_cast %122 : vector<16xf32> to vector<16x1xf32>
    %cst_58 = arith.constant 1.280000e+02 : f32
    %124 = vector.broadcast %cst_58 : f32 to vector<16x1xf32>
    %125 = arith.divf %123, %124 : vector<16x1xf32>
    %126 = vector.broadcast %118 : vector<16x1xf32> to vector<16x128xf32>
    %127 = arith.subf %112, %126 : vector<16x128xf32>
    %cst_59 = arith.constant 9.99999974E-6 : f32
    %128 = vector.broadcast %cst_59 : f32 to vector<16x1xf32>
    %129 = arith.addf %125, %128 : vector<16x1xf32>
    %130 = math.rsqrt %129 : vector<16x1xf32>
    %131 = vector.broadcast %130 : vector<16x1xf32> to vector<16x128xf32>
    %132 = arith.mulf %127, %131 : vector<16x128xf32>
    %133 = vector.broadcast %113 : vector<1x128xf32> to vector<16x128xf32>
    %134 = arith.mulf %132, %133 : vector<16x128xf32>
    %135 = vector.broadcast %114 : vector<1x128xf32> to vector<16x128xf32>
    %136 = arith.addf %134, %135 : vector<16x128xf32>
    %c0_60 = arith.constant 0 : index
    %c0_61 = arith.constant 0 : index
    %137 = vector.load %arg15[%c0_60, %c0_61] : memref<128x384xf32, #tpu.memory_space<vmem>>, vector<128x384xf32>
    %cst_62 = arith.constant dense<0.000000e+00> : vector<16x384xf32>
    %138 = tpu.matmul %136, %137, %cst_62 {dimension_numbers = #tpu.dot_dimension_numbers<[1], [0], [0], [1], [0, 0, 1, 1], [], []>} : vector<16x128xf32>, vector<128x384xf32>, vector<16x384xf32> -> vector<16x384xf32>
    %139 = vector.extract_strided_slice %138 {offsets = [0, 0], sizes = [16, 128], strides = [1, 1]} : vector<16x384xf32> to vector<16x128xf32>
    %140 = vector.extract_strided_slice %138 {offsets = [0, 128], sizes = [16, 128], strides = [1, 1]} : vector<16x384xf32> to vector<16x128xf32>
    %141 = vector.extract_strided_slice %138 {offsets = [0, 256], sizes = [16, 128], strides = [1, 1]} : vector<16x384xf32> to vector<16x128xf32>
    %142 = vector.extract_strided_slice %139 {offsets = [0, 0], sizes = [16, 64], strides = [1, 1]} : vector<16x128xf32> to vector<16x64xf32>
    %143 = vector.extract_strided_slice %140 {offsets = [0, 0], sizes = [16, 64], strides = [1, 1]} : vector<16x128xf32> to vector<16x64xf32>
    %144 = vector.extract_strided_slice %141 {offsets = [0, 0], sizes = [16, 64], strides = [1, 1]} : vector<16x128xf32> to vector<16x64xf32>
    %cst_63 = arith.constant dense<0.000000e+00> : vector<16x16xf32>
    %145 = tpu.matmul %142, %143, %cst_63 {dimension_numbers = #tpu.dot_dimension_numbers<[1], [1], [0], [0], [0, 0, 1, 0], [], []>} : vector<16x64xf32>, vector<16x64xf32>, vector<16x16xf32> -> vector<16x16xf32>
    %cst_64 = arith.constant 0.0883883461 : f32
    %146 = vector.broadcast %cst_64 : f32 to vector<16x16xf32>
    %147 = arith.mulf %145, %146 : vector<16x16xf32>
    %148 = arith.addf %147, %1 : vector<16x16xf32>
    %cst_65 = arith.constant dense<0xFF800000> : vector<16xf32>
    %149 = vector.multi_reduction <maximumf>, %148, %cst_65 [1] : vector<16x16xf32> to vector<16xf32>
    %150 = vector.shape_cast %149 : vector<16xf32> to vector<16x1xf32>
    %151 = vector.broadcast %150 : vector<16x1xf32> to vector<16x16xf32>
    %152 = arith.subf %148, %151 : vector<16x16xf32>
    %153 = math.exp %152 : vector<16x16xf32>
    %cst_66 = arith.constant dense<0.000000e+00> : vector<16xf32>
    %154 = vector.multi_reduction <add>, %153, %cst_66 [1] : vector<16x16xf32> to vector<16xf32>
    %155 = vector.shape_cast %154 : vector<16xf32> to vector<16x1xf32>
    %156 = tpu.reciprocal %155 {approx = true} : vector<16x1xf32> -> vector<16x1xf32>
    %157 = vector.broadcast %156 : vector<16x1xf32> to vector<16x16xf32>
    %158 = arith.mulf %153, %157 : vector<16x16xf32>
    %cst_67 = arith.constant dense<0.000000e+00> : vector<16x64xf32>
    %159 = tpu.matmul %158, %144, %cst_67 {dimension_numbers = #tpu.dot_dimension_numbers<[1], [0], [0], [1], [0, 0, 1, 1], [], []>} : vector<16x16xf32>, vector<16x64xf32>, vector<16x64xf32> -> vector<16x64xf32>
    %c0_68 = arith.constant 0 : index
    %c0_69 = arith.constant 0 : index
    %160 = vector.load %arg16[%c0_68, %c0_69] : memref<128x128xf32, #tpu.memory_space<vmem>>, vector<64x128xf32>
    %cst_70 = arith.constant dense<0.000000e+00> : vector<16x128xf32>
    %161 = tpu.matmul %159, %160, %cst_70 {dimension_numbers = #tpu.dot_dimension_numbers<[1], [0], [0], [1], [0, 0, 1, 1], [], []>} : vector<16x64xf32>, vector<64x128xf32>, vector<16x128xf32> -> vector<16x128xf32>
    %162 = vector.extract_strided_slice %139 {offsets = [0, 64], sizes = [16, 64], strides = [1, 1]} : vector<16x128xf32> to vector<16x64xf32>
    %163 = vector.extract_strided_slice %140 {offsets = [0, 64], sizes = [16, 64], strides = [1, 1]} : vector<16x128xf32> to vector<16x64xf32>
    %164 = vector.extract_strided_slice %141 {offsets = [0, 64], sizes = [16, 64], strides = [1, 1]} : vector<16x128xf32> to vector<16x64xf32>
    %cst_71 = arith.constant dense<0.000000e+00> : vector<16x16xf32>
    %165 = tpu.matmul %162, %163, %cst_71 {dimension_numbers = #tpu.dot_dimension_numbers<[1], [1], [0], [0], [0, 0, 1, 0], [], []>} : vector<16x64xf32>, vector<16x64xf32>, vector<16x16xf32> -> vector<16x16xf32>
    %cst_72 = arith.constant 0.0883883461 : f32
    %166 = vector.broadcast %cst_72 : f32 to vector<16x16xf32>
    %167 = arith.mulf %165, %166 : vector<16x16xf32>
    %168 = arith.addf %167, %1 : vector<16x16xf32>
    %cst_73 = arith.constant dense<0xFF800000> : vector<16xf32>
    %169 = vector.multi_reduction <maximumf>, %168, %cst_73 [1] : vector<16x16xf32> to vector<16xf32>
    %170 = vector.shape_cast %169 : vector<16xf32> to vector<16x1xf32>
    %171 = vector.broadcast %170 : vector<16x1xf32> to vector<16x16xf32>
    %172 = arith.subf %168, %171 : vector<16x16xf32>
    %173 = math.exp %172 : vector<16x16xf32>
    %cst_74 = arith.constant dense<0.000000e+00> : vector<16xf32>
    %174 = vector.multi_reduction <add>, %173, %cst_74 [1] : vector<16x16xf32> to vector<16xf32>
    %175 = vector.shape_cast %174 : vector<16xf32> to vector<16x1xf32>
    %176 = tpu.reciprocal %175 {approx = true} : vector<16x1xf32> -> vector<16x1xf32>
    %177 = vector.broadcast %176 : vector<16x1xf32> to vector<16x16xf32>
    %178 = arith.mulf %173, %177 : vector<16x16xf32>
    %cst_75 = arith.constant dense<0.000000e+00> : vector<16x64xf32>
    %179 = tpu.matmul %178, %164, %cst_75 {dimension_numbers = #tpu.dot_dimension_numbers<[1], [0], [0], [1], [0, 0, 1, 1], [], []>} : vector<16x16xf32>, vector<16x64xf32>, vector<16x64xf32> -> vector<16x64xf32>
    %c64_76 = arith.constant 64 : index
    %c0_77 = arith.constant 0 : index
    %180 = vector.load %arg16[%c64_76, %c0_77] : memref<128x128xf32, #tpu.memory_space<vmem>>, vector<64x128xf32>
    %cst_78 = arith.constant dense<0.000000e+00> : vector<16x128xf32>
    %181 = tpu.matmul %179, %180, %cst_78 {dimension_numbers = #tpu.dot_dimension_numbers<[1], [0], [0], [1], [0, 0, 1, 1], [], []>} : vector<16x64xf32>, vector<64x128xf32>, vector<16x128xf32> -> vector<16x128xf32>
    %182 = arith.addf %161, %181 : vector<16x128xf32>
    %183 = arith.addf %112, %182 : vector<16x128xf32>
    %c0_79 = arith.constant 0 : index
    %c0_80 = arith.constant 0 : index
    %184 = vector.load %arg17[%c0_79, %c0_80] : memref<1x128xf32, #tpu.memory_space<vmem>>, vector<1x128xf32>
    %185 = vector.broadcast %184 : vector<1x128xf32> to vector<16x128xf32>
    %186 = arith.addf %183, %185 : vector<16x128xf32>
    %c0_81 = arith.constant 0 : index
    %c0_82 = arith.constant 0 : index
    %187 = vector.load %arg18[%c0_81, %c0_82] : memref<1x128xf32, #tpu.memory_space<vmem>>, vector<1x128xf32>
    %c0_83 = arith.constant 0 : index
    %c0_84 = arith.constant 0 : index
    %188 = vector.load %arg19[%c0_83, %c0_84] : memref<1x128xf32, #tpu.memory_space<vmem>>, vector<1x128xf32>
    %cst_85 = arith.constant dense<0.000000e+00> : vector<16xf32>
    %189 = vector.multi_reduction <add>, %186, %cst_85 [1] : vector<16x128xf32> to vector<16xf32>
    %190 = vector.shape_cast %189 : vector<16xf32> to vector<16x1xf32>
    %cst_86 = arith.constant 1.280000e+02 : f32
    %191 = vector.broadcast %cst_86 : f32 to vector<16x1xf32>
    %192 = arith.divf %190, %191 : vector<16x1xf32>
    %193 = vector.broadcast %192 : vector<16x1xf32> to vector<16x128xf32>
    %194 = arith.subf %186, %193 : vector<16x128xf32>
    %195 = arith.mulf %194, %194 : vector<16x128xf32>
    %cst_87 = arith.constant dense<0.000000e+00> : vector<16xf32>
    %196 = vector.multi_reduction <add>, %195, %cst_87 [1] : vector<16x128xf32> to vector<16xf32>
    %197 = vector.shape_cast %196 : vector<16xf32> to vector<16x1xf32>
    %cst_88 = arith.constant 1.280000e+02 : f32
    %198 = vector.broadcast %cst_88 : f32 to vector<16x1xf32>
    %199 = arith.divf %197, %198 : vector<16x1xf32>
    %200 = vector.broadcast %192 : vector<16x1xf32> to vector<16x128xf32>
    %201 = arith.subf %186, %200 : vector<16x128xf32>
    %cst_89 = arith.constant 9.99999974E-6 : f32
    %202 = vector.broadcast %cst_89 : f32 to vector<16x1xf32>
    %203 = arith.addf %199, %202 : vector<16x1xf32>
    %204 = math.rsqrt %203 : vector<16x1xf32>
    %205 = vector.broadcast %204 : vector<16x1xf32> to vector<16x128xf32>
    %206 = arith.mulf %201, %205 : vector<16x128xf32>
    %207 = vector.broadcast %187 : vector<1x128xf32> to vector<16x128xf32>
    %208 = arith.mulf %206, %207 : vector<16x128xf32>
    %209 = vector.broadcast %188 : vector<1x128xf32> to vector<16x128xf32>
    %210 = arith.addf %208, %209 : vector<16x128xf32>
    %c0_90 = arith.constant 0 : index
    %c0_91 = arith.constant 0 : index
    %211 = vector.load %arg20[%c0_90, %c0_91] : memref<128x512xf32, #tpu.memory_space<vmem>>, vector<128x512xf32>
    %cst_92 = arith.constant dense<0.000000e+00> : vector<16x512xf32>
    %212 = tpu.matmul %210, %211, %cst_92 {dimension_numbers = #tpu.dot_dimension_numbers<[1], [0], [0], [1], [0, 0, 1, 1], [], []>} : vector<16x128xf32>, vector<128x512xf32>, vector<16x512xf32> -> vector<16x512xf32>
    %c0_93 = arith.constant 0 : index
    %c0_94 = arith.constant 0 : index
    %213 = vector.load %arg21[%c0_93, %c0_94] : memref<1x512xf32, #tpu.memory_space<vmem>>, vector<1x512xf32>
    %214 = vector.broadcast %213 : vector<1x512xf32> to vector<16x512xf32>
    %215 = arith.addf %212, %214 : vector<16x512xf32>
    %cst_95 = arith.constant 0.000000e+00 : f32
    %216 = vector.broadcast %cst_95 : f32 to vector<16x512xf32>
    %217 = arith.maximumf %215, %216 : vector<16x512xf32>
    %c0_96 = arith.constant 0 : index
    %c0_97 = arith.constant 0 : index
    %218 = vector.load %arg22[%c0_96, %c0_97] : memref<512x128xf32, #tpu.memory_space<vmem>>, vector<512x128xf32>
    %cst_98 = arith.constant dense<0.000000e+00> : vector<16x128xf32>
    %219 = tpu.matmul %217, %218, %cst_98 {dimension_numbers = #tpu.dot_dimension_numbers<[1], [0], [0], [1], [0, 0, 1, 1], [], []>} : vector<16x512xf32>, vector<512x128xf32>, vector<16x128xf32> -> vector<16x128xf32>
    %220 = arith.addf %186, %219 : vector<16x128xf32>
    %c0_99 = arith.constant 0 : index
    %c0_100 = arith.constant 0 : index
    %221 = vector.load %arg23[%c0_99, %c0_100] : memref<1x128xf32, #tpu.memory_space<vmem>>, vector<1x128xf32>
    %222 = vector.broadcast %221 : vector<1x128xf32> to vector<16x128xf32>
    %223 = arith.addf %220, %222 : vector<16x128xf32>
    %c0_101 = arith.constant 0 : index
    %c0_102 = arith.constant 0 : index
    %224 = vector.load %arg24[%c0_101, %c0_102] : memref<1x128xf32, #tpu.memory_space<vmem>>, vector<1x128xf32>
    %c0_103 = arith.constant 0 : index
    %c0_104 = arith.constant 0 : index
    %225 = vector.load %arg25[%c0_103, %c0_104] : memref<1x128xf32, #tpu.memory_space<vmem>>, vector<1x128xf32>
    %cst_105 = arith.constant dense<0.000000e+00> : vector<16xf32>
    %226 = vector.multi_reduction <add>, %223, %cst_105 [1] : vector<16x128xf32> to vector<16xf32>
    %227 = vector.shape_cast %226 : vector<16xf32> to vector<16x1xf32>
    %cst_106 = arith.constant 1.280000e+02 : f32
    %228 = vector.broadcast %cst_106 : f32 to vector<16x1xf32>
    %229 = arith.divf %227, %228 : vector<16x1xf32>
    %230 = vector.broadcast %229 : vector<16x1xf32> to vector<16x128xf32>
    %231 = arith.subf %223, %230 : vector<16x128xf32>
    %232 = arith.mulf %231, %231 : vector<16x128xf32>
    %cst_107 = arith.constant dense<0.000000e+00> : vector<16xf32>
    %233 = vector.multi_reduction <add>, %232, %cst_107 [1] : vector<16x128xf32> to vector<16xf32>
    %234 = vector.shape_cast %233 : vector<16xf32> to vector<16x1xf32>
    %cst_108 = arith.constant 1.280000e+02 : f32
    %235 = vector.broadcast %cst_108 : f32 to vector<16x1xf32>
    %236 = arith.divf %234, %235 : vector<16x1xf32>
    %237 = vector.broadcast %229 : vector<16x1xf32> to vector<16x128xf32>
    %238 = arith.subf %223, %237 : vector<16x128xf32>
    %cst_109 = arith.constant 9.99999974E-6 : f32
    %239 = vector.broadcast %cst_109 : f32 to vector<16x1xf32>
    %240 = arith.addf %236, %239 : vector<16x1xf32>
    %241 = math.rsqrt %240 : vector<16x1xf32>
    %242 = vector.broadcast %241 : vector<16x1xf32> to vector<16x128xf32>
    %243 = arith.mulf %238, %242 : vector<16x128xf32>
    %244 = vector.broadcast %224 : vector<1x128xf32> to vector<16x128xf32>
    %245 = arith.mulf %243, %244 : vector<16x128xf32>
    %246 = vector.broadcast %225 : vector<1x128xf32> to vector<16x128xf32>
    %247 = arith.addf %245, %246 : vector<16x128xf32>
    %c0_110 = arith.constant 0 : index
    %c0_111 = arith.constant 0 : index
    %248 = vector.load %arg26[%c0_110, %c0_111] : memref<128x128xf32, #tpu.memory_space<vmem>>, vector<128x128xf32>
    %cst_112 = arith.constant dense<0.000000e+00> : vector<16x128xf32>
    %249 = tpu.matmul %247, %248, %cst_112 {dimension_numbers = #tpu.dot_dimension_numbers<[1], [0], [0], [1], [0, 0, 1, 1], [], []>} : vector<16x128xf32>, vector<128x128xf32>, vector<16x128xf32> -> vector<16x128xf32>
    %c0_113 = arith.constant 0 : index
    %c0_114 = arith.constant 0 : index
    %250 = vector.load %arg27[%c0_113, %c0_114] : memref<1x128xf32, #tpu.memory_space<vmem>>, vector<1x128xf32>
    %251 = vector.broadcast %250 : vector<1x128xf32> to vector<16x128xf32>
    %252 = arith.addf %249, %251 : vector<16x128xf32>
    %c0_115 = arith.constant 0 : index
    %c0_116 = arith.constant 0 : index
    %253 = vector.load %arg28[%c0_115, %c0_116] : memref<16x128xf32, #tpu.memory_space<vmem>>, vector<16x128xf32>
    tpu.vector_store %arg28[%c0_115, %c0_116], %252 {strides = array<i32>} : memref<16x128xf32, #tpu.memory_space<vmem>>, vector<16x128xf32>,
    return
  }
}

</mosaic_0001>

<llo_original>
// kernel: language_model_forward.1
$region0: #{language_model_forward.1}
  #allocation0 [shape = 'u32[]', space=smem, size = 0x4, offset = 0x4, fixed_abs, tag = 'smem constant byte address 0x4 - core index']
  #allocation1 [shape = 'u32[144,128]{1,0:T(1,128)}', space=vmem, size = 0x12000, scoped, tag = 'internal scratch']
  %s0 = inlined_call_operand.vmem [shape: f32[16,128], index: 0, kind: input, shape index: {}]
  %s1 = inlined_call_operand.vmem [shape: f32[16,16], index: 1, kind: input, shape index: {}]
  %s2 = inlined_call_operand.hbm [shape: f32[1,128], index: 2, kind: input, shape index: {}]
  %s3 = inlined_call_operand.hbm [shape: f32[1,128], index: 3, kind: input, shape index: {}]
  %s4 = inlined_call_operand.hbm [shape: f32[128,384], index: 4, kind: input, shape index: {}]
  %s5 = inlined_call_operand.vmem [shape: f32[128,128], index: 5, kind: input, shape index: {}]
  %s6 = inlined_call_operand.hbm [shape: f32[1,128], index: 6, kind: input, shape index: {}]
  %s7 = inlined_call_operand.vmem [shape: f32[1,128], index: 7, kind: input, shape index: {}]
  %s8 = inlined_call_operand.hbm [shape: f32[1,128], index: 8, kind: input, shape index: {}]
  %s9 = inlined_call_operand.hbm [shape: f32[128,512], index: 9, kind: input, shape index: {}]
  %s10 = inlined_call_operand.vmem [shape: f32[1,512], index: 10, kind: input, shape index: {}]
  %s11 = inlined_call_operand.hbm [shape: f32[512,128], index: 11, kind: input, shape index: {}]
  %s12 = inlined_call_operand.hbm [shape: f32[1,128], index: 12, kind: input, shape index: {}]
  %s13 = inlined_call_operand.vmem [shape: f32[1,128], index: 13, kind: input, shape index: {}]
  %s14 = inlined_call_operand.vmem [shape: f32[1,128], index: 14, kind: input, shape index: {}]
  %s15 = inlined_call_operand.hbm [shape: f32[128,384], index: 15, kind: input, shape index: {}]
  %s16 = inlined_call_operand.vmem [shape: f32[128,128], index: 16, kind: input, shape index: {}]
  %s17 = inlined_call_operand.vmem [shape: f32[1,128], index: 17, kind: input, shape index: {}]
  %s18 = inlined_call_operand.vmem [shape: f32[1,128], index: 18, kind: input, shape index: {}]
  %s19 = inlined_call_operand.vmem [shape: f32[1,128], index: 19, kind: input, shape index: {}]
  %s20 = inlined_call_operand.hbm [shape: f32[128,512], index: 20, kind: input, shape index: {}]
  %s21 = inlined_call_operand.vmem [shape: f32[1,512], index: 21, kind: input, shape index: {}]
  %s22 = inlined_call_operand.hbm [shape: f32[512,128], index: 22, kind: input, shape index: {}]
  %s23 = inlined_call_operand.vmem [shape: f32[1,128], index: 23, kind: input, shape index: {}]
  %s24 = inlined_call_operand.vmem [shape: f32[1,128], index: 24, kind: input, shape index: {}]
  %s25 = inlined_call_operand.vmem [shape: f32[1,128], index: 25, kind: input, shape index: {}]
  %s26 = inlined_call_operand.hbm [shape: f32[128,128], index: 26, kind: input, shape index: {}]
  %s27 = inlined_call_operand.vmem [shape: f32[1,128], index: 27, kind: input, shape index: {}]
  %s28 = inlined_call_operand.hbm [shape: f32[16,128], index: 28, kind: output, shape index: {}]
  %s29 = sld [smem:[#allocation0]]
  $region170: #{language_model_forward.1} parent=0
    _
  %s31 = ssub.s32 1, %s29
  %s32 = scalar_select 0, %s31, %s29
  $region1: #{language_model_forward.1} parent=0
    #allocation2 [shape = 'u8[512]{0}', space=vmem, size = 0x400, scoped, tag = 'input window, operand 2, single buffered']
    #allocation3 [shape = 's32[1]{0}', space=sflag, size = 0x4, scoped, tag = 'scoped memory for language_model_forward.1']
    #allocation4 [shape = 's32[1]{0}', space=sflag, size = 0x4, scoped, tag = 'scoped memory for language_model_forward.1']
    #allocation5 [shape = 'u8[512]{0}', space=vmem, size = 0x400, scoped, tag = 'input window, operand 3, single buffered']
    #allocation6 [shape = 's32[1]{0}', space=sflag, size = 0x4, scoped, tag = 'scoped memory for language_model_forward.1']
    #allocation7 [shape = 'u8[196608]{0}', space=vmem, size = 0x30000, scoped, tag = 'input window, operand 4, single buffered']
    #allocation8 [shape = 'u8[512]{0}', space=vmem, size = 0x400, scoped, tag = 'input window, operand 6, single buffered']
    #allocation9 [shape = 's32[1]{0}', space=sflag, size = 0x4, scoped, tag = 'scoped memory for language_model_forward.1']
    #allocation10 [shape = 'u8[512]{0}', space=vmem, size = 0x400, scoped, tag = 'input window, operand 8, single buffered']
    #allocation11 [shape = 'u8[262144]{0}', space=vmem, size = 0x40000, scoped, tag = 'input window, operand 9, single buffered']
    #allocation12 [shape = 's32[1]{0}', space=sflag, size = 0x4, scoped, tag = 'scoped memory for language_model_forward.1']
    #allocation13 [shape = 'u8[262144]{0}', space=vmem, size = 0x40000, scoped, tag = 'input window, operand 11, single buffered']
    #allocation14 [shape = 'u8[512]{0}', space=vmem, size = 0x400, scoped, tag = 'input window, operand 12, single buffered']
    #allocation15 [shape = 's32[1]{0}', space=sflag, size = 0x4, scoped, tag = 'scoped memory for language_model_forward.1']
    #allocation16 [shape = 'u8[196608]{0}', space=vmem, size = 0x30000, scoped, tag = 'input window, operand 15, single buffered']
    #allocation17 [shape = 'u8[262144]{0}', space=vmem, size = 0x40000, scoped, tag = 'input window, operand 20, single buffered']
    #allocation18 [shape = 's32[1]{0}', space=sflag, size = 0x4, scoped, tag = 'scoped memory for language_model_forward.1']
    #allocation19 [shape = 'u8[262144]{0}', space=vmem, size = 0x40000, scoped, tag = 'input window, operand 22, single buffered']
    #allocation20 [shape = 'u8[65536]{0}', space=vmem, size = 0x10000, scoped, tag = 'input window, operand 26, single buffered']
    #allocation21 [shape = 's32[1]{0}', space=sflag, size = 0x4, scoped, tag = 'scoped memory for language_model_forward.1']
    #allocation22 [shape = 'u8[8192]{0}', space=vmem, size = 0x2000, scoped, tag = 'output window, operand 0, single buffered']
    %33 = vsyncpa [#allocation3], 0
    %34 = vsyncpa [#allocation6], 0
    %35 = vsyncpa [#allocation9], 0
    %36 = vsyncpa [#allocation12], 0
    %37 = vsyncpa [#allocation15], 0
    %38 = vsyncpa [#allocation18], 0
    %39 = vsyncpa [#allocation21], 0
    %40 = vsyncpa [#allocation4], 0
    // Predicated region
    $region2: #{language_model_forward.1} parent=1 // pred_check
      _
    $region3: #{language_model_forward.1} parent=1 // pred_check_branch
      %42 = sbr.rel (0) target = $region5
    $region4: #{language_model_forward.1} parent=1 // pred_region
      _
    $region5: #{language_model_forward.1} parent=1 // pred_fallthru
      _
    // Predicated region
    $region6: #{language_model_forward.1} parent=1 // pred_check
      _
    $region7: #{language_model_forward.1} parent=1 // pred_check_branch
      %44 = sbr.rel (0) target = $region9
    $region8: #{language_model_forward.1} parent=1 // pred_region
      _
    $region9: #{language_model_forward.1} parent=1 // pred_fallthru
      _
    // Predicated region
    $region10: #{language_model_forward.1} parent=1 // pred_check
      _
    $region11: #{language_model_forward.1} parent=1 // pred_check_branch
      %46 = sbr.rel (0) target = $region13
    $region12: #{language_model_forward.1} parent=1 // pred_region
      %s48 = ssub.s32 16, 16
      %49 = vsyncadd [#allocation3], %s48
      %s51 = sshll.u32 [#allocation2], 4
      %s52 = int_to_ptr.vmem [resolvable:$true] %s51
      %54 = dma.hbm_to_vmem [thread:$0]  %s2, 16, %s52, [#allocation3]
    $region13: #{language_model_forward.1} parent=1 // pred_fallthru
      _
    // Predicated region
    $region14: #{language_model_forward.1} parent=1 // pred_check
      _
    $region15: #{language_model_forward.1} parent=1 // pred_check_branch
      %56 = sbr.rel (0) target = $region17
    $region16: #{language_model_forward.1} parent=1 // pred_region
      %s58 = ssub.s32 16, 16
      %59 = vsyncadd [#allocation6], %s58
      %s61 = sshll.u32 [#allocation5], 4
      %s62 = int_to_ptr.vmem [resolvable:$true] %s61
      %64 = dma.hbm_to_vmem [thread:$0]  %s3, 16, %s62, [#allocation6]
    $region17: #{language_model_forward.1} parent=1 // pred_fallthru
      _
    // Predicated region
    $region18: #{language_model_forward.1} parent=1 // pred_check
      _
    $region19: #{language_model_forward.1} parent=1 // pred_check_branch
      %66 = sbr.rel (0) target = $region21
    $region20: #{language_model_forward.1} parent=1 // pred_region
      %s68 = ssub.s32 6144, 6144
      %69 = vsyncadd [#allocation6], %s68
      %s70 = sshll.u32 [#allocation7], 4
      %s71 = int_to_ptr.vmem [resolvable:$true] %s70
      %76 = dma.hbm_to_vmem [thread:$0]  %s4, 6144, %s71, [#allocation6], 384, 384, 24
    $region21: #{language_model_forward.1} parent=1 // pred_fallthru
      _
    // Predicated region
    $region22: #{language_model_forward.1} parent=1 // pred_check
      _
    $region23: #{language_model_forward.1} parent=1 // pred_check_branch
      %78 = sbr.rel (0) target = $region25
    $region24: #{language_model_forward.1} parent=1 // pred_region
      _
    $region25: #{language_model_forward.1} parent=1 // pred_fallthru
      _
    // Predicated region
    $region26: #{language_model_forward.1} parent=1 // pred_check
      _
    $region27: #{language_model_forward.1} parent=1 // pred_check_branch
      %80 = sbr.rel (0) target = $region29
    $region28: #{language_model_forward.1} parent=1 // pred_region
      %s82 = ssub.s32 16, 16
      %83 = vsyncadd [#allocation9], %s82
      %s85 = sshll.u32 [#allocation8], 4
      %s86 = int_to_ptr.vmem [resolvable:$true] %s85
      %88 = dma.hbm_to_vmem [thread:$0]  %s6, 16, %s86, [#allocation9]
    $region29: #{language_model_forward.1} parent=1 // pred_fallthru
      _
    // Predicated region
    $region30: #{language_model_forward.1} parent=1 // pred_check
      _
    $region31: #{language_model_forward.1} parent=1 // pred_check_branch
      %90 = sbr.rel (0) target = $region33
    $region32: #{language_model_forward.1} parent=1 // pred_region
      _
    $region33: #{language_model_forward.1} parent=1 // pred_fallthru
      _
    // Predicated region
    $region34: #{language_model_forward.1} parent=1 // pred_check
      _
    $region35: #{language_model_forward.1} parent=1 // pred_check_branch
      %92 = sbr.rel (0) target = $region37
    $region36: #{language_model_forward.1} parent=1 // pred_region
      %s94 = ssub.s32 16, 16
      %95 = vsyncadd [#allocation9], %s94
      %s97 = sshll.u32 [#allocation10], 4
      %s98 = int_to_ptr.vmem [resolvable:$true] %s97
      %100 = dma.hbm_to_vmem [thread:$0]  %s8, 16, %s98, [#allocation9]
    $region37: #{language_model_forward.1} parent=1 // pred_fallthru
      _
    // Predicated region
    $region38: #{language_model_forward.1} parent=1 // pred_check
      _
    $region39: #{language_model_forward.1} parent=1 // pred_check_branch
      %102 = sbr.rel (0) target = $region41
    $region40: #{language_model_forward.1} parent=1 // pred_region
      %s104 = ssub.s32 8192, 8192
      %105 = vsyncadd [#allocation12], %s104
      %s106 = sshll.u32 [#allocation11], 4
      %s107 = int_to_ptr.vmem [resolvable:$true] %s106
      %112 = dma.hbm_to_vmem [thread:$0]  %s9, 8192, %s107, [#allocation12], 512, 512, 32
    $region41: #{language_model_forward.1} parent=1 // pred_fallthru
      _
    // Predicated region
    $region42: #{language_model_forward.1} parent=1 // pred_check
      _
    $region43: #{language_model_forward.1} parent=1 // pred_check_branch
      %114 = sbr.rel (0) target = $region45
    $region44: #{language_model_forward.1} parent=1 // pred_region
      _
    $region45: #{language_model_forward.1} parent=1 // pred_fallthru
      _
    // Predicated region
    $region46: #{language_model_forward.1} parent=1 // pred_check
      _
    $region47: #{language_model_forward.1} parent=1 // pred_check_branch
      %116 = sbr.rel (0) target = $region49
    $region48: #{language_model_forward.1} parent=1 // pred_region
      %s118 = ssub.s32 8192, 8192
      %119 = vsyncadd [#allocation12], %s118
      %s120 = sshll.u32 [#allocation13], 4
      %s121 = int_to_ptr.vmem [resolvable:$true] %s120
      %126 = dma.hbm_to_vmem [thread:$0]  %s11, 8192, %s121, [#allocation12], 128, 128, 8
    $region49: #{language_model_forward.1} parent=1 // pred_fallthru
      _
    // Predicated region
    $region50: #{language_model_forward.1} parent=1 // pred_check
      _
    $region51: #{language_model_forward.1} parent=1 // pred_check_branch
      %128 = sbr.rel (0) target = $region53
    $region52: #{language_model_forward.1} parent=1 // pred_region
      %s130 = ssub.s32 16, 16
      %131 = vsyncadd [#allocation15], %s130
      %s133 = sshll.u32 [#allocation14], 4
      %s134 = int_to_ptr.vmem [resolvable:$true] %s133
      %136 = dma.hbm_to_vmem [thread:$0]  %s12, 16, %s134, [#allocation15]
    $region53: #{language_model_forward.1} parent=1 // pred_fallthru
      _
    // Predicated region
    $region54: #{language_model_forward.1} parent=1 // pred_check
      _
    $region55: #{language_model_forward.1} parent=1 // pred_check_branch
      %138 = sbr.rel (0) target = $region57
    $region56: #{language_model_forward.1} parent=1 // pred_region
      _
    $region57: #{language_model_forward.1} parent=1 // pred_fallthru
      _
    // Predicated region
    $region58: #{language_model_forward.1} parent=1 // pred_check
      _
    $region59: #{language_model_forward.1} parent=1 // pred_check_branch
      %140 = sbr.rel (0) target = $region61
    $region60: #{language_model_forward.1} parent=1 // pred_region
      _
    $region61: #{language_model_forward.1} parent=1 // pred_fallthru
      _
    // Predicated region
    $region62: #{language_model_forward.1} parent=1 // pred_check
      _
    $region63: #{language_model_forward.1} parent=1 // pred_check_branch
      %142 = sbr.rel (0) target = $region65
    $region64: #{language_model_forward.1} parent=1 // pred_region
      %s144 = ssub.s32 6144, 6144
      %145 = vsyncadd [#allocation15], %s144
      %s146 = sshll.u32 [#allocation16], 4
      %s147 = int_to_ptr.vmem [resolvable:$true] %s146
      %152 = dma.hbm_to_vmem [thread:$0]  %s15, 6144, %s147, [#allocation15], 384, 384, 24
    $region65: #{language_model_forward.1} parent=1 // pred_fallthru
      _
    // Predicated region
    $region66: #{language_model_forward.1} parent=1 // pred_check
      _
    $region67: #{language_model_forward.1} parent=1 // pred_check_branch
      %154 = sbr.rel (0) target = $region69
    $region68: #{language_model_forward.1} parent=1 // pred_region
      _
    $region69: #{language_model_forward.1} parent=1 // pred_fallthru
      _
    // Predicated region
    $region70: #{language_model_forward.1} parent=1 // pred_check
      _
    $region71: #{language_model_forward.1} parent=1 // pred_check_branch
      %156 = sbr.rel (0) target = $region73
    $region72: #{language_model_forward.1} parent=1 // pred_region
      _
    $region73: #{language_model_forward.1} parent=1 // pred_fallthru
      _
    // Predicated region
    $region74: #{language_model_forward.1} parent=1 // pred_check
      _
    $region75: #{language_model_forward.1} parent=1 // pred_check_branch
      %158 = sbr.rel (0) target = $region77
    $region76: #{language_model_forward.1} parent=1 // pred_region
      _
    $region77: #{language_model_forward.1} parent=1 // pred_fallthru
      _
    // Predicated region
    $region78: #{language_model_forward.1} parent=1 // pred_check
      _
    $region79: #{language_model_forward.1} parent=1 // pred_check_branch
      %160 = sbr.rel (0) target = $region81
    $region80: #{language_model_forward.1} parent=1 // pred_region
      _
    $region81: #{language_model_forward.1} parent=1 // pred_fallthru
      _
    // Predicated region
    $region82: #{language_model_forward.1} parent=1 // pred_check
      _
    $region83: #{language_model_forward.1} parent=1 // pred_check_branch
      %162 = sbr.rel (0) target = $region85
    $region84: #{language_model_forward.1} parent=1 // pred_region
      %s164 = ssub.s32 8192, 8192
      %165 = vsyncadd [#allocation18], %s164
      %s166 = sshll.u32 [#allocation17], 4
      %s167 = int_to_ptr.vmem [resolvable:$true] %s166
      %172 = dma.hbm_to_vmem [thread:$0]  %s20, 8192, %s167, [#allocation18], 512, 512, 32
    $region85: #{language_model_forward.1} parent=1 // pred_fallthru
      _
    // Predicated region
    $region86: #{language_model_forward.1} parent=1 // pred_check
      _
    $region87: #{language_model_forward.1} parent=1 // pred_check_branch
      %174 = sbr.rel (0) target = $region89
    $region88: #{language_model_forward.1} parent=1 // pred_region
      _
    $region89: #{language_model_forward.1} parent=1 // pred_fallthru
      _
    // Predicated region
    $region90: #{language_model_forward.1} parent=1 // pred_check
      _
    $region91: #{language_model_forward.1} parent=1 // pred_check_branch
      %176 = sbr.rel (0) target = $region93
    $region92: #{language_model_forward.1} parent=1 // pred_region
      %s178 = ssub.s32 8192, 8192
      %179 = vsyncadd [#allocation18], %s178
      %s180 = sshll.u32 [#allocation19], 4
      %s181 = int_to_ptr.vmem [resolvable:$true] %s180
      %186 = dma.hbm_to_vmem [thread:$0]  %s22, 8192, %s181, [#allocation18], 128, 128, 8
    $region93: #{language_model_forward.1} parent=1 // pred_fallthru
      _
    // Predicated region
    $region94: #{language_model_forward.1} parent=1 // pred_check
      _
    $region95: #{language_model_forward.1} parent=1 // pred_check_branch
      %188 = sbr.rel (0) target = $region97
    $region96: #{language_model_forward.1} parent=1 // pred_region
      _
    $region97: #{language_model_forward.1} parent=1 // pred_fallthru
      _
    // Predicated region
    $region98: #{language_model_forward.1} parent=1 // pred_check
      _
    $region99: #{language_model_forward.1} parent=1 // pred_check_branch
      %190 = sbr.rel (0) target = $region101
    $region100: #{language_model_forward.1} parent=1 // pred_region
      _
    $region101: #{language_model_forward.1} parent=1 // pred_fallthru
      _
    // Predicated region
    $region102: #{language_model_forward.1} parent=1 // pred_check
      _
    $region103: #{language_model_forward.1} parent=1 // pred_check_branch
      %192 = sbr.rel (0) target = $region105
    $region104: #{language_model_forward.1} parent=1 // pred_region
      _
    $region105: #{language_model_forward.1} parent=1 // pred_fallthru
      _
    // Predicated region
    $region106: #{language_model_forward.1} parent=1 // pred_check
      _
    $region107: #{language_model_forward.1} parent=1 // pred_check_branch
      %194 = sbr.rel (0) target = $region109
    $region108: #{language_model_forward.1} parent=1 // pred_region
      %s196 = ssub.s32 2048, 2048
      %197 = vsyncadd [#allocation21], %s196
      %s198 = sshll.u32 [#allocation20], 4
      %s199 = int_to_ptr.vmem [resolvable:$true] %s198
      %204 = dma.hbm_to_vmem [thread:$0]  %s26, 2048, %s199, [#allocation21], 128, 128, 8
    $region109: #{language_model_forward.1} parent=1 // pred_fallthru
      _
    // Predicated region
    $region110: #{language_model_forward.1} parent=1 // pred_check
      _
    $region111: #{language_model_forward.1} parent=1 // pred_check_branch
      %206 = sbr.rel (0) target = $region113
    $region112: #{language_model_forward.1} parent=1 // pred_region
      _
    $region113: #{language_model_forward.1} parent=1 // pred_fallthru
      _
    // Predicated region
    $region114: #{language_model_forward.1} parent=1 // pred_check
      _
    $region115: #{language_model_forward.1} parent=1 // pred_check_branch
      %208 = sbr.rel (0) target = $region117
    $region116: #{language_model_forward.1} parent=1 // pred_region
      %209 = dma.done [#allocation3], 16
    $region117: #{language_model_forward.1} parent=1 // pred_fallthru
      _
    // Predicated region
    $region118: #{language_model_forward.1} parent=1 // pred_check
      _
    $region119: #{language_model_forward.1} parent=1 // pred_check_branch
      %211 = sbr.rel (0) target = $region121
    $region120: #{language_model_forward.1} parent=1 // pred_region
      %212 = dma.done [#allocation6], 16
    $region121: #{language_model_forward.1} parent=1 // pred_fallthru
      _
    // Predicated region
    $region122: #{language_model_forward.1} parent=1 // pred_check
      _
    $region123: #{language_model_forward.1} parent=1 // pred_check_branch
      %214 = sbr.rel (0) target = $region125
    $region124: #{language_model_forward.1} parent=1 // pred_region
      %215 = dma.done [#allocation6], 6144
    $region125: #{language_model_forward.1} parent=1 // pred_fallthru
      _
    // Predicated region
    $region126: #{language_model_forward.1} parent=1 // pred_check
      _
    $region127: #{language_model_forward.1} parent=1 // pred_check_branch
      %217 = sbr.rel (0) target = $region129
    $region128: #{language_model_forward.1} parent=1 // pred_region
      %218 = dma.done [#allocation9], 16
    $region129: #{language_model_forward.1} parent=1 // pred_fallthru
      _
    // Predicated region
    $region130: #{language_model_forward.1} parent=1 // pred_check
      _
    $region131: #{language_model_forward.1} parent=1 // pred_check_branch
      %220 = sbr.rel (0) target = $region133
    $region132: #{language_model_forward.1} parent=1 // pred_region
      %221 = dma.done [#allocation9], 16
    $region133: #{language_model_forward.1} parent=1 // pred_fallthru
      _
    // Predicated region
    $region134: #{language_model_forward.1} parent=1 // pred_check
      _
    $region135: #{language_model_forward.1} parent=1 // pred_check_branch
      %223 = sbr.rel (0) target = $region137
    $region136: #{language_model_forward.1} parent=1 // pred_region
      %224 = dma.done [#allocation12], 8192
    $region137: #{language_model_forward.1} parent=1 // pred_fallthru
      _
    // Predicated region
    $region138: #{language_model_forward.1} parent=1 // pred_check
      _
    $region139: #{language_model_forward.1} parent=1 // pred_check_branch
      %226 = sbr.rel (0) target = $region141
    $region140: #{language_model_forward.1} parent=1 // pred_region
      %227 = dma.done [#allocation12], 8192
    $region141: #{language_model_forward.1} parent=1 // pred_fallthru
      _
    // Predicated region
    $region142: #{language_model_forward.1} parent=1 // pred_check
      _
    $region143: #{language_model_forward.1} parent=1 // pred_check_branch
      %229 = sbr.rel (0) target = $region145
    $region144: #{language_model_forward.1} parent=1 // pred_region
      %230 = dma.done [#allocation15], 16
    $region145: #{language_model_forward.1} parent=1 // pred_fallthru
      _
    // Predicated region
    $region146: #{language_model_forward.1} parent=1 // pred_check
      _
    $region147: #{language_model_forward.1} parent=1 // pred_check_branch
      %232 = sbr.rel (0) target = $region149
    $region148: #{language_model_forward.1} parent=1 // pred_region
      %233 = dma.done [#allocation15], 6144
    $region149: #{language_model_forward.1} parent=1 // pred_fallthru
      _
    // Predicated region
    $region150: #{language_model_forward.1} parent=1 // pred_check
      _
    $region151: #{language_model_forward.1} parent=1 // pred_check_branch
      %235 = sbr.rel (0) target = $region153
    $region152: #{language_model_forward.1} parent=1 // pred_region
      %236 = dma.done [#allocation18], 8192
    $region153: #{language_model_forward.1} parent=1 // pred_fallthru
      _
    // Predicated region
    $region154: #{language_model_forward.1} parent=1 // pred_check
      _
    $region155: #{language_model_forward.1} parent=1 // pred_check_branch
      %238 = sbr.rel (0) target = $region157
    $region156: #{language_model_forward.1} parent=1 // pred_region
      %239 = dma.done [#allocation18], 8192
    $region157: #{language_model_forward.1} parent=1 // pred_fallthru
      _
    // Predicated region
    $region158: #{language_model_forward.1} parent=1 // pred_check
      _
    $region159: #{language_model_forward.1} parent=1 // pred_check_branch
      %241 = sbr.rel (0) target = $region161
    $region160: #{language_model_forward.1} parent=1 // pred_region
      %242 = dma.done [#allocation21], 2048
    $region161: #{language_model_forward.1} parent=1 // pred_fallthru
      _
    %v243 = vld [vmem:[%s0] sm:$0xff]
    %v244 = vld [vmem:[%s0 + $0x8] sm:$0xff]
    %v245 = vld [vmem:[%s1] sm:$0xff]
    %v246 = vld [vmem:[%s1 + $0x8] sm:$0xff]
    %v247 = vld [vmem:[#allocation2] sm:$0x1]
    %v248 = vld [vmem:[#allocation5] sm:$0x1]
    %249 = vadd.xlane.f32.xlu0 %v243
    %v250 = vpop.xlane.xlu0 %249
    %251 = vadd.xlane.f32.xlu0 %v244
    %v252 = vpop.xlane.xlu0 %251
    %v253 = vrcp.pop 128.0
    %v254 = vmul.f32 %v250, %v253
    %v255 = vmul.f32 %v252, %v253
    %v256 = vsub.f32 %v243, %v254
    %v257 = vsub.f32 %v244, %v255
    %v258 = vmul.f32 %v256, %v256
    %v259 = vmul.f32 %v257, %v257
    %260 = vadd.xlane.f32.xlu0 %v258
    %v261 = vpop.xlane.xlu0 %260
    %262 = vadd.xlane.f32.xlu0 %v259
    %v263 = vpop.xlane.xlu0 %262
    %v264 = vmul.f32 %v261, %v253
    %v265 = vmul.f32 %v263, %v253
    %v266 = vadd.f32 %v264, 1e-05
    %v267 = vadd.f32 %v265, 1e-05
    %v268 = vrsqrt.pop %v266
    %v269 = vrsqrt.pop %v267
    %v270 = vmul.f32 %v256, %v268
    %v271 = vmul.f32 %v257, %v269
    %v273 = vlaneseq
    %v274 = vshrl.u32 %v273, 7
    %v275 = vsub.s32 0, %v274
    %v276 = vrot.slane %v247, %v275
    %v278 = vmul.f32 %v270, %v276
    %v279 = vmul.f32 %v271, %v276
    %v281 = vlaneseq
    %v282 = vshrl.u32 %v281, 7
    %v283 = vsub.s32 0, %v282
    %v284 = vrot.slane %v248, %v283
    %v286 = vadd.f32 %v278, %v284
    %v287 = vadd.f32 %v279, %v284
    %v288 = vld [vmem:[#allocation7] sm:$0xff]
    %v289 = vld [vmem:[#allocation7 + $0x8] sm:$0xff]
    %v290 = vld [vmem:[#allocation7 + $0x10] sm:$0xff]
    %v291 = vld [vmem:[#allocation7 + $0x18] sm:$0xff]
    %v292 = vld [vmem:[#allocation7 + $0x20] sm:$0xff]
    %v293 = vld [vmem:[#allocation7 + $0x28] sm:$0xff]
    %v294 = vld [vmem:[#allocation7 + $0x30] sm:$0xff]
    %v295 = vld [vmem:[#allocation7 + $0x38] sm:$0xff]
    %v296 = vld [vmem:[#allocation7 + $0x40] sm:$0xff]
    %v297 = vld [vmem:[#allocation7 + $0x48] sm:$0xff]
    %v298 = vld [vmem:[#allocation7 + $0x50] sm:$0xff]
    %v299 = vld [vmem:[#allocation7 + $0x58] sm:$0xff]
    %v300 = vld [vmem:[#allocation7 + $0x60] sm:$0xff]
    %v301 = vld [vmem:[#allocation7 + $0x68] sm:$0xff]
    %v302 = vld [vmem:[#allocation7 + $0x70] sm:$0xff]
    %v303 = vld [vmem:[#allocation7 + $0x78] sm:$0xff]
    %v304 = vld [vmem:[#allocation7 + $0x80] sm:$0xff]
    %v305 = vld [vmem:[#allocation7 + $0x88] sm:$0xff]
    %v306 = vld [vmem:[#allocation7 + $0x90] sm:$0xff]
    %v307 = vld [vmem:[#allocation7 + $0x98] sm:$0xff]
    %v308 = vld [vmem:[#allocation7 + $0xa0] sm:$0xff]
    %v309 = vld [vmem:[#allocation7 + $0xa8] sm:$0xff]
    %v310 = vld [vmem:[#allocation7 + $0xb0] sm:$0xff]
    %v311 = vld [vmem:[#allocation7 + $0xb8] sm:$0xff]
    %v312 = vld [vmem:[#allocation7 + $0xc0] sm:$0xff]
    %v313 = vld [vmem:[#allocation7 + $0xc8] sm:$0xff]
    %v314 = vld [vmem:[#allocation7 + $0xd0] sm:$0xff]
    %v315 = vld [vmem:[#allocation7 + $0xd8] sm:$0xff]
    %v316 = vld [vmem:[#allocation7 + $0xe0] sm:$0xff]
    %v317 = vld [vmem:[#allocation7 + $0xe8] sm:$0xff]
    %v318 = vld [vmem:[#allocation7 + $0xf0] sm:$0xff]
    %v319 = vld [vmem:[#allocation7 + $0xf8] sm:$0xff]
    %v320 = vld [vmem:[#allocation7 + $0x100] sm:$0xff]
    %v321 = vld [vmem:[#allocation7 + $0x108] sm:$0xff]
    %v322 = vld [vmem:[#allocation7 + $0x110] sm:$0xff]
    %v323 = vld [vmem:[#allocation7 + $0x118] sm:$0xff]
    %v324 = vld [vmem:[#allocation7 + $0x120] sm:$0xff]
    %v325 = vld [vmem:[#allocation7 + $0x128] sm:$0xff]
    %v326 = vld [vmem:[#allocation7 + $0x130] sm:$0xff]
    %v327 = vld [vmem:[#allocation7 + $0x138] sm:$0xff]
    %v328 = vld [vmem:[#allocation7 + $0x140] sm:$0xff]
    %v329 = vld [vmem:[#allocation7 + $0x148] sm:$0xff]
    %v330 = vld [vmem:[#allocation7 + $0x150] sm:$0xff]
    %v331 = vld [vmem:[#allocation7 + $0x158] sm:$0xff]
    %v332 = vld [vmem:[#allocation7 + $0x160] sm:$0xff]
    %v333 = vld [vmem:[#allocation7 + $0x168] sm:$0xff]
    %v334 = vld [vmem:[#allocation7 + $0x170] sm:$0xff]
    %v335 = vld [vmem:[#allocation7 + $0x178] sm:$0xff]
    %336 = vmatprep.subr.mxu0 %v334
    %337 = vmatpush1.msra.mxu0 %v333
    %338 = vmatprep.subr.mxu0 %v331
    %339 = vmatpush1.msra.mxu0 %v330
    %340 = vmatprep.subr.mxu0 %v328
    %341 = vmatpush1.msra.mxu0 %v327
    %342 = vmatprep.subr.mxu0 %v325
    %343 = vmatpush1.msra.mxu0 %v324
    %344 = vmatprep.subr.mxu0 %v322
    %345 = vmatpush1.msra.mxu0 %v321
    %346 = vmatprep.subr.mxu0 %v319
    %347 = vmatpush1.msra.mxu0 %v318
    %348 = vmatprep.subr.mxu0 %v316
    %349 = vmatpush1.msra.mxu0 %v315
    %350 = vmatprep.subr.mxu0 %v313
    %351 = vmatpush1.msra.mxu0 %v312
    %352 = vmatprep.subr.mxu0 %v310
    %353 = vmatpush1.msra.mxu0 %v309
    %354 = vmatprep.subr.mxu0 %v307
    %355 = vmatpush1.msra.mxu0 %v306
    %356 = vmatprep.subr.mxu0 %v304
    %357 = vmatpush1.msra.mxu0 %v303
    %358 = vmatprep.subr.mxu0 %v301
    %359 = vmatpush1.msra.mxu0 %v300
    %360 = vmatprep.subr.mxu0 %v298
    %361 = vmatpush1.msra.mxu0 %v297
    %362 = vmatprep.subr.mxu0 %v295
    %363 = vmatpush1.msra.mxu0 %v294
    %364 = vmatprep.subr.mxu0 %v292
    %365 = vmatpush1.msra.mxu0 %v291
    %366 = vmatprep.subr.mxu0 %v289
    %367 = vmatpush1.msra.mxu0 %v288
    %368 = vmatprep.subr.mxu0 0.0
    %369 = vmatpush2.msra.mxu0 0.0
    %370 = vmatprep.subr.mxu0 0.0
    %371 = vmatpush2.msra.mxu0 0.0
    %372 = vmatprep.subr.mxu0 0.0
    %373 = vmatpush2.msra.mxu0 0.0
    %374 = vmatprep.subr.mxu0 0.0
    %375 = vmatpush2.msra.mxu0 0.0
    %376 = vmatprep.subr.mxu0 0.0
    %377 = vmatpush2.msra.mxu0 0.0
    %378 = vmatprep.subr.mxu0 0.0
    %379 = vmatpush2.msra.mxu0 0.0
    %380 = vmatprep.subr.mxu0 0.0
    %381 = vmatpush2.msra.mxu0 0.0
    %382 = vmatprep.subr.mxu0 0.0
    %383 = vmatpush2.msra.mxu0 0.0
    %384 = vmatprep.subr.mxu0 0.0
    %385 = vmatpush2.msra.mxu0 0.0
    %386 = vmatprep.subr.mxu0 0.0
    %387 = vmatpush2.msra.mxu0 0.0
    %388 = vmatprep.subr.mxu0 0.0
    %389 = vmatpush2.msra.mxu0 0.0
    %390 = vmatprep.subr.mxu0 0.0
    %391 = vmatpush2.msra.mxu0 0.0
    %392 = vmatprep.subr.mxu0 0.0
    %393 = vmatpush2.msra.mxu0 0.0
    %394 = vmatprep.subr.mxu0 0.0
    %395 = vmatpush2.msra.mxu0 0.0
    %396 = vmatprep.subr.mxu0 0.0
    %397 = vmatpush2.msra.mxu0 0.0
    %398 = vmatprep.subr.mxu0 0.0
    %399 = vmatpush2.msra.mxu0 0.0
    %400 = vmatprep.mubr.f32.mxu0 0.0
    %401 = vmatmul.mubr.f32.gmra.mxu0 %v286
    %v402 = vpop.f32.mrf.mxu0
    %v403 = vadd.f32 0.0, %v402
    %v404 = vpop.f32.mrf.mxu0
    %v405 = vadd.f32 0.0, %v404
    %406 = vmatprep.mubr.f32.mxu0 0.0
    %407 = vmatmul.mubr.f32.gmra.mxu0 %v287
    %v408 = vpop.f32.mrf.mxu0
    %v409 = vadd.f32 0.0, %v408
    %v410 = vpop.f32.mrf.mxu0
    %v411 = vadd.f32 0.0, %v410
    %412 = vdwg.mxu0
    %413 = vmatprep.subr.mxu0 0.0
    %414 = vmatpush1.msra.mxu0 %v335
    %415 = vmatprep.subr.mxu0 0.0
    %416 = vmatpush1.msra.mxu0 %v332
    %417 = vmatprep.subr.mxu0 0.0
    %418 = vmatpush1.msra.mxu0 %v329
    %419 = vmatprep.subr.mxu0 0.0
    %420 = vmatpush1.msra.mxu0 %v326
    %421 = vmatprep.subr.mxu0 0.0
    %422 = vmatpush1.msra.mxu0 %v323
    %423 = vmatprep.subr.mxu0 0.0
    %424 = vmatpush1.msra.mxu0 %v320
    %425 = vmatprep.subr.mxu0 0.0
    %426 = vmatpush1.msra.mxu0 %v317
    %427 = vmatprep.subr.mxu0 0.0
    %428 = vmatpush1.msra.mxu0 %v314
    %429 = vmatprep.subr.mxu0 0.0
    %430 = vmatpush1.msra.mxu0 %v311
    %431 = vmatprep.subr.mxu0 0.0
    %432 = vmatpush1.msra.mxu0 %v308
    %433 = vmatprep.subr.mxu0 0.0
    %434 = vmatpush1.msra.mxu0 %v305
    %435 = vmatprep.subr.mxu0 0.0
    %436 = vmatpush1.msra.mxu0 %v302
    %437 = vmatprep.subr.mxu0 0.0
    %438 = vmatpush1.msra.mxu0 %v299
    %439 = vmatprep.subr.mxu0 0.0
    %440 = vmatpush1.msra.mxu0 %v296
    %441 = vmatprep.subr.mxu0 0.0
    %442 = vmatpush1.msra.mxu0 %v293
    %443 = vmatprep.subr.mxu0 0.0
    %444 = vmatpush1.msra.mxu0 %v290
    %445 = vmatprep.subr.mxu0 0.0
    %446 = vmatpush2.msra.mxu0 0.0
    %447 = vmatprep.subr.mxu0 0.0
    %448 = vmatpush2.msra.mxu0 0.0
    %449 = vmatprep.subr.mxu0 0.0
    %450 = vmatpush2.msra.mxu0 0.0
    %451 = vmatprep.subr.mxu0 0.0
    %452 = vmatpush2.msra.mxu0 0.0
    %453 = vmatprep.subr.mxu0 0.0
    %454 = vmatpush2.msra.mxu0 0.0
    %455 = vmatprep.subr.mxu0 0.0
    %456 = vmatpush2.msra.mxu0 0.0
    %457 = vmatprep.subr.mxu0 0.0
    %458 = vmatpush2.msra.mxu0 0.0
    %459 = vmatprep.subr.mxu0 0.0
    %460 = vmatpush2.msra.mxu0 0.0
    %461 = vmatprep.subr.mxu0 0.0
    %462 = vmatpush2.msra.mxu0 0.0
    %463 = vmatprep.subr.mxu0 0.0
    %464 = vmatpush2.msra.mxu0 0.0
    %465 = vmatprep.subr.mxu0 0.0
    %466 = vmatpush2.msra.mxu0 0.0
    %467 = vmatprep.subr.mxu0 0.0
    %468 = vmatpush2.msra.mxu0 0.0
    %469 = vmatprep.subr.mxu0 0.0
    %470 = vmatpush2.msra.mxu0 0.0
    %471 = vmatprep.subr.mxu0 0.0
    %472 = vmatpush2.msra.mxu0 0.0
    %473 = vmatprep.subr.mxu0 0.0
    %474 = vmatpush2.msra.mxu0 0.0
    %475 = vmatprep.subr.mxu0 0.0
    %476 = vmatpush2.msra.mxu0 0.0
    %477 = vmatprep.mubr.f32.mxu0 0.0
    %478 = vmatmul.mubr.f32.gmra.mxu0 %v286
    %v479 = vpop.f32.mrf.mxu0
    %v480 = vadd.f32 0.0, %v479
    %v481 = vpop.f32.mrf.mxu0
    %482 = vmatprep.mubr.f32.mxu0 0.0
    %483 = vmatmul.mubr.f32.gmra.mxu0 %v287
    %v484 = vpop.f32.mrf.mxu0
    %v485 = vadd.f32 0.0, %v484
    %v486 = vpop.f32.mrf.mxu0
    %487 = vdwg.mxu0
    %vm488 = vcmask 523264
    %v490 = vsel %vm488, %v403, 0
    %v493 = vsel %vm488, %v409, 0
    %v496 = vsel %vm488, %v405, 0
    %v499 = vsel %vm488, %v411, 0
    %501 = vmatprep.subr.mxu0 0.0
    %502 = vmatpush1.xpose.msra.mxu0 0.0
    %503 = vmatprep.subr.mxu0 0.0
    %504 = vmatpush1.xpose.msra.mxu0 0.0
    %505 = vmatprep.subr.mxu0 0.0
    %506 = vmatpush1.xpose.msra.mxu0 0.0
    %507 = vmatprep.subr.mxu0 0.0
    %508 = vmatpush1.xpose.msra.mxu0 0.0
    %509 = vmatprep.subr.mxu0 0.0
    %510 = vmatpush1.xpose.msra.mxu0 0.0
    %511 = vmatprep.subr.mxu0 0.0
    %512 = vmatpush1.xpose.msra.mxu0 0.0
    %513 = vmatprep.subr.mxu0 0.0
    %514 = vmatpush1.xpose.msra.mxu0 0.0
    %515 = vmatprep.subr.mxu0 0.0
    %516 = vmatpush1.xpose.msra.mxu0 0.0
    %517 = vmatprep.subr.mxu0 0.0
    %518 = vmatpush1.xpose.msra.mxu0 0.0
    %519 = vmatprep.subr.mxu0 0.0
    %520 = vmatpush1.xpose.msra.mxu0 0.0
    %521 = vmatprep.subr.mxu0 0.0
    %522 = vmatpush1.xpose.msra.mxu0 0.0
    %523 = vmatprep.subr.mxu0 0.0
    %524 = vmatpush1.xpose.msra.mxu0 0.0
    %525 = vmatprep.subr.mxu0 0.0
    %526 = vmatpush1.xpose.msra.mxu0 0.0
    %527 = vmatprep.subr.mxu0 0.0
    %528 = vmatpush1.xpose.msra.mxu0 0.0
    %529 = vmatprep.subr.mxu0 0.0
    %530 = vmatpush1.xpose.msra.mxu0 %v499
    %531 = vmatprep.subr.mxu0 0.0
    %532 = vmatpush1.xpose.msra.mxu0 %v496
    %533 = vmatprep.subr.mxu0 0.0
    %534 = vmatpush2.xpose.msra.mxu0 0.0
    %535 = vmatprep.subr.mxu0 0.0
    %536 = vmatpush2.xpose.msra.mxu0 0.0
    %537 = vmatprep.subr.mxu0 0.0
    %538 = vmatpush2.xpose.msra.mxu0 0.0
    %539 = vmatprep.subr.mxu0 0.0
    %540 = vmatpush2.xpose.msra.mxu0 0.0
    %541 = vmatprep.subr.mxu0 0.0
    %542 = vmatpush2.xpose.msra.mxu0 0.0
    %543 = vmatprep.subr.mxu0 0.0
    %544 = vmatpush2.xpose.msra.mxu0 0.0
    %545 = vmatprep.subr.mxu0 0.0
    %546 = vmatpush2.xpose.msra.mxu0 0.0
    %547 = vmatprep.subr.mxu0 0.0
    %548 = vmatpush2.xpose.msra.mxu0 0.0
    %549 = vmatprep.subr.mxu0 0.0
    %550 = vmatpush2.xpose.msra.mxu0 0.0
    %551 = vmatprep.subr.mxu0 0.0
    %552 = vmatpush2.xpose.msra.mxu0 0.0
    %553 = vmatprep.subr.mxu0 0.0
    %554 = vmatpush2.xpose.msra.mxu0 0.0
    %555 = vmatprep.subr.mxu0 0.0
    %556 = vmatpush2.xpose.msra.mxu0 0.0
    %557 = vmatprep.subr.mxu0 0.0
    %558 = vmatpush2.xpose.msra.mxu0 0.0
    %559 = vmatprep.subr.mxu0 0.0
    %560 = vmatpush2.xpose.msra.mxu0 0.0
    %561 = vmatprep.subr.mxu0 0.0
    %562 = vmatpush2.xpose.msra.mxu0 0.0
    %563 = vmatprep.subr.mxu0 0.0
    %564 = vmatpush2.xpose.msra.mxu0 0.0
    %565 = vmatprep.mubr.f32.mxu0 0.0
    %566 = vmatmul.mubr.f32.gmra.mxu0 %v490
    %v567 = vpop.f32.mrf.mxu0
    %v568 = vadd.f32 0.0, %v567
    %v569 = vpop.f32.mrf.mxu0
    %570 = vmatprep.mubr.f32.mxu0 0.0
    %571 = vmatmul.mubr.f32.gmra.mxu0 %v493
    %v572 = vpop.f32.mrf.mxu0
    %v573 = vadd.f32 0.0, %v572
    %v574 = vpop.f32.mrf.mxu0
    %575 = vdwg.mxu0
    %v576 = vmul.f32 %v568, 0.088388346
    %v577 = vmul.f32 %v573, 0.088388346
    %v578 = vadd.f32 %v576, %v245
    %v579 = vadd.f32 %v577, %v246
    %vm580 = vcmask 130048
    %v581 = vsel %vm580, %v578, -inf
    %582 = vmax.xlane.f32.xlu0 %v581
    %v583 = vpop.xlane.xlu0 %582
    %v584 = vsel %vm580, %v579, -inf
    %585 = vmax.xlane.f32.xlu0 %v584
    %v586 = vpop.xlane.xlu0 %585
    %v587 = vsub.f32 %v578, %v583
    %v588 = vsub.f32 %v579, %v586
    %v589 = vmul.f32 %v587, 1.442695
    %v590 = vpow.pop %v589
    %v591 = vmul.f32 %v588, 1.442695
    %v592 = vpow.pop %v591
    %v593 = vsel %vm580, %v590, 0.0
    %594 = vadd.xlane.f32.xlu0 %v593
    %v595 = vpop.xlane.xlu0 %594
    %v596 = vsel %vm580, %v592, 0.0
    %597 = vadd.xlane.f32.xlu0 %v596
    %v598 = vpop.xlane.xlu0 %597
    %v599 = vrcp.pop %v595
    %v600 = vrcp.pop %v598
    %v601 = vmul.f32 %v590, %v599
    %v602 = vmul.f32 %v592, %v600
    %v604 = vsel %vm580, %v601, 0
    %v607 = vsel %vm580, %v602, 0
    %609 = vmatprep.subr.mxu0 0.0
    %610 = vmatpush1.msra.mxu0 0.0
    %611 = vmatprep.subr.mxu0 0.0
    %612 = vmatpush1.msra.mxu0 0.0
    %613 = vmatprep.subr.mxu0 0.0
    %614 = vmatpush1.msra.mxu0 0.0
    %615 = vmatprep.subr.mxu0 0.0
    %616 = vmatpush1.msra.mxu0 0.0
    %617 = vmatprep.subr.mxu0 0.0
    %618 = vmatpush1.msra.mxu0 0.0
    %619 = vmatprep.subr.mxu0 0.0
    %620 = vmatpush1.msra.mxu0 0.0
    %621 = vmatprep.subr.mxu0 0.0
    %622 = vmatpush1.msra.mxu0 0.0
    %623 = vmatprep.subr.mxu0 0.0
    %624 = vmatpush1.msra.mxu0 0.0
    %625 = vmatprep.subr.mxu0 0.0
    %626 = vmatpush1.msra.mxu0 0.0
    %627 = vmatprep.subr.mxu0 0.0
    %628 = vmatpush1.msra.mxu0 0.0
    %629 = vmatprep.subr.mxu0 0.0
    %630 = vmatpush1.msra.mxu0 0.0
    %631 = vmatprep.subr.mxu0 0.0
    %632 = vmatpush1.msra.mxu0 0.0
    %633 = vmatprep.subr.mxu0 0.0
    %634 = vmatpush1.msra.mxu0 0.0
    %635 = vmatprep.subr.mxu0 0.0
    %636 = vmatpush1.msra.mxu0 0.0
    %637 = vmatprep.subr.mxu0 0.0
    %638 = vmatpush1.msra.mxu0 %v485
    %639 = vmatprep.subr.mxu0 0.0
    %640 = vmatpush1.msra.mxu0 %v480
    %641 = vmatprep.subr.mxu0 0.0
    %642 = vmatpush2.msra.mxu0 0.0
    %643 = vmatprep.subr.mxu0 0.0
    %644 = vmatpush2.msra.mxu0 0.0
    %645 = vmatprep.subr.mxu0 0.0
    %646 = vmatpush2.msra.mxu0 0.0
    %647 = vmatprep.subr.mxu0 0.0
    %648 = vmatpush2.msra.mxu0 0.0
    %649 = vmatprep.subr.mxu0 0.0
    %650 = vmatpush2.msra.mxu0 0.0
    %651 = vmatprep.subr.mxu0 0.0
    %652 = vmatpush2.msra.mxu0 0.0
    %653 = vmatprep.subr.mxu0 0.0
    %654 = vmatpush2.msra.mxu0 0.0
    %655 = vmatprep.subr.mxu0 0.0
    %656 = vmatpush2.msra.mxu0 0.0
    %657 = vmatprep.subr.mxu0 0.0
    %658 = vmatpush2.msra.mxu0 0.0
    %659 = vmatprep.subr.mxu0 0.0
    %660 = vmatpush2.msra.mxu0 0.0
    %661 = vmatprep.subr.mxu0 0.0
    %662 = vmatpush2.msra.mxu0 0.0
    %663 = vmatprep.subr.mxu0 0.0
    %664 = vmatpush2.msra.mxu0 0.0
    %665 = vmatprep.subr.mxu0 0.0
    %666 = vmatpush2.msra.mxu0 0.0
    %667 = vmatprep.subr.mxu0 0.0
    %668 = vmatpush2.msra.mxu0 0.0
    %669 = vmatprep.subr.mxu0 0.0
    %670 = vmatpush2.msra.mxu0 0.0
    %671 = vmatprep.subr.mxu0 0.0
    %672 = vmatpush2.msra.mxu0 0.0
    %673 = vmatprep.mubr.f32.mxu0 0.0
    %674 = vmatmul.mubr.f32.gmra.mxu0 %v604
    %v675 = vpop.f32.mrf.mxu0
    %v676 = vadd.f32 0.0, %v675
    %v677 = vpop.f32.mrf.mxu0
    %678 = vmatprep.mubr.f32.mxu0 0.0
    %679 = vmatmul.mubr.f32.gmra.mxu0 %v607
    %v680 = vpop.f32.mrf.mxu0
    %v681 = vadd.f32 0.0, %v680
    %v682 = vpop.f32.mrf.mxu0
    %683 = vdwg.mxu0
    %v684 = vld [vmem:[%s5] sm:$0xff]
    %v685 = vld [vmem:[%s5 + $0x8] sm:$0xff]
    %v686 = vld [vmem:[%s5 + $0x10] sm:$0xff]
    %v687 = vld [vmem:[%s5 + $0x18] sm:$0xff]
    %v688 = vld [vmem:[%s5 + $0x20] sm:$0xff]
    %v689 = vld [vmem:[%s5 + $0x28] sm:$0xff]
    %v690 = vld [vmem:[%s5 + $0x30] sm:$0xff]
    %v691 = vld [vmem:[%s5 + $0x38] sm:$0xff]
    %692 = vrot.lane.b32.xlu0 %v403, 64
    %v693 = vpop.permute.xlu0 %692
    %694 = vrot.lane.b32.xlu0 %v409, 64
    %v695 = vpop.permute.xlu0 %694
    %696 = vrot.lane.b32.xlu0 %v405, 64
    %v697 = vpop.permute.xlu0 %696
    %698 = vrot.lane.b32.xlu0 %v411, 64
    %v699 = vpop.permute.xlu0 %698
    %v700 = vsel %vm488, %v693, 0
    %v702 = vsel %vm488, %v695, 0
    %v704 = vsel %vm488, %v697, 0
    %v706 = vsel %vm488, %v699, 0
    %708 = vmatprep.subr.mxu0 0.0
    %709 = vmatpush1.xpose.msra.mxu0 0.0
    %710 = vmatprep.subr.mxu0 0.0
    %711 = vmatpush1.xpose.msra.mxu0 0.0
    %712 = vmatprep.subr.mxu0 0.0
    %713 = vmatpush1.xpose.msra.mxu0 0.0
    %714 = vmatprep.subr.mxu0 0.0
    %715 = vmatpush1.xpose.msra.mxu0 0.0
    %716 = vmatprep.subr.mxu0 0.0
    %717 = vmatpush1.xpose.msra.mxu0 0.0
    %718 = vmatprep.subr.mxu0 0.0
    %719 = vmatpush1.xpose.msra.mxu0 0.0
    %720 = vmatprep.subr.mxu0 0.0
    %721 = vmatpush1.xpose.msra.mxu0 0.0
    %722 = vmatprep.subr.mxu0 0.0
    %723 = vmatpush1.xpose.msra.mxu0 0.0
    %724 = vmatprep.subr.mxu0 0.0
    %725 = vmatpush1.xpose.msra.mxu0 0.0
    %726 = vmatprep.subr.mxu0 0.0
    %727 = vmatpush1.xpose.msra.mxu0 0.0
    %728 = vmatprep.subr.mxu0 0.0
    %729 = vmatpush1.xpose.msra.mxu0 0.0
    %730 = vmatprep.subr.mxu0 0.0
    %731 = vmatpush1.xpose.msra.mxu0 0.0
    %732 = vmatprep.subr.mxu0 0.0
    %733 = vmatpush1.xpose.msra.mxu0 0.0
    %734 = vmatprep.subr.mxu0 0.0
    %735 = vmatpush1.xpose.msra.mxu0 0.0
    %736 = vmatprep.subr.mxu0 0.0
    %737 = vmatpush1.xpose.msra.mxu0 %v706
    %738 = vmatprep.subr.mxu0 0.0
    %739 = vmatpush1.xpose.msra.mxu0 %v704
    %740 = vmatprep.subr.mxu0 0.0
    %741 = vmatpush2.xpose.msra.mxu0 0.0
    %742 = vmatprep.subr.mxu0 0.0
    %743 = vmatpush2.xpose.msra.mxu0 0.0
    %744 = vmatprep.subr.mxu0 0.0
    %745 = vmatpush2.xpose.msra.mxu0 0.0
    %746 = vmatprep.subr.mxu0 0.0
    %747 = vmatpush2.xpose.msra.mxu0 0.0
    %748 = vmatprep.subr.mxu0 0.0
    %749 = vmatpush2.xpose.msra.mxu0 0.0
    %750 = vmatprep.subr.mxu0 0.0
    %751 = vmatpush2.xpose.msra.mxu0 0.0
    %752 = vmatprep.subr.mxu0 0.0
    %753 = vmatpush2.xpose.msra.mxu0 0.0
    %754 = vmatprep.subr.mxu0 0.0
    %755 = vmatpush2.xpose.msra.mxu0 0.0
    %756 = vmatprep.subr.mxu0 0.0
    %757 = vmatpush2.xpose.msra.mxu0 0.0
    %758 = vmatprep.subr.mxu0 0.0
    %759 = vmatpush2.xpose.msra.mxu0 0.0
    %760 = vmatprep.subr.mxu0 0.0
    %761 = vmatpush2.xpose.msra.mxu0 0.0
    %762 = vmatprep.subr.mxu0 0.0
    %763 = vmatpush2.xpose.msra.mxu0 0.0
    %764 = vmatprep.subr.mxu0 0.0
    %765 = vmatpush2.xpose.msra.mxu0 0.0
    %766 = vmatprep.subr.mxu0 0.0
    %767 = vmatpush2.xpose.msra.mxu0 0.0
    %768 = vmatprep.subr.mxu0 0.0
    %769 = vmatpush2.xpose.msra.mxu0 0.0
    %770 = vmatprep.subr.mxu0 0.0
    %771 = vmatpush2.xpose.msra.mxu0 0.0
    %772 = vmatprep.mubr.f32.mxu0 0.0
    %773 = vmatmul.mubr.f32.gmra.mxu0 %v700
    %v774 = vpop.f32.mrf.mxu0
    %v775 = vadd.f32 0.0, %v774
    %v776 = vpop.f32.mrf.mxu0
    %777 = vmatprep.mubr.f32.mxu0 0.0
    %778 = vmatmul.mubr.f32.gmra.mxu0 %v702
    %v779 = vpop.f32.mrf.mxu0
    %v780 = vadd.f32 0.0, %v779
    %v781 = vpop.f32.mrf.mxu0
    %782 = vdwg.mxu0
    %v783 = vmul.f32 %v775, 0.088388346
    %v784 = vmul.f32 %v780, 0.088388346
    %v785 = vadd.f32 %v783, %v245
    %v786 = vadd.f32 %v784, %v246
    %v787 = vsel %vm580, %v785, -inf
    %788 = vmax.xlane.f32.xlu0 %v787
    %v789 = vpop.xlane.xlu0 %788
    %v790 = vsel %vm580, %v786, -inf
    %791 = vmax.xlane.f32.xlu0 %v790
    %v792 = vpop.xlane.xlu0 %791
    %v793 = vsub.f32 %v785, %v789
    %v794 = vsub.f32 %v786, %v792
    %v795 = vmul.f32 %v793, 1.442695
    %v796 = vpow.pop %v795
    %v797 = vmul.f32 %v794, 1.442695
    %v798 = vpow.pop %v797
    %v799 = vsel %vm580, %v796, 0.0
    %800 = vadd.xlane.f32.xlu0 %v799
    %v801 = vpop.xlane.xlu0 %800
    %v802 = vsel %vm580, %v798, 0.0
    %803 = vadd.xlane.f32.xlu0 %v802
    %v804 = vpop.xlane.xlu0 %803
    %v805 = vrcp.pop %v801
    %v806 = vrcp.pop %v804
    %v807 = vmul.f32 %v796, %v805
    %v808 = vmul.f32 %v798, %v806
    %811 = vrot.lane.b32.xlu0 %v480, 64
    %v812 = vpop.permute.xlu0 %811
    %813 = vrot.lane.b32.xlu0 %v485, 64
    %v814 = vpop.permute.xlu0 %813
    %v818 = vsel %vm580, %v807, 0
    %v821 = vsel %vm580, %v808, 0
    %823 = vmatprep.subr.mxu0 0.0
    %824 = vmatpush1.msra.mxu0 0.0
    %825 = vmatprep.subr.mxu0 0.0
    %826 = vmatpush1.msra.mxu0 0.0
    %827 = vmatprep.subr.mxu0 0.0
    %828 = vmatpush1.msra.mxu0 0.0
    %829 = vmatprep.subr.mxu0 0.0
    %830 = vmatpush1.msra.mxu0 0.0
    %831 = vmatprep.subr.mxu0 0.0
    %832 = vmatpush1.msra.mxu0 0.0
    %833 = vmatprep.subr.mxu0 0.0
    %834 = vmatpush1.msra.mxu0 0.0
    %835 = vmatprep.subr.mxu0 0.0
    %836 = vmatpush1.msra.mxu0 0.0
    %837 = vmatprep.subr.mxu0 0.0
    %838 = vmatpush1.msra.mxu0 0.0
    %839 = vmatprep.subr.mxu0 0.0
    %840 = vmatpush1.msra.mxu0 0.0
    %841 = vmatprep.subr.mxu0 0.0
    %842 = vmatpush1.msra.mxu0 0.0
    %843 = vmatprep.subr.mxu0 0.0
    %844 = vmatpush1.msra.mxu0 0.0
    %845 = vmatprep.subr.mxu0 0.0
    %846 = vmatpush1.msra.mxu0 0.0
    %847 = vmatprep.subr.mxu0 0.0
    %848 = vmatpush1.msra.mxu0 0.0
    %849 = vmatprep.subr.mxu0 0.0
    %850 = vmatpush1.msra.mxu0 0.0
    %851 = vmatprep.subr.mxu0 0.0
    %852 = vmatpush1.msra.mxu0 %v814
    %853 = vmatprep.subr.mxu0 0.0
    %854 = vmatpush1.msra.mxu0 %v812
    %855 = vmatprep.subr.mxu0 0.0
    %856 = vmatpush2.msra.mxu0 0.0
    %857 = vmatprep.subr.mxu0 0.0
    %858 = vmatpush2.msra.mxu0 0.0
    %859 = vmatprep.subr.mxu0 0.0
    %860 = vmatpush2.msra.mxu0 0.0
    %861 = vmatprep.subr.mxu0 0.0
    %862 = vmatpush2.msra.mxu0 0.0
    %863 = vmatprep.subr.mxu0 0.0
    %864 = vmatpush2.msra.mxu0 0.0
    %865 = vmatprep.subr.mxu0 0.0
    %866 = vmatpush2.msra.mxu0 0.0
    %867 = vmatprep.subr.mxu0 0.0
    %868 = vmatpush2.msra.mxu0 0.0
    %869 = vmatprep.subr.mxu0 0.0
    %870 = vmatpush2.msra.mxu0 0.0
    %871 = vmatprep.subr.mxu0 0.0
    %872 = vmatpush2.msra.mxu0 0.0
    %873 = vmatprep.subr.mxu0 0.0
    %874 = vmatpush2.msra.mxu0 0.0
    %875 = vmatprep.subr.mxu0 0.0
    %876 = vmatpush2.msra.mxu0 0.0
    %877 = vmatprep.subr.mxu0 0.0
    %878 = vmatpush2.msra.mxu0 0.0
    %879 = vmatprep.subr.mxu0 0.0
    %880 = vmatpush2.msra.mxu0 0.0
    %881 = vmatprep.subr.mxu0 0.0
    %882 = vmatpush2.msra.mxu0 0.0
    %883 = vmatprep.subr.mxu0 0.0
    %884 = vmatpush2.msra.mxu0 0.0
    %885 = vmatprep.subr.mxu0 0.0
    %886 = vmatpush2.msra.mxu0 0.0
    %887 = vmatprep.mubr.f32.mxu0 0.0
    %888 = vmatmul.mubr.f32.gmra.mxu0 %v818
    %v889 = vpop.f32.mrf.mxu0
    %v890 = vadd.f32 0.0, %v889
    %v891 = vpop.f32.mrf.mxu0
    %892 = vmatprep.mubr.f32.mxu0 0.0
    %893 = vmatmul.mubr.f32.gmra.mxu0 %v821
    %v894 = vpop.f32.mrf.mxu0
    %v895 = vadd.f32 0.0, %v894
    %v896 = vpop.f32.mrf.mxu0
    %897 = vdwg.mxu0
    %v898 = vld [vmem:[%s5 + $0x40] sm:$0xff]
    %v899 = vld [vmem:[%s5 + $0x48] sm:$0xff]
    %v900 = vld [vmem:[%s5 + $0x50] sm:$0xff]
    %v901 = vld [vmem:[%s5 + $0x58] sm:$0xff]
    %v902 = vld [vmem:[%s5 + $0x60] sm:$0xff]
    %v903 = vld [vmem:[%s5 + $0x68] sm:$0xff]
    %v904 = vld [vmem:[%s5 + $0x70] sm:$0xff]
    %v905 = vld [vmem:[%s5 + $0x78] sm:$0xff]
    %v907 = vsel %vm488, %v890, 0
    %v910 = vsel %vm488, %v895, 0
    %912 = vmatprep.subr.mxu0 0.0
    %913 = vmatpush1.msra.mxu0 0.0
    %914 = vmatprep.subr.mxu0 0.0
    %915 = vmatpush1.msra.mxu0 0.0
    %916 = vmatprep.subr.mxu0 0.0
    %917 = vmatpush1.msra.mxu0 0.0
    %918 = vmatprep.subr.mxu0 0.0
    %919 = vmatpush1.msra.mxu0 0.0
    %920 = vmatprep.subr.mxu0 0.0
    %921 = vmatpush1.msra.mxu0 0.0
    %922 = vmatprep.subr.mxu0 0.0
    %923 = vmatpush1.msra.mxu0 0.0
    %924 = vmatprep.subr.mxu0 0.0
    %925 = vmatpush1.msra.mxu0 0.0
    %926 = vmatprep.subr.mxu0 0.0
    %927 = vmatpush1.msra.mxu0 0.0
    %928 = vmatprep.subr.mxu0 0.0
    %929 = vmatpush1.msra.mxu0 %v905
    %930 = vmatprep.subr.mxu0 0.0
    %931 = vmatpush1.msra.mxu0 %v904
    %932 = vmatprep.subr.mxu0 0.0
    %933 = vmatpush1.msra.mxu0 %v903
    %934 = vmatprep.subr.mxu0 0.0
    %935 = vmatpush1.msra.mxu0 %v902
    %936 = vmatprep.subr.mxu0 0.0
    %937 = vmatpush1.msra.mxu0 %v901
    %938 = vmatprep.subr.mxu0 0.0
    %939 = vmatpush1.msra.mxu0 %v900
    %940 = vmatprep.subr.mxu0 0.0
    %941 = vmatpush1.msra.mxu0 %v899
    %942 = vmatprep.subr.mxu0 0.0
    %943 = vmatpush1.msra.mxu0 %v898
    %944 = vmatprep.subr.mxu0 0.0
    %945 = vmatpush2.msra.mxu0 0.0
    %946 = vmatprep.subr.mxu0 0.0
    %947 = vmatpush2.msra.mxu0 0.0
    %948 = vmatprep.subr.mxu0 0.0
    %949 = vmatpush2.msra.mxu0 0.0
    %950 = vmatprep.subr.mxu0 0.0
    %951 = vmatpush2.msra.mxu0 0.0
    %952 = vmatprep.subr.mxu0 0.0
    %953 = vmatpush2.msra.mxu0 0.0
    %954 = vmatprep.subr.mxu0 0.0
    %955 = vmatpush2.msra.mxu0 0.0
    %956 = vmatprep.subr.mxu0 0.0
    %957 = vmatpush2.msra.mxu0 0.0
    %958 = vmatprep.subr.mxu0 0.0
    %959 = vmatpush2.msra.mxu0 0.0
    %960 = vmatprep.subr.mxu0 0.0
    %961 = vmatpush2.msra.mxu0 0.0
    %962 = vmatprep.subr.mxu0 0.0
    %963 = vmatpush2.msra.mxu0 0.0
    %964 = vmatprep.subr.mxu0 0.0
    %965 = vmatpush2.msra.mxu0 0.0
    %966 = vmatprep.subr.mxu0 0.0
    %967 = vmatpush2.msra.mxu0 0.0
    %968 = vmatprep.subr.mxu0 0.0
    %969 = vmatpush2.msra.mxu0 0.0
    %970 = vmatprep.subr.mxu0 0.0
    %971 = vmatpush2.msra.mxu0 0.0
    %972 = vmatprep.subr.mxu0 0.0
    %973 = vmatpush2.msra.mxu0 0.0
    %974 = vmatprep.subr.mxu0 0.0
    %975 = vmatpush2.msra.mxu0 0.0
    %976 = vmatprep.mubr.f32.mxu0 0.0
    %977 = vmatmul.mubr.f32.gmra.mxu0 %v907
    %v978 = vpop.f32.mrf.mxu0
    %v979 = vadd.f32 0.0, %v978
    %v980 = vpop.f32.mrf.mxu0
    %981 = vmatprep.mubr.f32.mxu0 0.0
    %982 = vmatmul.mubr.f32.gmra.mxu0 %v910
    %v983 = vpop.f32.mrf.mxu0
    %v984 = vadd.f32 0.0, %v983
    %v985 = vpop.f32.mrf.mxu0
    %986 = vdwg.mxu0
    %v988 = vsel %vm488, %v676, 0
    %v991 = vsel %vm488, %v681, 0
    %993 = vmatprep.subr.mxu0 0.0
    %994 = vmatpush1.msra.mxu0 0.0
    %995 = vmatprep.subr.mxu0 0.0
    %996 = vmatpush1.msra.mxu0 0.0
    %997 = vmatprep.subr.mxu0 0.0
    %998 = vmatpush1.msra.mxu0 0.0
    %999 = vmatprep.subr.mxu0 0.0
    %1000 = vmatpush1.msra.mxu0 0.0
    %1001 = vmatprep.subr.mxu0 0.0
    %1002 = vmatpush1.msra.mxu0 0.0
    %1003 = vmatprep.subr.mxu0 0.0
    %1004 = vmatpush1.msra.mxu0 0.0
    %1005 = vmatprep.subr.mxu0 0.0
    %1006 = vmatpush1.msra.mxu0 0.0
    %1007 = vmatprep.subr.mxu0 0.0
    %1008 = vmatpush1.msra.mxu0 0.0
    %1009 = vmatprep.subr.mxu0 0.0
    %1010 = vmatpush1.msra.mxu0 %v691
    %1011 = vmatprep.subr.mxu0 0.0
    %1012 = vmatpush1.msra.mxu0 %v690
    %1013 = vmatprep.subr.mxu0 0.0
    %1014 = vmatpush1.msra.mxu0 %v689
    %1015 = vmatprep.subr.mxu0 0.0
    %1016 = vmatpush1.msra.mxu0 %v688
    %1017 = vmatprep.subr.mxu0 0.0
    %1018 = vmatpush1.msra.mxu0 %v687
    %1019 = vmatprep.subr.mxu0 0.0
    %1020 = vmatpush1.msra.mxu0 %v686
    %1021 = vmatprep.subr.mxu0 0.0
    %1022 = vmatpush1.msra.mxu0 %v685
    %1023 = vmatprep.subr.mxu0 0.0
    %1024 = vmatpush1.msra.mxu0 %v684
    %1025 = vmatprep.subr.mxu0 0.0
    %1026 = vmatpush2.msra.mxu0 0.0
    %1027 = vmatprep.subr.mxu0 0.0
    %1028 = vmatpush2.msra.mxu0 0.0
    %1029 = vmatprep.subr.mxu0 0.0
    %1030 = vmatpush2.msra.mxu0 0.0
    %1031 = vmatprep.subr.mxu0 0.0
    %1032 = vmatpush2.msra.mxu0 0.0
    %1033 = vmatprep.subr.mxu0 0.0
    %1034 = vmatpush2.msra.mxu0 0.0
    %1035 = vmatprep.subr.mxu0 0.0
    %1036 = vmatpush2.msra.mxu0 0.0
    %1037 = vmatprep.subr.mxu0 0.0
    %1038 = vmatpush2.msra.mxu0 0.0
    %1039 = vmatprep.subr.mxu0 0.0
    %1040 = vmatpush2.msra.mxu0 0.0
    %1041 = vmatprep.subr.mxu0 0.0
    %1042 = vmatpush2.msra.mxu0 0.0
    %1043 = vmatprep.subr.mxu0 0.0
    %1044 = vmatpush2.msra.mxu0 0.0
    %1045 = vmatprep.subr.mxu0 0.0
    %1046 = vmatpush2.msra.mxu0 0.0
    %1047 = vmatprep.subr.mxu0 0.0
    %1048 = vmatpush2.msra.mxu0 0.0
    %1049 = vmatprep.subr.mxu0 0.0
    %1050 = vmatpush2.msra.mxu0 0.0
    %1051 = vmatprep.subr.mxu0 0.0
    %1052 = vmatpush2.msra.mxu0 0.0
    %1053 = vmatprep.subr.mxu0 0.0
    %1054 = vmatpush2.msra.mxu0 0.0
    %1055 = vmatprep.subr.mxu0 0.0
    %1056 = vmatpush2.msra.mxu0 0.0
    %1057 = vmatprep.mubr.f32.mxu0 0.0
    %1058 = vmatmul.mubr.f32.gmra.mxu0 %v988
    %v1059 = vpop.f32.mrf.mxu0
    %v1060 = vadd.f32 %v979, %v1059
    %v1061 = vpop.f32.mrf.mxu0
    %1062 = vmatprep.mubr.f32.mxu0 0.0
    %1063 = vmatmul.mubr.f32.gmra.mxu0 %v991
    %v1064 = vpop.f32.mrf.mxu0
    %v1065 = vadd.f32 %v984, %v1064
    %v1066 = vpop.f32.mrf.mxu0
    %1067 = vdwg.mxu0
    %v1068 = vadd.f32 %v243, %v1060
    %v1069 = vadd.f32 %v244, %v1065
    %v1070 = vld [vmem:[#allocation8] sm:$0x1]
    %v1072 = vlaneseq
    %v1073 = vshrl.u32 %v1072, 7
    %v1074 = vsub.s32 0, %v1073
    %v1075 = vrot.slane %v1070, %v1074
    %v1077 = vadd.f32 %v1068, %v1075
    %v1078 = vadd.f32 %v1069, %v1075
    %v1079 = vld [vmem:[%s7] sm:$0x1]
    %v1080 = vld [vmem:[#allocation10] sm:$0x1]
    %1081 = vadd.xlane.f32.xlu0 %v1077
    %v1082 = vpop.xlane.xlu0 %1081
    %1083 = vadd.xlane.f32.xlu0 %v1078
    %v1084 = vpop.xlane.xlu0 %1083
    %v1085 = vmul.f32 %v1082, %v253
    %v1086 = vmul.f32 %v1084, %v253
    %v1087 = vsub.f32 %v1077, %v1085
    %v1088 = vsub.f32 %v1078, %v1086
    %v1089 = vmul.f32 %v1087, %v1087
    %v1090 = vmul.f32 %v1088, %v1088
    %1091 = vadd.xlane.f32.xlu0 %v1089
    %v1092 = vpop.xlane.xlu0 %1091
    %1093 = vadd.xlane.f32.xlu0 %v1090
    %v1094 = vpop.xlane.xlu0 %1093
    %v1095 = vmul.f32 %v1092, %v253
    %v1096 = vmul.f32 %v1094, %v253
    %v1097 = vadd.f32 %v1095, 1e-05
    %v1098 = vadd.f32 %v1096, 1e-05
    %v1099 = vrsqrt.pop %v1097
    %v1100 = vrsqrt.pop %v1098
    %v1101 = vmul.f32 %v1087, %v1099
    %v1102 = vmul.f32 %v1088, %v1100
    %v1104 = vlaneseq
    %v1105 = vshrl.u32 %v1104, 7
    %v1106 = vsub.s32 0, %v1105
    %v1107 = vrot.slane %v1079, %v1106
    %v1109 = vmul.f32 %v1101, %v1107
    %v1110 = vmul.f32 %v1102, %v1107
    %v1112 = vlaneseq
    %v1113 = vshrl.u32 %v1112, 7
    %v1114 = vsub.s32 0, %v1113
    %v1115 = vrot.slane %v1080, %v1114
    %v1117 = vadd.f32 %v1109, %v1115
    %v1118 = vadd.f32 %v1110, %v1115
    %v1119 = vld [vmem:[#allocation11] sm:$0xff]
    %v1120 = vld [vmem:[#allocation11 + $0x8] sm:$0xff]
    %v1121 = vld [vmem:[#allocation11 + $0x10] sm:$0xff]
    %v1122 = vld [vmem:[#allocation11 + $0x18] sm:$0xff]
    %v1123 = vld [vmem:[#allocation11 + $0x20] sm:$0xff]
    %v1124 = vld [vmem:[#allocation11 + $0x28] sm:$0xff]
    %v1125 = vld [vmem:[#allocation11 + $0x30] sm:$0xff]
    %v1126 = vld [vmem:[#allocation11 + $0x38] sm:$0xff]
    %v1127 = vld [vmem:[#allocation11 + $0x40] sm:$0xff]
    %v1128 = vld [vmem:[#allocation11 + $0x48] sm:$0xff]
    %v1129 = vld [vmem:[#allocation11 + $0x50] sm:$0xff]
    %v1130 = vld [vmem:[#allocation11 + $0x58] sm:$0xff]
    %v1131 = vld [vmem:[#allocation11 + $0x60] sm:$0xff]
    %v1132 = vld [vmem:[#allocation11 + $0x68] sm:$0xff]
    %v1133 = vld [vmem:[#allocation11 + $0x70] sm:$0xff]
    %v1134 = vld [vmem:[#allocation11 + $0x78] sm:$0xff]
    %v1135 = vld [vmem:[#allocation11 + $0x80] sm:$0xff]
    %v1136 = vld [vmem:[#allocation11 + $0x88] sm:$0xff]
    %v1137 = vld [vmem:[#allocation11 + $0x90] sm:$0xff]
    %v1138 = vld [vmem:[#allocation11 + $0x98] sm:$0xff]
    %v1139 = vld [vmem:[#allocation11 + $0xa0] sm:$0xff]
    %v1140 = vld [vmem:[#allocation11 + $0xa8] sm:$0xff]
    %v1141 = vld [vmem:[#allocation11 + $0xb0] sm:$0xff]
    %v1142 = vld [vmem:[#allocation11 + $0xb8] sm:$0xff]
    %v1143 = vld [vmem:[#allocation11 + $0xc0] sm:$0xff]
    %v1144 = vld [vmem:[#allocation11 + $0xc8] sm:$0xff]
    %v1145 = vld [vmem:[#allocation11 + $0xd0] sm:$0xff]
    %v1146 = vld [vmem:[#allocation11 + $0xd8] sm:$0xff]
    %v1147 = vld [vmem:[#allocation11 + $0xe0] sm:$0xff]
    %v1148 = vld [vmem:[#allocation11 + $0xe8] sm:$0xff]
    %v1149 = vld [vmem:[#allocation11 + $0xf0] sm:$0xff]
    %v1150 = vld [vmem:[#allocation11 + $0xf8] sm:$0xff]
    %v1151 = vld [vmem:[#allocation11 + $0x100] sm:$0xff]
    %v1152 = vld [vmem:[#allocation11 + $0x108] sm:$0xff]
    %v1153 = vld [vmem:[#allocation11 + $0x110] sm:$0xff]
    %v1154 = vld [vmem:[#allocation11 + $0x118] sm:$0xff]
    %v1155 = vld [vmem:[#allocation11 + $0x120] sm:$0xff]
    %v1156 = vld [vmem:[#allocation11 + $0x128] sm:$0xff]
    %v1157 = vld [vmem:[#allocation11 + $0x130] sm:$0xff]
    %v1158 = vld [vmem:[#allocation11 + $0x138] sm:$0xff]
    %v1159 = vld [vmem:[#allocation11 + $0x140] sm:$0xff]
    %v1160 = vld [vmem:[#allocation11 + $0x148] sm:$0xff]
    %v1161 = vld [vmem:[#allocation11 + $0x150] sm:$0xff]
    %v1162 = vld [vmem:[#allocation11 + $0x158] sm:$0xff]
    %v1163 = vld [vmem:[#allocation11 + $0x160] sm:$0xff]
    %v1164 = vld [vmem:[#allocation11 + $0x168] sm:$0xff]
    %v1165 = vld [vmem:[#allocation11 + $0x170] sm:$0xff]
    %v1166 = vld [vmem:[#allocation11 + $0x178] sm:$0xff]
    %v1167 = vld [vmem:[#allocation11 + $0x180] sm:$0xff]
    %v1168 = vld [vmem:[#allocation11 + $0x188] sm:$0xff]
    %v1169 = vld [vmem:[#allocation11 + $0x190] sm:$0xff]
    %v1170 = vld [vmem:[#allocation11 + $0x198] sm:$0xff]
    %v1171 = vld [vmem:[#allocation11 + $0x1a0] sm:$0xff]
    %v1172 = vld [vmem:[#allocation11 + $0x1a8] sm:$0xff]
    %v1173 = vld [vmem:[#allocation11 + $0x1b0] sm:$0xff]
    %v1174 = vld [vmem:[#allocation11 + $0x1b8] sm:$0xff]
    %v1175 = vld [vmem:[#allocation11 + $0x1c0] sm:$0xff]
    %v1176 = vld [vmem:[#allocation11 + $0x1c8] sm:$0xff]
    %v1177 = vld [vmem:[#allocation11 + $0x1d0] sm:$0xff]
    %v1178 = vld [vmem:[#allocation11 + $0x1d8] sm:$0xff]
    %v1179 = vld [vmem:[#allocation11 + $0x1e0] sm:$0xff]
    %v1180 = vld [vmem:[#allocation11 + $0x1e8] sm:$0xff]
    %v1181 = vld [vmem:[#allocation11 + $0x1f0] sm:$0xff]
    %v1182 = vld [vmem:[#allocation11 + $0x1f8] sm:$0xff]
    %v1183 = vld [vmem:[%s10] sm:$0xf]
    %v1185 = vlaneseq
    %v1186 = vshrl.u32 %v1185, 7
    %v1187 = vsub.s32 0, %v1186
    %v1188 = vrot.slane %v1183, %v1187
    %v1189 = vlaneseq
    %v1190 = vshrl.u32 %v1189, 7
    %v1191 = vsub.s32 1, %v1190
    %v1192 = vrot.slane %v1183, %v1191
    %v1193 = vlaneseq
    %v1194 = vshrl.u32 %v1193, 7
    %v1195 = vsub.s32 2, %v1194
    %v1196 = vrot.slane %v1183, %v1195
    %v1197 = vlaneseq
    %v1198 = vshrl.u32 %v1197, 7
    %v1199 = vsub.s32 3, %v1198
    %v1200 = vrot.slane %v1183, %v1199
    %1205 = vmatprep.subr.mxu0 %v1180
    %1206 = vmatpush1.msra.mxu0 %v1179
    %1207 = vmatprep.subr.mxu0 %v1176
    %1208 = vmatpush1.msra.mxu0 %v1175
    %1209 = vmatprep.subr.mxu0 %v1172
    %1210 = vmatpush1.msra.mxu0 %v1171
    %1211 = vmatprep.subr.mxu0 %v1168
    %1212 = vmatpush1.msra.mxu0 %v1167
    %1213 = vmatprep.subr.mxu0 %v1164
    %1214 = vmatpush1.msra.mxu0 %v1163
    %1215 = vmatprep.subr.mxu0 %v1160
    %1216 = vmatpush1.msra.mxu0 %v1159
    %1217 = vmatprep.subr.mxu0 %v1156
    %1218 = vmatpush1.msra.mxu0 %v1155
    %1219 = vmatprep.subr.mxu0 %v1152
    %1220 = vmatpush1.msra.mxu0 %v1151
    %1221 = vmatprep.subr.mxu0 %v1148
    %1222 = vmatpush1.msra.mxu0 %v1147
    %1223 = vmatprep.subr.mxu0 %v1144
    %1224 = vmatpush1.msra.mxu0 %v1143
    %1225 = vmatprep.subr.mxu0 %v1140
    %1226 = vmatpush1.msra.mxu0 %v1139
    %1227 = vmatprep.subr.mxu0 %v1136
    %1228 = vmatpush1.msra.mxu0 %v1135
    %1229 = vmatprep.subr.mxu0 %v1132
    %1230 = vmatpush1.msra.mxu0 %v1131
    %1231 = vmatprep.subr.mxu0 %v1128
    %1232 = vmatpush1.msra.mxu0 %v1127
    %1233 = vmatprep.subr.mxu0 %v1124
    %1234 = vmatpush1.msra.mxu0 %v1123
    %1235 = vmatprep.subr.mxu0 %v1120
    %1236 = vmatpush1.msra.mxu0 %v1119
    %1237 = vmatprep.subr.mxu0 0.0
    %1238 = vmatpush2.msra.mxu0 0.0
    %1239 = vmatprep.subr.mxu0 0.0
    %1240 = vmatpush2.msra.mxu0 0.0
    %1241 = vmatprep.subr.mxu0 0.0
    %1242 = vmatpush2.msra.mxu0 0.0
    %1243 = vmatprep.subr.mxu0 0.0
    %1244 = vmatpush2.msra.mxu0 0.0
    %1245 = vmatprep.subr.mxu0 0.0
    %1246 = vmatpush2.msra.mxu0 0.0
    %1247 = vmatprep.subr.mxu0 0.0
    %1248 = vmatpush2.msra.mxu0 0.0
    %1249 = vmatprep.subr.mxu0 0.0
    %1250 = vmatpush2.msra.mxu0 0.0
    %1251 = vmatprep.subr.mxu0 0.0
    %1252 = vmatpush2.msra.mxu0 0.0
    %1253 = vmatprep.subr.mxu0 0.0
    %1254 = vmatpush2.msra.mxu0 0.0
    %1255 = vmatprep.subr.mxu0 0.0
    %1256 = vmatpush2.msra.mxu0 0.0
    %1257 = vmatprep.subr.mxu0 0.0
    %1258 = vmatpush2.msra.mxu0 0.0
    %1259 = vmatprep.subr.mxu0 0.0
    %1260 = vmatpush2.msra.mxu0 0.0
    %1261 = vmatprep.subr.mxu0 0.0
    %1262 = vmatpush2.msra.mxu0 0.0
    %1263 = vmatprep.subr.mxu0 0.0
    %1264 = vmatpush2.msra.mxu0 0.0
    %1265 = vmatprep.subr.mxu0 0.0
    %1266 = vmatpush2.msra.mxu0 0.0
    %1267 = vmatprep.subr.mxu0 0.0
    %1268 = vmatpush2.msra.mxu0 0.0
    %1269 = vmatprep.mubr.f32.mxu0 0.0
    %1270 = vmatmul.mubr.f32.gmra.mxu0 %v1117
    %v1271 = vpop.f32.mrf.mxu0
    %v1272 = vadd.f32 %v1188, %v1271
    %v1273 = vpop.f32.mrf.mxu0
    %v1274 = vadd.f32 %v1192, %v1273
    %1275 = vmatprep.mubr.f32.mxu0 0.0
    %1276 = vmatmul.mubr.f32.gmra.mxu0 %v1118
    %v1277 = vpop.f32.mrf.mxu0
    %v1278 = vadd.f32 %v1188, %v1277
    %v1279 = vpop.f32.mrf.mxu0
    %v1280 = vadd.f32 %v1192, %v1279
    %1281 = vdwg.mxu0
    %1282 = vmatprep.subr.mxu0 %v1182
    %1283 = vmatpush1.msra.mxu0 %v1181
    %1284 = vmatprep.subr.mxu0 %v1178
    %1285 = vmatpush1.msra.mxu0 %v1177
    %1286 = vmatprep.subr.mxu0 %v1174
    %1287 = vmatpush1.msra.mxu0 %v1173
    %1288 = vmatprep.subr.mxu0 %v1170
    %1289 = vmatpush1.msra.mxu0 %v1169
    %1290 = vmatprep.subr.mxu0 %v1166
    %1291 = vmatpush1.msra.mxu0 %v1165
    %1292 = vmatprep.subr.mxu0 %v1162
    %1293 = vmatpush1.msra.mxu0 %v1161
    %1294 = vmatprep.subr.mxu0 %v1158
    %1295 = vmatpush1.msra.mxu0 %v1157
    %1296 = vmatprep.subr.mxu0 %v1154
    %1297 = vmatpush1.msra.mxu0 %v1153
    %1298 = vmatprep.subr.mxu0 %v1150
    %1299 = vmatpush1.msra.mxu0 %v1149
    %1300 = vmatprep.subr.mxu0 %v1146
    %1301 = vmatpush1.msra.mxu0 %v1145
    %1302 = vmatprep.subr.mxu0 %v1142
    %1303 = vmatpush1.msra.mxu0 %v1141
    %1304 = vmatprep.subr.mxu0 %v1138
    %1305 = vmatpush1.msra.mxu0 %v1137
    %1306 = vmatprep.subr.mxu0 %v1134
    %1307 = vmatpush1.msra.mxu0 %v1133
    %1308 = vmatprep.subr.mxu0 %v1130
    %1309 = vmatpush1.msra.mxu0 %v1129
    %1310 = vmatprep.subr.mxu0 %v1126
    %1311 = vmatpush1.msra.mxu0 %v1125
    %1312 = vmatprep.subr.mxu0 %v1122
    %1313 = vmatpush1.msra.mxu0 %v1121
    %1314 = vmatprep.subr.mxu0 0.0
    %1315 = vmatpush2.msra.mxu0 0.0
    %1316 = vmatprep.subr.mxu0 0.0
    %1317 = vmatpush2.msra.mxu0 0.0
    %1318 = vmatprep.subr.mxu0 0.0
    %1319 = vmatpush2.msra.mxu0 0.0
    %1320 = vmatprep.subr.mxu0 0.0
    %1321 = vmatpush2.msra.mxu0 0.0
    %1322 = vmatprep.subr.mxu0 0.0
    %1323 = vmatpush2.msra.mxu0 0.0
    %1324 = vmatprep.subr.mxu0 0.0
    %1325 = vmatpush2.msra.mxu0 0.0
    %1326 = vmatprep.subr.mxu0 0.0
    %1327 = vmatpush2.msra.mxu0 0.0
    %1328 = vmatprep.subr.mxu0 0.0
    %1329 = vmatpush2.msra.mxu0 0.0
    %1330 = vmatprep.subr.mxu0 0.0
    %1331 = vmatpush2.msra.mxu0 0.0
    %1332 = vmatprep.subr.mxu0 0.0
    %1333 = vmatpush2.msra.mxu0 0.0
    %1334 = vmatprep.subr.mxu0 0.0
    %1335 = vmatpush2.msra.mxu0 0.0
    %1336 = vmatprep.subr.mxu0 0.0
    %1337 = vmatpush2.msra.mxu0 0.0
    %1338 = vmatprep.subr.mxu0 0.0
    %1339 = vmatpush2.msra.mxu0 0.0
    %1340 = vmatprep.subr.mxu0 0.0
    %1341 = vmatpush2.msra.mxu0 0.0
    %1342 = vmatprep.subr.mxu0 0.0
    %1343 = vmatpush2.msra.mxu0 0.0
    %1344 = vmatprep.subr.mxu0 0.0
    %1345 = vmatpush2.msra.mxu0 0.0
    %1346 = vmatprep.mubr.f32.mxu0 0.0
    %1347 = vmatmul.mubr.f32.gmra.mxu0 %v1117
    %v1348 = vpop.f32.mrf.mxu0
    %v1349 = vadd.f32 %v1196, %v1348
    %v1350 = vpop.f32.mrf.mxu0
    %v1351 = vadd.f32 %v1200, %v1350
    %1352 = vmatprep.mubr.f32.mxu0 0.0
    %1353 = vmatmul.mubr.f32.gmra.mxu0 %v1118
    %v1354 = vpop.f32.mrf.mxu0
    %v1355 = vadd.f32 %v1196, %v1354
    %v1356 = vpop.f32.mrf.mxu0
    %v1357 = vadd.f32 %v1200, %v1356
    %1358 = vdwg.mxu0
    %v1359 = vmax.f32 %v1272, 0.0
    %v1360 = vmax.f32 %v1274, 0.0
    %v1361 = vmax.f32 %v1349, 0.0
    %v1362 = vmax.f32 %v1351, 0.0
    %v1363 = vmax.f32 %v1278, 0.0
    %v1364 = vmax.f32 %v1280, 0.0
    %v1365 = vmax.f32 %v1355, 0.0
    %v1366 = vmax.f32 %v1357, 0.0
    %v1367 = vld [vmem:[#allocation13] sm:$0xff]
    %v1368 = vld [vmem:[#allocation13 + $0x8] sm:$0xff]
    %v1369 = vld [vmem:[#allocation13 + $0x10] sm:$0xff]
    %v1370 = vld [vmem:[#allocation13 + $0x18] sm:$0xff]
    %v1371 = vld [vmem:[#allocation13 + $0x20] sm:$0xff]
    %v1372 = vld [vmem:[#allocation13 + $0x28] sm:$0xff]
    %v1373 = vld [vmem:[#allocation13 + $0x30] sm:$0xff]
    %v1374 = vld [vmem:[#allocation13 + $0x38] sm:$0xff]
    %v1375 = vld [vmem:[#allocation13 + $0x40] sm:$0xff]
    %v1376 = vld [vmem:[#allocation13 + $0x48] sm:$0xff]
    %v1377 = vld [vmem:[#allocation13 + $0x50] sm:$0xff]
    %v1378 = vld [vmem:[#allocation13 + $0x58] sm:$0xff]
    %v1379 = vld [vmem:[#allocation13 + $0x60] sm:$0xff]
    %v1380 = vld [vmem:[#allocation13 + $0x68] sm:$0xff]
    %v1381 = vld [vmem:[#allocation13 + $0x70] sm:$0xff]
    %v1382 = vld [vmem:[#allocation13 + $0x78] sm:$0xff]
    %v1383 = vld [vmem:[#allocation13 + $0x80] sm:$0xff]
    %v1384 = vld [vmem:[#allocation13 + $0x88] sm:$0xff]
    %v1385 = vld [vmem:[#allocation13 + $0x90] sm:$0xff]
    %v1386 = vld [vmem:[#allocation13 + $0x98] sm:$0xff]
    %v1387 = vld [vmem:[#allocation13 + $0xa0] sm:$0xff]
    %v1388 = vld [vmem:[#allocation13 + $0xa8] sm:$0xff]
    %v1389 = vld [vmem:[#allocation13 + $0xb0] sm:$0xff]
    %v1390 = vld [vmem:[#allocation13 + $0xb8] sm:$0xff]
    %v1391 = vld [vmem:[#allocation13 + $0xc0] sm:$0xff]
    %v1392 = vld [vmem:[#allocation13 + $0xc8] sm:$0xff]
    %v1393 = vld [vmem:[#allocation13 + $0xd0] sm:$0xff]
    %v1394 = vld [vmem:[#allocation13 + $0xd8] sm:$0xff]
    %v1395 = vld [vmem:[#allocation13 + $0xe0] sm:$0xff]
    %v1396 = vld [vmem:[#allocation13 + $0xe8] sm:$0xff]
    %v1397 = vld [vmem:[#allocation13 + $0xf0] sm:$0xff]
    %v1398 = vld [vmem:[#allocation13 + $0xf8] sm:$0xff]
    %v1399 = vld [vmem:[#allocation13 + $0x100] sm:$0xff]
    %v1400 = vld [vmem:[#allocation13 + $0x108] sm:$0xff]
    %v1401 = vld [vmem:[#allocation13 + $0x110] sm:$0xff]
    %v1402 = vld [vmem:[#allocation13 + $0x118] sm:$0xff]
    %v1403 = vld [vmem:[#allocation13 + $0x120] sm:$0xff]
    %v1404 = vld [vmem:[#allocation13 + $0x128] sm:$0xff]
    %v1405 = vld [vmem:[#allocation13 + $0x130] sm:$0xff]
    %v1406 = vld [vmem:[#allocation13 + $0x138] sm:$0xff]
    %v1407 = vld [vmem:[#allocation13 + $0x140] sm:$0xff]
    %v1408 = vld [vmem:[#allocation13 + $0x148] sm:$0xff]
    %v1409 = vld [vmem:[#allocation13 + $0x150] sm:$0xff]
    %v1410 = vld [vmem:[#allocation13 + $0x158] sm:$0xff]
    %v1411 = vld [vmem:[#allocation13 + $0x160] sm:$0xff]
    %v1412 = vld [vmem:[#allocation13 + $0x168] sm:$0xff]
    %v1413 = vld [vmem:[#allocation13 + $0x170] sm:$0xff]
    %v1414 = vld [vmem:[#allocation13 + $0x178] sm:$0xff]
    %v1415 = vld [vmem:[#allocation13 + $0x180] sm:$0xff]
    %v1416 = vld [vmem:[#allocation13 + $0x188] sm:$0xff]
    %v1417 = vld [vmem:[#allocation13 + $0x190] sm:$0xff]
    %v1418 = vld [vmem:[#allocation13 + $0x198] sm:$0xff]
    %v1419 = vld [vmem:[#allocation13 + $0x1a0] sm:$0xff]
    %v1420 = vld [vmem:[#allocation13 + $0x1a8] sm:$0xff]
    %v1421 = vld [vmem:[#allocation13 + $0x1b0] sm:$0xff]
    %v1422 = vld [vmem:[#allocation13 + $0x1b8] sm:$0xff]
    %v1423 = vld [vmem:[#allocation13 + $0x1c0] sm:$0xff]
    %v1424 = vld [vmem:[#allocation13 + $0x1c8] sm:$0xff]
    %v1425 = vld [vmem:[#allocation13 + $0x1d0] sm:$0xff]
    %v1426 = vld [vmem:[#allocation13 + $0x1d8] sm:$0xff]
    %v1427 = vld [vmem:[#allocation13 + $0x1e0] sm:$0xff]
    %v1428 = vld [vmem:[#allocation13 + $0x1e8] sm:$0xff]
    %v1429 = vld [vmem:[#allocation13 + $0x1f0] sm:$0xff]
    %v1430 = vld [vmem:[#allocation13 + $0x1f8] sm:$0xff]
    %1431 = vmatprep.subr.mxu0 0.0
    %1432 = vmatpush1.msra.mxu0 %v1382
    %1433 = vmatprep.subr.mxu0 0.0
    %1434 = vmatpush1.msra.mxu0 %v1381
    %1435 = vmatprep.subr.mxu0 0.0
    %1436 = vmatpush1.msra.mxu0 %v1380
    %1437 = vmatprep.subr.mxu0 0.0
    %1438 = vmatpush1.msra.mxu0 %v1379
    %1439 = vmatprep.subr.mxu0 0.0
    %1440 = vmatpush1.msra.mxu0 %v1378
    %1441 = vmatprep.subr.mxu0 0.0
    %1442 = vmatpush1.msra.mxu0 %v1377
    %1443 = vmatprep.subr.mxu0 0.0
    %1444 = vmatpush1.msra.mxu0 %v1376
    %1445 = vmatprep.subr.mxu0 0.0
    %1446 = vmatpush1.msra.mxu0 %v1375
    %1447 = vmatprep.subr.mxu0 0.0
    %1448 = vmatpush1.msra.mxu0 %v1374
    %1449 = vmatprep.subr.mxu0 0.0
    %1450 = vmatpush1.msra.mxu0 %v1373
    %1451 = vmatprep.subr.mxu0 0.0
    %1452 = vmatpush1.msra.mxu0 %v1372
    %1453 = vmatprep.subr.mxu0 0.0
    %1454 = vmatpush1.msra.mxu0 %v1371
    %1455 = vmatprep.subr.mxu0 0.0
    %1456 = vmatpush1.msra.mxu0 %v1370
    %1457 = vmatprep.subr.mxu0 0.0
    %1458 = vmatpush1.msra.mxu0 %v1369
    %1459 = vmatprep.subr.mxu0 0.0
    %1460 = vmatpush1.msra.mxu0 %v1368
    %1461 = vmatprep.subr.mxu0 0.0
    %1462 = vmatpush1.msra.mxu0 %v1367
    %1463 = vmatprep.subr.mxu0 0.0
    %1464 = vmatpush2.msra.mxu0 %v1398
    %1465 = vmatprep.subr.mxu0 0.0
    %1466 = vmatpush2.msra.mxu0 %v1397
    %1467 = vmatprep.subr.mxu0 0.0
    %1468 = vmatpush2.msra.mxu0 %v1396
    %1469 = vmatprep.subr.mxu0 0.0
    %1470 = vmatpush2.msra.mxu0 %v1395
    %1471 = vmatprep.subr.mxu0 0.0
    %1472 = vmatpush2.msra.mxu0 %v1394
    %1473 = vmatprep.subr.mxu0 0.0
    %1474 = vmatpush2.msra.mxu0 %v1393
    %1475 = vmatprep.subr.mxu0 0.0
    %1476 = vmatpush2.msra.mxu0 %v1392
    %1477 = vmatprep.subr.mxu0 0.0
    %1478 = vmatpush2.msra.mxu0 %v1391
    %1479 = vmatprep.subr.mxu0 0.0
    %1480 = vmatpush2.msra.mxu0 %v1390
    %1481 = vmatprep.subr.mxu0 0.0
    %1482 = vmatpush2.msra.mxu0 %v1389
    %1483 = vmatprep.subr.mxu0 0.0
    %1484 = vmatpush2.msra.mxu0 %v1388
    %1485 = vmatprep.subr.mxu0 0.0
    %1486 = vmatpush2.msra.mxu0 %v1387
    %1487 = vmatprep.subr.mxu0 0.0
    %1488 = vmatpush2.msra.mxu0 %v1386
    %1489 = vmatprep.subr.mxu0 0.0
    %1490 = vmatpush2.msra.mxu0 %v1385
    %1491 = vmatprep.subr.mxu0 0.0
    %1492 = vmatpush2.msra.mxu0 %v1384
    %1493 = vmatprep.subr.mxu0 0.0
    %1494 = vmatpush2.msra.mxu0 %v1383
    %1495 = vmatprep.mubr.f32.mxu0 %v1360
    %1496 = vmatmul.mubr.f32.gmra.mxu0 %v1359
    %v1497 = vpop.f32.mrf.mxu0
    %v1498 = vadd.f32 0.0, %v1497
    %v1499 = vpop.f32.mrf.mxu0
    %1500 = vmatprep.mubr.f32.mxu0 %v1364
    %1501 = vmatmul.mubr.f32.gmra.mxu0 %v1363
    %v1502 = vpop.f32.mrf.mxu0
    %v1503 = vadd.f32 0.0, %v1502
    %v1504 = vpop.f32.mrf.mxu0
    %1505 = vdwg.mxu0
    %1506 = vmatprep.subr.mxu0 0.0
    %1507 = vmatpush1.msra.mxu0 %v1414
    %1508 = vmatprep.subr.mxu0 0.0
    %1509 = vmatpush1.msra.mxu0 %v1413
    %1510 = vmatprep.subr.mxu0 0.0
    %1511 = vmatpush1.msra.mxu0 %v1412
    %1512 = vmatprep.subr.mxu0 0.0
    %1513 = vmatpush1.msra.mxu0 %v1411
    %1514 = vmatprep.subr.mxu0 0.0
    %1515 = vmatpush1.msra.mxu0 %v1410
    %1516 = vmatprep.subr.mxu0 0.0
    %1517 = vmatpush1.msra.mxu0 %v1409
    %1518 = vmatprep.subr.mxu0 0.0
    %1519 = vmatpush1.msra.mxu0 %v1408
    %1520 = vmatprep.subr.mxu0 0.0
    %1521 = vmatpush1.msra.mxu0 %v1407
    %1522 = vmatprep.subr.mxu0 0.0
    %1523 = vmatpush1.msra.mxu0 %v1406
    %1524 = vmatprep.subr.mxu0 0.0
    %1525 = vmatpush1.msra.mxu0 %v1405
    %1526 = vmatprep.subr.mxu0 0.0
    %1527 = vmatpush1.msra.mxu0 %v1404
    %1528 = vmatprep.subr.mxu0 0.0
    %1529 = vmatpush1.msra.mxu0 %v1403
    %1530 = vmatprep.subr.mxu0 0.0
    %1531 = vmatpush1.msra.mxu0 %v1402
    %1532 = vmatprep.subr.mxu0 0.0
    %1533 = vmatpush1.msra.mxu0 %v1401
    %1534 = vmatprep.subr.mxu0 0.0
    %1535 = vmatpush1.msra.mxu0 %v1400
    %1536 = vmatprep.subr.mxu0 0.0
    %1537 = vmatpush1.msra.mxu0 %v1399
    %1538 = vmatprep.subr.mxu0 0.0
    %1539 = vmatpush2.msra.mxu0 %v1430
    %1540 = vmatprep.subr.mxu0 0.0
    %1541 = vmatpush2.msra.mxu0 %v1429
    %1542 = vmatprep.subr.mxu0 0.0
    %1543 = vmatpush2.msra.mxu0 %v1428
    %1544 = vmatprep.subr.mxu0 0.0
    %1545 = vmatpush2.msra.mxu0 %v1427
    %1546 = vmatprep.subr.mxu0 0.0
    %1547 = vmatpush2.msra.mxu0 %v1426
    %1548 = vmatprep.subr.mxu0 0.0
    %1549 = vmatpush2.msra.mxu0 %v1425
    %1550 = vmatprep.subr.mxu0 0.0
    %1551 = vmatpush2.msra.mxu0 %v1424
    %1552 = vmatprep.subr.mxu0 0.0
    %1553 = vmatpush2.msra.mxu0 %v1423
    %1554 = vmatprep.subr.mxu0 0.0
    %1555 = vmatpush2.msra.mxu0 %v1422
    %1556 = vmatprep.subr.mxu0 0.0
    %1557 = vmatpush2.msra.mxu0 %v1421
    %1558 = vmatprep.subr.mxu0 0.0
    %1559 = vmatpush2.msra.mxu0 %v1420
    %1560 = vmatprep.subr.mxu0 0.0
    %1561 = vmatpush2.msra.mxu0 %v1419
    %1562 = vmatprep.subr.mxu0 0.0
    %1563 = vmatpush2.msra.mxu0 %v1418
    %1564 = vmatprep.subr.mxu0 0.0
    %1565 = vmatpush2.msra.mxu0 %v1417
    %1566 = vmatprep.subr.mxu0 0.0
    %1567 = vmatpush2.msra.mxu0 %v1416
    %1568 = vmatprep.subr.mxu0 0.0
    %1569 = vmatpush2.msra.mxu0 %v1415
    %1570 = vmatprep.mubr.f32.mxu0 %v1362
    %1571 = vmatmul.mubr.f32.gmra.mxu0 %v1361
    %v1572 = vpop.f32.mrf.mxu0
    %v1573 = vadd.f32 %v1498, %v1572
    %v1574 = vpop.f32.mrf.mxu0
    %1575 = vmatprep.mubr.f32.mxu0 %v1366
    %1576 = vmatmul.mubr.f32.gmra.mxu0 %v1365
    %v1577 = vpop.f32.mrf.mxu0
    %v1578 = vadd.f32 %v1503, %v1577
    %v1579 = vpop.f32.mrf.mxu0
    %1580 = vdwg.mxu0
    %v1581 = vadd.f32 %v1077, %v1573
    %v1582 = vadd.f32 %v1078, %v1578
    %v1583 = vld [vmem:[#allocation14] sm:$0x1]
    %v1585 = vlaneseq
    %v1586 = vshrl.u32 %v1585, 7
    %v1587 = vsub.s32 0, %v1586
    %v1588 = vrot.slane %v1583, %v1587
    %v1590 = vadd.f32 %v1581, %v1588
    %v1591 = vadd.f32 %v1582, %v1588
    %v1592 = vld [vmem:[%s13] sm:$0x1]
    %v1593 = vld [vmem:[%s14] sm:$0x1]
    %1594 = vadd.xlane.f32.xlu0 %v1590
    %v1595 = vpop.xlane.xlu0 %1594
    %1596 = vadd.xlane.f32.xlu0 %v1591
    %v1597 = vpop.xlane.xlu0 %1596
    %v1598 = vmul.f32 %v1595, %v253
    %v1599 = vmul.f32 %v1597, %v253
    %v1600 = vsub.f32 %v1590, %v1598
    %v1601 = vsub.f32 %v1591, %v1599
    %v1602 = vmul.f32 %v1600, %v1600
    %v1603 = vmul.f32 %v1601, %v1601
    %1604 = vadd.xlane.f32.xlu0 %v1602
    %v1605 = vpop.xlane.xlu0 %1604
    %1606 = vadd.xlane.f32.xlu0 %v1603
    %v1607 = vpop.xlane.xlu0 %1606
    %v1608 = vmul.f32 %v1605, %v253
    %v1609 = vmul.f32 %v1607, %v253
    %v1610 = vadd.f32 %v1608, 1e-05
    %v1611 = vadd.f32 %v1609, 1e-05
    %v1612 = vrsqrt.pop %v1610
    %v1613 = vrsqrt.pop %v1611
    %v1614 = vmul.f32 %v1600, %v1612
    %v1615 = vmul.f32 %v1601, %v1613
    %v1617 = vlaneseq
    %v1618 = vshrl.u32 %v1617, 7
    %v1619 = vsub.s32 0, %v1618
    %v1620 = vrot.slane %v1592, %v1619
    %v1622 = vmul.f32 %v1614, %v1620
    %v1623 = vmul.f32 %v1615, %v1620
    %v1625 = vlaneseq
    %v1626 = vshrl.u32 %v1625, 7
    %v1627 = vsub.s32 0, %v1626
    %v1628 = vrot.slane %v1593, %v1627
    %v1630 = vadd.f32 %v1622, %v1628
    %v1631 = vadd.f32 %v1623, %v1628
    %v1632 = vld [vmem:[#allocation16] sm:$0xff]
    %v1633 = vld [vmem:[#allocation16 + $0x8] sm:$0xff]
    %v1634 = vld [vmem:[#allocation16 + $0x10] sm:$0xff]
    %v1635 = vld [vmem:[#allocation16 + $0x18] sm:$0xff]
    %v1636 = vld [vmem:[#allocation16 + $0x20] sm:$0xff]
    %v1637 = vld [vmem:[#allocation16 + $0x28] sm:$0xff]
    %v1638 = vld [vmem:[#allocation16 + $0x30] sm:$0xff]
    %v1639 = vld [vmem:[#allocation16 + $0x38] sm:$0xff]
    %v1640 = vld [vmem:[#allocation16 + $0x40] sm:$0xff]
    %v1641 = vld [vmem:[#allocation16 + $0x48] sm:$0xff]
    %v1642 = vld [vmem:[#allocation16 + $0x50] sm:$0xff]
    %v1643 = vld [vmem:[#allocation16 + $0x58] sm:$0xff]
    %v1644 = vld [vmem:[#allocation16 + $0x60] sm:$0xff]
    %v1645 = vld [vmem:[#allocation16 + $0x68] sm:$0xff]
    %v1646 = vld [vmem:[#allocation16 + $0x70] sm:$0xff]
    %v1647 = vld [vmem:[#allocation16 + $0x78] sm:$0xff]
    %v1648 = vld [vmem:[#allocation16 + $0x80] sm:$0xff]
    %v1649 = vld [vmem:[#allocation16 + $0x88] sm:$0xff]
    %v1650 = vld [vmem:[#allocation16 + $0x90] sm:$0xff]
    %v1651 = vld [vmem:[#allocation16 + $0x98] sm:$0xff]
    %v1652 = vld [vmem:[#allocation16 + $0xa0] sm:$0xff]
    %v1653 = vld [vmem:[#allocation16 + $0xa8] sm:$0xff]
    %v1654 = vld [vmem:[#allocation16 + $0xb0] sm:$0xff]
    %v1655 = vld [vmem:[#allocation16 + $0xb8] sm:$0xff]
    %v1656 = vld [vmem:[#allocation16 + $0xc0] sm:$0xff]
    %v1657 = vld [vmem:[#allocation16 + $0xc8] sm:$0xff]
    %v1658 = vld [vmem:[#allocation16 + $0xd0] sm:$0xff]
    %v1659 = vld [vmem:[#allocation16 + $0xd8] sm:$0xff]
    %v1660 = vld [vmem:[#allocation16 + $0xe0] sm:$0xff]
    %v1661 = vld [vmem:[#allocation16 + $0xe8] sm:$0xff]
    %v1662 = vld [vmem:[#allocation16 + $0xf0] sm:$0xff]
    %v1663 = vld [vmem:[#allocation16 + $0xf8] sm:$0xff]
    %v1664 = vld [vmem:[#allocation16 + $0x100] sm:$0xff]
    %v1665 = vld [vmem:[#allocation16 + $0x108] sm:$0xff]
    %v1666 = vld [vmem:[#allocation16 + $0x110] sm:$0xff]
    %v1667 = vld [vmem:[#allocation16 + $0x118] sm:$0xff]
    %v1668 = vld [vmem:[#allocation16 + $0x120] sm:$0xff]
    %v1669 = vld [vmem:[#allocation16 + $0x128] sm:$0xff]
    %v1670 = vld [vmem:[#allocation16 + $0x130] sm:$0xff]
    %v1671 = vld [vmem:[#allocation16 + $0x138] sm:$0xff]
    %v1672 = vld [vmem:[#allocation16 + $0x140] sm:$0xff]
    %v1673 = vld [vmem:[#allocation16 + $0x148] sm:$0xff]
    %v1674 = vld [vmem:[#allocation16 + $0x150] sm:$0xff]
    %v1675 = vld [vmem:[#allocation16 + $0x158] sm:$0xff]
    %v1676 = vld [vmem:[#allocation16 + $0x160] sm:$0xff]
    %v1677 = vld [vmem:[#allocation16 + $0x168] sm:$0xff]
    %v1678 = vld [vmem:[#allocation16 + $0x170] sm:$0xff]
    %v1679 = vld [vmem:[#allocation16 + $0x178] sm:$0xff]
    %1680 = vmatprep.subr.mxu0 %v1678
    %1681 = vmatpush1.msra.mxu0 %v1677
    %1682 = vmatprep.subr.mxu0 %v1675
    %1683 = vmatpush1.msra.mxu0 %v1674
    %1684 = vmatprep.subr.mxu0 %v1672
    %1685 = vmatpush1.msra.mxu0 %v1671
    %1686 = vmatprep.subr.mxu0 %v1669
    %1687 = vmatpush1.msra.mxu0 %v1668
    %1688 = vmatprep.subr.mxu0 %v1666
    %1689 = vmatpush1.msra.mxu0 %v1665
    %1690 = vmatprep.subr.mxu0 %v1663
    %1691 = vmatpush1.msra.mxu0 %v1662
    %1692 = vmatprep.subr.mxu0 %v1660
    %1693 = vmatpush1.msra.mxu0 %v1659
    %1694 = vmatprep.subr.mxu0 %v1657
    %1695 = vmatpush1.msra.mxu0 %v1656
    %1696 = vmatprep.subr.mxu0 %v1654
    %1697 = vmatpush1.msra.mxu0 %v1653
    %1698 = vmatprep.subr.mxu0 %v1651
    %1699 = vmatpush1.msra.mxu0 %v1650
    %1700 = vmatprep.subr.mxu0 %v1648
    %1701 = vmatpush1.msra.mxu0 %v1647
    %1702 = vmatprep.subr.mxu0 %v1645
    %1703 = vmatpush1.msra.mxu0 %v1644
    %1704 = vmatprep.subr.mxu0 %v1642
    %1705 = vmatpush1.msra.mxu0 %v1641
    %1706 = vmatprep.subr.mxu0 %v1639
    %1707 = vmatpush1.msra.mxu0 %v1638
    %1708 = vmatprep.subr.mxu0 %v1636
    %1709 = vmatpush1.msra.mxu0 %v1635
    %1710 = vmatprep.subr.mxu0 %v1633
    %1711 = vmatpush1.msra.mxu0 %v1632
    %1712 = vmatprep.subr.mxu0 0.0
    %1713 = vmatpush2.msra.mxu0 0.0
    %1714 = vmatprep.subr.mxu0 0.0
    %1715 = vmatpush2.msra.mxu0 0.0
    %1716 = vmatprep.subr.mxu0 0.0
    %1717 = vmatpush2.msra.mxu0 0.0
    %1718 = vmatprep.subr.mxu0 0.0
    %1719 = vmatpush2.msra.mxu0 0.0
    %1720 = vmatprep.subr.mxu0 0.0
    %1721 = vmatpush2.msra.mxu0 0.0
    %1722 = vmatprep.subr.mxu0 0.0
    %1723 = vmatpush2.msra.mxu0 0.0
    %1724 = vmatprep.subr.mxu0 0.0
    %1725 = vmatpush2.msra.mxu0 0.0
    %1726 = vmatprep.subr.mxu0 0.0
    %1727 = vmatpush2.msra.mxu0 0.0
    %1728 = vmatprep.subr.mxu0 0.0
    %1729 = vmatpush2.msra.mxu0 0.0
    %1730 = vmatprep.subr.mxu0 0.0
    %1731 = vmatpush2.msra.mxu0 0.0
    %1732 = vmatprep.subr.mxu0 0.0
    %1733 = vmatpush2.msra.mxu0 0.0
    %1734 = vmatprep.subr.mxu0 0.0
    %1735 = vmatpush2.msra.mxu0 0.0
    %1736 = vmatprep.subr.mxu0 0.0
    %1737 = vmatpush2.msra.mxu0 0.0
    %1738 = vmatprep.subr.mxu0 0.0
    %1739 = vmatpush2.msra.mxu0 0.0
    %1740 = vmatprep.subr.mxu0 0.0
    %1741 = vmatpush2.msra.mxu0 0.0
    %1742 = vmatprep.subr.mxu0 0.0
    %1743 = vmatpush2.msra.mxu0 0.0
    %1744 = vmatprep.mubr.f32.mxu0 0.0
    %1745 = vmatmul.mubr.f32.gmra.mxu0 %v1630
    %v1746 = vpop.f32.mrf.mxu0
    %v1747 = vadd.f32 0.0, %v1746
    %v1748 = vpop.f32.mrf.mxu0
    %v1749 = vadd.f32 0.0, %v1748
    %1750 = vmatprep.mubr.f32.mxu0 0.0
    %1751 = vmatmul.mubr.f32.gmra.mxu0 %v1631
    %v1752 = vpop.f32.mrf.mxu0
    %v1753 = vadd.f32 0.0, %v1752
    %v1754 = vpop.f32.mrf.mxu0
    %v1755 = vadd.f32 0.0, %v1754
    %1756 = vdwg.mxu0
    %1757 = vmatprep.subr.mxu0 0.0
    %1758 = vmatpush1.msra.mxu0 %v1679
    %1759 = vmatprep.subr.mxu0 0.0
    %1760 = vmatpush1.msra.mxu0 %v1676
    %1761 = vmatprep.subr.mxu0 0.0
    %1762 = vmatpush1.msra.mxu0 %v1673
    %1763 = vmatprep.subr.mxu0 0.0
    %1764 = vmatpush1.msra.mxu0 %v1670
    %1765 = vmatprep.subr.mxu0 0.0
    %1766 = vmatpush1.msra.mxu0 %v1667
    %1767 = vmatprep.subr.mxu0 0.0
    %1768 = vmatpush1.msra.mxu0 %v1664
    %1769 = vmatprep.subr.mxu0 0.0
    %1770 = vmatpush1.msra.mxu0 %v1661
    %1771 = vmatprep.subr.mxu0 0.0
    %1772 = vmatpush1.msra.mxu0 %v1658
    %1773 = vmatprep.subr.mxu0 0.0
    %1774 = vmatpush1.msra.mxu0 %v1655
    %1775 = vmatprep.subr.mxu0 0.0
    %1776 = vmatpush1.msra.mxu0 %v1652
    %1777 = vmatprep.subr.mxu0 0.0
    %1778 = vmatpush1.msra.mxu0 %v1649
    %1779 = vmatprep.subr.mxu0 0.0
    %1780 = vmatpush1.msra.mxu0 %v1646
    %1781 = vmatprep.subr.mxu0 0.0
    %1782 = vmatpush1.msra.mxu0 %v1643
    %1783 = vmatprep.subr.mxu0 0.0
    %1784 = vmatpush1.msra.mxu0 %v1640
    %1785 = vmatprep.subr.mxu0 0.0
    %1786 = vmatpush1.msra.mxu0 %v1637
    %1787 = vmatprep.subr.mxu0 0.0
    %1788 = vmatpush1.msra.mxu0 %v1634
    %1789 = vmatprep.subr.mxu0 0.0
    %1790 = vmatpush2.msra.mxu0 0.0
    %1791 = vmatprep.subr.mxu0 0.0
    %1792 = vmatpush2.msra.mxu0 0.0
    %1793 = vmatprep.subr.mxu0 0.0
    %1794 = vmatpush2.msra.mxu0 0.0
    %1795 = vmatprep.subr.mxu0 0.0
    %1796 = vmatpush2.msra.mxu0 0.0
    %1797 = vmatprep.subr.mxu0 0.0
    %1798 = vmatpush2.msra.mxu0 0.0
    %1799 = vmatprep.subr.mxu0 0.0
    %1800 = vmatpush2.msra.mxu0 0.0
    %1801 = vmatprep.subr.mxu0 0.0
    %1802 = vmatpush2.msra.mxu0 0.0
    %1803 = vmatprep.subr.mxu0 0.0
    %1804 = vmatpush2.msra.mxu0 0.0
    %1805 = vmatprep.subr.mxu0 0.0
    %1806 = vmatpush2.msra.mxu0 0.0
    %1807 = vmatprep.subr.mxu0 0.0
    %1808 = vmatpush2.msra.mxu0 0.0
    %1809 = vmatprep.subr.mxu0 0.0
    %1810 = vmatpush2.msra.mxu0 0.0
    %1811 = vmatprep.subr.mxu0 0.0
    %1812 = vmatpush2.msra.mxu0 0.0
    %1813 = vmatprep.subr.mxu0 0.0
    %1814 = vmatpush2.msra.mxu0 0.0
    %1815 = vmatprep.subr.mxu0 0.0
    %1816 = vmatpush2.msra.mxu0 0.0
    %1817 = vmatprep.subr.mxu0 0.0
    %1818 = vmatpush2.msra.mxu0 0.0
    %1819 = vmatprep.subr.mxu0 0.0
    %1820 = vmatpush2.msra.mxu0 0.0
    %1821 = vmatprep.mubr.f32.mxu0 0.0
    %1822 = vmatmul.mubr.f32.gmra.mxu0 %v1630
    %v1823 = vpop.f32.mrf.mxu0
    %v1824 = vadd.f32 0.0, %v1823
    %v1825 = vpop.f32.mrf.mxu0
    %1826 = vmatprep.mubr.f32.mxu0 0.0
    %1827 = vmatmul.mubr.f32.gmra.mxu0 %v1631
    %v1828 = vpop.f32.mrf.mxu0
    %v1829 = vadd.f32 0.0, %v1828
    %v1830 = vpop.f32.mrf.mxu0
    %1831 = vdwg.mxu0
    %v1833 = vsel %vm488, %v1747, 0
    %v1836 = vsel %vm488, %v1753, 0
    %v1839 = vsel %vm488, %v1749, 0
    %v1842 = vsel %vm488, %v1755, 0
    %1844 = vmatprep.subr.mxu0 0.0
    %1845 = vmatpush1.xpose.msra.mxu0 0.0
    %1846 = vmatprep.subr.mxu0 0.0
    %1847 = vmatpush1.xpose.msra.mxu0 0.0
    %1848 = vmatprep.subr.mxu0 0.0
    %1849 = vmatpush1.xpose.msra.mxu0 0.0
    %1850 = vmatprep.subr.mxu0 0.0
    %1851 = vmatpush1.xpose.msra.mxu0 0.0
    %1852 = vmatprep.subr.mxu0 0.0
    %1853 = vmatpush1.xpose.msra.mxu0 0.0
    %1854 = vmatprep.subr.mxu0 0.0
    %1855 = vmatpush1.xpose.msra.mxu0 0.0
    %1856 = vmatprep.subr.mxu0 0.0
    %1857 = vmatpush1.xpose.msra.mxu0 0.0
    %1858 = vmatprep.subr.mxu0 0.0
    %1859 = vmatpush1.xpose.msra.mxu0 0.0
    %1860 = vmatprep.subr.mxu0 0.0
    %1861 = vmatpush1.xpose.msra.mxu0 0.0
    %1862 = vmatprep.subr.mxu0 0.0
    %1863 = vmatpush1.xpose.msra.mxu0 0.0
    %1864 = vmatprep.subr.mxu0 0.0
    %1865 = vmatpush1.xpose.msra.mxu0 0.0
    %1866 = vmatprep.subr.mxu0 0.0
    %1867 = vmatpush1.xpose.msra.mxu0 0.0
    %1868 = vmatprep.subr.mxu0 0.0
    %1869 = vmatpush1.xpose.msra.mxu0 0.0
    %1870 = vmatprep.subr.mxu0 0.0
    %1871 = vmatpush1.xpose.msra.mxu0 0.0
    %1872 = vmatprep.subr.mxu0 0.0
    %1873 = vmatpush1.xpose.msra.mxu0 %v1842
    %1874 = vmatprep.subr.mxu0 0.0
    %1875 = vmatpush1.xpose.msra.mxu0 %v1839
    %1876 = vmatprep.subr.mxu0 0.0
    %1877 = vmatpush2.xpose.msra.mxu0 0.0
    %1878 = vmatprep.subr.mxu0 0.0
    %1879 = vmatpush2.xpose.msra.mxu0 0.0
    %1880 = vmatprep.subr.mxu0 0.0
    %1881 = vmatpush2.xpose.msra.mxu0 0.0
    %1882 = vmatprep.subr.mxu0 0.0
    %1883 = vmatpush2.xpose.msra.mxu0 0.0
    %1884 = vmatprep.subr.mxu0 0.0
    %1885 = vmatpush2.xpose.msra.mxu0 0.0
    %1886 = vmatprep.subr.mxu0 0.0
    %1887 = vmatpush2.xpose.msra.mxu0 0.0
    %1888 = vmatprep.subr.mxu0 0.0
    %1889 = vmatpush2.xpose.msra.mxu0 0.0
    %1890 = vmatprep.subr.mxu0 0.0
    %1891 = vmatpush2.xpose.msra.mxu0 0.0
    %1892 = vmatprep.subr.mxu0 0.0
    %1893 = vmatpush2.xpose.msra.mxu0 0.0
    %1894 = vmatprep.subr.mxu0 0.0
    %1895 = vmatpush2.xpose.msra.mxu0 0.0
    %1896 = vmatprep.subr.mxu0 0.0
    %1897 = vmatpush2.xpose.msra.mxu0 0.0
    %1898 = vmatprep.subr.mxu0 0.0
    %1899 = vmatpush2.xpose.msra.mxu0 0.0
    %1900 = vmatprep.subr.mxu0 0.0
    %1901 = vmatpush2.xpose.msra.mxu0 0.0
    %1902 = vmatprep.subr.mxu0 0.0
    %1903 = vmatpush2.xpose.msra.mxu0 0.0
    %1904 = vmatprep.subr.mxu0 0.0
    %1905 = vmatpush2.xpose.msra.mxu0 0.0
    %1906 = vmatprep.subr.mxu0 0.0
    %1907 = vmatpush2.xpose.msra.mxu0 0.0
    %1908 = vmatprep.mubr.f32.mxu0 0.0
    %1909 = vmatmul.mubr.f32.gmra.mxu0 %v1833
    %v1910 = vpop.f32.mrf.mxu0
    %v1911 = vadd.f32 0.0, %v1910
    %v1912 = vpop.f32.mrf.mxu0
    %1913 = vmatprep.mubr.f32.mxu0 0.0
    %1914 = vmatmul.mubr.f32.gmra.mxu0 %v1836
    %v1915 = vpop.f32.mrf.mxu0
    %v1916 = vadd.f32 0.0, %v1915
    %v1917 = vpop.f32.mrf.mxu0
    %1918 = vdwg.mxu0
    %v1919 = vmul.f32 %v1911, 0.088388346
    %v1920 = vmul.f32 %v1916, 0.088388346
    %v1921 = vadd.f32 %v1919, %v245
    %v1922 = vadd.f32 %v1920, %v246
    %v1923 = vsel %vm580, %v1921, -inf
    %1924 = vmax.xlane.f32.xlu0 %v1923
    %v1925 = vpop.xlane.xlu0 %1924
    %v1926 = vsel %vm580, %v1922, -inf
    %1927 = vmax.xlane.f32.xlu0 %v1926
    %v1928 = vpop.xlane.xlu0 %1927
    %v1929 = vsub.f32 %v1921, %v1925
    %v1930 = vsub.f32 %v1922, %v1928
    %v1931 = vmul.f32 %v1929, 1.442695
    %v1932 = vpow.pop %v1931
    %v1933 = vmul.f32 %v1930, 1.442695
    %v1934 = vpow.pop %v1933
    %v1935 = vsel %vm580, %v1932, 0.0
    %1936 = vadd.xlane.f32.xlu0 %v1935
    %v1937 = vpop.xlane.xlu0 %1936
    %v1938 = vsel %vm580, %v1934, 0.0
    %1939 = vadd.xlane.f32.xlu0 %v1938
    %v1940 = vpop.xlane.xlu0 %1939
    %v1941 = vrcp.pop %v1937
    %v1942 = vrcp.pop %v1940
    %v1943 = vmul.f32 %v1932, %v1941
    %v1944 = vmul.f32 %v1934, %v1942
    %v1946 = vsel %vm580, %v1943, 0
    %v1949 = vsel %vm580, %v1944, 0
    %1951 = vmatprep.subr.mxu0 0.0
    %1952 = vmatpush1.msra.mxu0 0.0
    %1953 = vmatprep.subr.mxu0 0.0
    %1954 = vmatpush1.msra.mxu0 0.0
    %1955 = vmatprep.subr.mxu0 0.0
    %1956 = vmatpush1.msra.mxu0 0.0
    %1957 = vmatprep.subr.mxu0 0.0
    %1958 = vmatpush1.msra.mxu0 0.0
    %1959 = vmatprep.subr.mxu0 0.0
    %1960 = vmatpush1.msra.mxu0 0.0
    %1961 = vmatprep.subr.mxu0 0.0
    %1962 = vmatpush1.msra.mxu0 0.0
    %1963 = vmatprep.subr.mxu0 0.0
    %1964 = vmatpush1.msra.mxu0 0.0
    %1965 = vmatprep.subr.mxu0 0.0
    %1966 = vmatpush1.msra.mxu0 0.0
    %1967 = vmatprep.subr.mxu0 0.0
    %1968 = vmatpush1.msra.mxu0 0.0
    %1969 = vmatprep.subr.mxu0 0.0
    %1970 = vmatpush1.msra.mxu0 0.0
    %1971 = vmatprep.subr.mxu0 0.0
    %1972 = vmatpush1.msra.mxu0 0.0
    %1973 = vmatprep.subr.mxu0 0.0
    %1974 = vmatpush1.msra.mxu0 0.0
    %1975 = vmatprep.subr.mxu0 0.0
    %1976 = vmatpush1.msra.mxu0 0.0
    %1977 = vmatprep.subr.mxu0 0.0
    %1978 = vmatpush1.msra.mxu0 0.0
    %1979 = vmatprep.subr.mxu0 0.0
    %1980 = vmatpush1.msra.mxu0 %v1829
    %1981 = vmatprep.subr.mxu0 0.0
    %1982 = vmatpush1.msra.mxu0 %v1824
    %1983 = vmatprep.subr.mxu0 0.0
    %1984 = vmatpush2.msra.mxu0 0.0
    %1985 = vmatprep.subr.mxu0 0.0
    %1986 = vmatpush2.msra.mxu0 0.0
    %1987 = vmatprep.subr.mxu0 0.0
    %1988 = vmatpush2.msra.mxu0 0.0
    %1989 = vmatprep.subr.mxu0 0.0
    %1990 = vmatpush2.msra.mxu0 0.0
    %1991 = vmatprep.subr.mxu0 0.0
    %1992 = vmatpush2.msra.mxu0 0.0
    %1993 = vmatprep.subr.mxu0 0.0
    %1994 = vmatpush2.msra.mxu0 0.0
    %1995 = vmatprep.subr.mxu0 0.0
    %1996 = vmatpush2.msra.mxu0 0.0
    %1997 = vmatprep.subr.mxu0 0.0
    %1998 = vmatpush2.msra.mxu0 0.0
    %1999 = vmatprep.subr.mxu0 0.0
    %2000 = vmatpush2.msra.mxu0 0.0
    %2001 = vmatprep.subr.mxu0 0.0
    %2002 = vmatpush2.msra.mxu0 0.0
    %2003 = vmatprep.subr.mxu0 0.0
    %2004 = vmatpush2.msra.mxu0 0.0
    %2005 = vmatprep.subr.mxu0 0.0
    %2006 = vmatpush2.msra.mxu0 0.0
    %2007 = vmatprep.subr.mxu0 0.0
    %2008 = vmatpush2.msra.mxu0 0.0
    %2009 = vmatprep.subr.mxu0 0.0
    %2010 = vmatpush2.msra.mxu0 0.0
    %2011 = vmatprep.subr.mxu0 0.0
    %2012 = vmatpush2.msra.mxu0 0.0
    %2013 = vmatprep.subr.mxu0 0.0
    %2014 = vmatpush2.msra.mxu0 0.0
    %2015 = vmatprep.mubr.f32.mxu0 0.0
    %2016 = vmatmul.mubr.f32.gmra.mxu0 %v1946
    %v2017 = vpop.f32.mrf.mxu0
    %v2018 = vadd.f32 0.0, %v2017
    %v2019 = vpop.f32.mrf.mxu0
    %2020 = vmatprep.mubr.f32.mxu0 0.0
    %2021 = vmatmul.mubr.f32.gmra.mxu0 %v1949
    %v2022 = vpop.f32.mrf.mxu0
    %v2023 = vadd.f32 0.0, %v2022
    %v2024 = vpop.f32.mrf.mxu0
    %2025 = vdwg.mxu0
    %v2026 = vld [vmem:[%s16] sm:$0xff]
    %v2027 = vld [vmem:[%s16 + $0x8] sm:$0xff]
    %v2028 = vld [vmem:[%s16 + $0x10] sm:$0xff]
    %v2029 = vld [vmem:[%s16 + $0x18] sm:$0xff]
    %v2030 = vld [vmem:[%s16 + $0x20] sm:$0xff]
    %v2031 = vld [vmem:[%s16 + $0x28] sm:$0xff]
    %v2032 = vld [vmem:[%s16 + $0x30] sm:$0xff]
    %v2033 = vld [vmem:[%s16 + $0x38] sm:$0xff]
    %2034 = vrot.lane.b32.xlu0 %v1747, 64
    %v2035 = vpop.permute.xlu0 %2034
    %2036 = vrot.lane.b32.xlu0 %v1753, 64
    %v2037 = vpop.permute.xlu0 %2036
    %2038 = vrot.lane.b32.xlu0 %v1749, 64
    %v2039 = vpop.permute.xlu0 %2038
    %2040 = vrot.lane.b32.xlu0 %v1755, 64
    %v2041 = vpop.permute.xlu0 %2040
    %v2042 = vsel %vm488, %v2035, 0
    %v2044 = vsel %vm488, %v2037, 0
    %v2046 = vsel %vm488, %v2039, 0
    %v2048 = vsel %vm488, %v2041, 0
    %2050 = vmatprep.subr.mxu0 0.0
    %2051 = vmatpush1.xpose.msra.mxu0 0.0
    %2052 = vmatprep.subr.mxu0 0.0
    %2053 = vmatpush1.xpose.msra.mxu0 0.0
    %2054 = vmatprep.subr.mxu0 0.0
    %2055 = vmatpush1.xpose.msra.mxu0 0.0
    %2056 = vmatprep.subr.mxu0 0.0
    %2057 = vmatpush1.xpose.msra.mxu0 0.0
    %2058 = vmatprep.subr.mxu0 0.0
    %2059 = vmatpush1.xpose.msra.mxu0 0.0
    %2060 = vmatprep.subr.mxu0 0.0
    %2061 = vmatpush1.xpose.msra.mxu0 0.0
    %2062 = vmatprep.subr.mxu0 0.0
    %2063 = vmatpush1.xpose.msra.mxu0 0.0
    %2064 = vmatprep.subr.mxu0 0.0
    %2065 = vmatpush1.xpose.msra.mxu0 0.0
    %2066 = vmatprep.subr.mxu0 0.0
    %2067 = vmatpush1.xpose.msra.mxu0 0.0
    %2068 = vmatprep.subr.mxu0 0.0
    %2069 = vmatpush1.xpose.msra.mxu0 0.0
    %2070 = vmatprep.subr.mxu0 0.0
    %2071 = vmatpush1.xpose.msra.mxu0 0.0
    %2072 = vmatprep.subr.mxu0 0.0
    %2073 = vmatpush1.xpose.msra.mxu0 0.0
    %2074 = vmatprep.subr.mxu0 0.0
    %2075 = vmatpush1.xpose.msra.mxu0 0.0
    %2076 = vmatprep.subr.mxu0 0.0
    %2077 = vmatpush1.xpose.msra.mxu0 0.0
    %2078 = vmatprep.subr.mxu0 0.0
    %2079 = vmatpush1.xpose.msra.mxu0 %v2048
    %2080 = vmatprep.subr.mxu0 0.0
    %2081 = vmatpush1.xpose.msra.mxu0 %v2046
    %2082 = vmatprep.subr.mxu0 0.0
    %2083 = vmatpush2.xpose.msra.mxu0 0.0
    %2084 = vmatprep.subr.mxu0 0.0
    %2085 = vmatpush2.xpose.msra.mxu0 0.0
    %2086 = vmatprep.subr.mxu0 0.0
    %2087 = vmatpush2.xpose.msra.mxu0 0.0
    %2088 = vmatprep.subr.mxu0 0.0
    %2089 = vmatpush2.xpose.msra.mxu0 0.0
    %2090 = vmatprep.subr.mxu0 0.0
    %2091 = vmatpush2.xpose.msra.mxu0 0.0
    %2092 = vmatprep.subr.mxu0 0.0
    %2093 = vmatpush2.xpose.msra.mxu0 0.0
    %2094 = vmatprep.subr.mxu0 0.0
    %2095 = vmatpush2.xpose.msra.mxu0 0.0
    %2096 = vmatprep.subr.mxu0 0.0
    %2097 = vmatpush2.xpose.msra.mxu0 0.0
    %2098 = vmatprep.subr.mxu0 0.0
    %2099 = vmatpush2.xpose.msra.mxu0 0.0
    %2100 = vmatprep.subr.mxu0 0.0
    %2101 = vmatpush2.xpose.msra.mxu0 0.0
    %2102 = vmatprep.subr.mxu0 0.0
    %2103 = vmatpush2.xpose.msra.mxu0 0.0
    %2104 = vmatprep.subr.mxu0 0.0
    %2105 = vmatpush2.xpose.msra.mxu0 0.0
    %2106 = vmatprep.subr.mxu0 0.0
    %2107 = vmatpush2.xpose.msra.mxu0 0.0
    %2108 = vmatprep.subr.mxu0 0.0
    %2109 = vmatpush2.xpose.msra.mxu0 0.0
    %2110 = vmatprep.subr.mxu0 0.0
    %2111 = vmatpush2.xpose.msra.mxu0 0.0
    %2112 = vmatprep.subr.mxu0 0.0
    %2113 = vmatpush2.xpose.msra.mxu0 0.0
    %2114 = vmatprep.mubr.f32.mxu0 0.0
    %2115 = vmatmul.mubr.f32.gmra.mxu0 %v2042
    %v2116 = vpop.f32.mrf.mxu0
    %v2117 = vadd.f32 0.0, %v2116
    %v2118 = vpop.f32.mrf.mxu0
    %2119 = vmatprep.mubr.f32.mxu0 0.0
    %2120 = vmatmul.mubr.f32.gmra.mxu0 %v2044
    %v2121 = vpop.f32.mrf.mxu0
    %v2122 = vadd.f32 0.0, %v2121
    %v2123 = vpop.f32.mrf.mxu0
    %2124 = vdwg.mxu0
    %v2125 = vmul.f32 %v2117, 0.088388346
    %v2126 = vmul.f32 %v2122, 0.088388346
    %v2127 = vadd.f32 %v2125, %v245
    %v2128 = vadd.f32 %v2126, %v246
    %v2129 = vsel %vm580, %v2127, -inf
    %2130 = vmax.xlane.f32.xlu0 %v2129
    %v2131 = vpop.xlane.xlu0 %2130
    %v2132 = vsel %vm580, %v2128, -inf
    %2133 = vmax.xlane.f32.xlu0 %v2132
    %v2134 = vpop.xlane.xlu0 %2133
    %v2135 = vsub.f32 %v2127, %v2131
    %v2136 = vsub.f32 %v2128, %v2134
    %v2137 = vmul.f32 %v2135, 1.442695
    %v2138 = vpow.pop %v2137
    %v2139 = vmul.f32 %v2136, 1.442695
    %v2140 = vpow.pop %v2139
    %v2141 = vsel %vm580, %v2138, 0.0
    %2142 = vadd.xlane.f32.xlu0 %v2141
    %v2143 = vpop.xlane.xlu0 %2142
    %v2144 = vsel %vm580, %v2140, 0.0
    %2145 = vadd.xlane.f32.xlu0 %v2144
    %v2146 = vpop.xlane.xlu0 %2145
    %v2147 = vrcp.pop %v2143
    %v2148 = vrcp.pop %v2146
    %v2149 = vmul.f32 %v2138, %v2147
    %v2150 = vmul.f32 %v2140, %v2148
    %2153 = vrot.lane.b32.xlu0 %v1824, 64
    %v2154 = vpop.permute.xlu0 %2153
    %2155 = vrot.lane.b32.xlu0 %v1829, 64
    %v2156 = vpop.permute.xlu0 %2155
    %v2160 = vsel %vm580, %v2149, 0
    %v2163 = vsel %vm580, %v2150, 0
    %2165 = vmatprep.subr.mxu0 0.0
    %2166 = vmatpush1.msra.mxu0 0.0
    %2167 = vmatprep.subr.mxu0 0.0
    %2168 = vmatpush1.msra.mxu0 0.0
    %2169 = vmatprep.subr.mxu0 0.0
    %2170 = vmatpush1.msra.mxu0 0.0
    %2171 = vmatprep.subr.mxu0 0.0
    %2172 = vmatpush1.msra.mxu0 0.0
    %2173 = vmatprep.subr.mxu0 0.0
    %2174 = vmatpush1.msra.mxu0 0.0
    %2175 = vmatprep.subr.mxu0 0.0
    %2176 = vmatpush1.msra.mxu0 0.0
    %2177 = vmatprep.subr.mxu0 0.0
    %2178 = vmatpush1.msra.mxu0 0.0
    %2179 = vmatprep.subr.mxu0 0.0
    %2180 = vmatpush1.msra.mxu0 0.0
    %2181 = vmatprep.subr.mxu0 0.0
    %2182 = vmatpush1.msra.mxu0 0.0
    %2183 = vmatprep.subr.mxu0 0.0
    %2184 = vmatpush1.msra.mxu0 0.0
    %2185 = vmatprep.subr.mxu0 0.0
    %2186 = vmatpush1.msra.mxu0 0.0
    %2187 = vmatprep.subr.mxu0 0.0
    %2188 = vmatpush1.msra.mxu0 0.0
    %2189 = vmatprep.subr.mxu0 0.0
    %2190 = vmatpush1.msra.mxu0 0.0
    %2191 = vmatprep.subr.mxu0 0.0
    %2192 = vmatpush1.msra.mxu0 0.0
    %2193 = vmatprep.subr.mxu0 0.0
    %2194 = vmatpush1.msra.mxu0 %v2156
    %2195 = vmatprep.subr.mxu0 0.0
    %2196 = vmatpush1.msra.mxu0 %v2154
    %2197 = vmatprep.subr.mxu0 0.0
    %2198 = vmatpush2.msra.mxu0 0.0
    %2199 = vmatprep.subr.mxu0 0.0
    %2200 = vmatpush2.msra.mxu0 0.0
    %2201 = vmatprep.subr.mxu0 0.0
    %2202 = vmatpush2.msra.mxu0 0.0
    %2203 = vmatprep.subr.mxu0 0.0
    %2204 = vmatpush2.msra.mxu0 0.0
    %2205 = vmatprep.subr.mxu0 0.0
    %2206 = vmatpush2.msra.mxu0 0.0
    %2207 = vmatprep.subr.mxu0 0.0
    %2208 = vmatpush2.msra.mxu0 0.0
    %2209 = vmatprep.subr.mxu0 0.0
    %2210 = vmatpush2.msra.mxu0 0.0
    %2211 = vmatprep.subr.mxu0 0.0
    %2212 = vmatpush2.msra.mxu0 0.0
    %2213 = vmatprep.subr.mxu0 0.0
    %2214 = vmatpush2.msra.mxu0 0.0
    %2215 = vmatprep.subr.mxu0 0.0
    %2216 = vmatpush2.msra.mxu0 0.0
    %2217 = vmatprep.subr.mxu0 0.0
    %2218 = vmatpush2.msra.mxu0 0.0
    %2219 = vmatprep.subr.mxu0 0.0
    %2220 = vmatpush2.msra.mxu0 0.0
    %2221 = vmatprep.subr.mxu0 0.0
    %2222 = vmatpush2.msra.mxu0 0.0
    %2223 = vmatprep.subr.mxu0 0.0
    %2224 = vmatpush2.msra.mxu0 0.0
    %2225 = vmatprep.subr.mxu0 0.0
    %2226 = vmatpush2.msra.mxu0 0.0
    %2227 = vmatprep.subr.mxu0 0.0
    %2228 = vmatpush2.msra.mxu0 0.0
    %2229 = vmatprep.mubr.f32.mxu0 0.0
    %2230 = vmatmul.mubr.f32.gmra.mxu0 %v2160
    %v2231 = vpop.f32.mrf.mxu0
    %v2232 = vadd.f32 0.0, %v2231
    %v2233 = vpop.f32.mrf.mxu0
    %2234 = vmatprep.mubr.f32.mxu0 0.0
    %2235 = vmatmul.mubr.f32.gmra.mxu0 %v2163
    %v2236 = vpop.f32.mrf.mxu0
    %v2237 = vadd.f32 0.0, %v2236
    %v2238 = vpop.f32.mrf.mxu0
    %2239 = vdwg.mxu0
    %v2240 = vld [vmem:[%s16 + $0x40] sm:$0xff]
    %v2241 = vld [vmem:[%s16 + $0x48] sm:$0xff]
    %v2242 = vld [vmem:[%s16 + $0x50] sm:$0xff]
    %v2243 = vld [vmem:[%s16 + $0x58] sm:$0xff]
    %v2244 = vld [vmem:[%s16 + $0x60] sm:$0xff]
    %v2245 = vld [vmem:[%s16 + $0x68] sm:$0xff]
    %v2246 = vld [vmem:[%s16 + $0x70] sm:$0xff]
    %v2247 = vld [vmem:[%s16 + $0x78] sm:$0xff]
    %v2249 = vsel %vm488, %v2232, 0
    %v2252 = vsel %vm488, %v2237, 0
    %2254 = vmatprep.subr.mxu0 0.0
    %2255 = vmatpush1.msra.mxu0 0.0
    %2256 = vmatprep.subr.mxu0 0.0
    %2257 = vmatpush1.msra.mxu0 0.0
    %2258 = vmatprep.subr.mxu0 0.0
    %2259 = vmatpush1.msra.mxu0 0.0
    %2260 = vmatprep.subr.mxu0 0.0
    %2261 = vmatpush1.msra.mxu0 0.0
    %2262 = vmatprep.subr.mxu0 0.0
    %2263 = vmatpush1.msra.mxu0 0.0
    %2264 = vmatprep.subr.mxu0 0.0
    %2265 = vmatpush1.msra.mxu0 0.0
    %2266 = vmatprep.subr.mxu0 0.0
    %2267 = vmatpush1.msra.mxu0 0.0
    %2268 = vmatprep.subr.mxu0 0.0
    %2269 = vmatpush1.msra.mxu0 0.0
    %2270 = vmatprep.subr.mxu0 0.0
    %2271 = vmatpush1.msra.mxu0 %v2247
    %2272 = vmatprep.subr.mxu0 0.0
    %2273 = vmatpush1.msra.mxu0 %v2246
    %2274 = vmatprep.subr.mxu0 0.0
    %2275 = vmatpush1.msra.mxu0 %v2245
    %2276 = vmatprep.subr.mxu0 0.0
    %2277 = vmatpush1.msra.mxu0 %v2244
    %2278 = vmatprep.subr.mxu0 0.0
    %2279 = vmatpush1.msra.mxu0 %v2243
    %2280 = vmatprep.subr.mxu0 0.0
    %2281 = vmatpush1.msra.mxu0 %v2242
    %2282 = vmatprep.subr.mxu0 0.0
    %2283 = vmatpush1.msra.mxu0 %v2241
    %2284 = vmatprep.subr.mxu0 0.0
    %2285 = vmatpush1.msra.mxu0 %v2240
    %2286 = vmatprep.subr.mxu0 0.0
    %2287 = vmatpush2.msra.mxu0 0.0
    %2288 = vmatprep.subr.mxu0 0.0
    %2289 = vmatpush2.msra.mxu0 0.0
    %2290 = vmatprep.subr.mxu0 0.0
    %2291 = vmatpush2.msra.mxu0 0.0
    %2292 = vmatprep.subr.mxu0 0.0
    %2293 = vmatpush2.msra.mxu0 0.0
    %2294 = vmatprep.subr.mxu0 0.0
    %2295 = vmatpush2.msra.mxu0 0.0
    %2296 = vmatprep.subr.mxu0 0.0
    %2297 = vmatpush2.msra.mxu0 0.0
    %2298 = vmatprep.subr.mxu0 0.0
    %2299 = vmatpush2.msra.mxu0 0.0
    %2300 = vmatprep.subr.mxu0 0.0
    %2301 = vmatpush2.msra.mxu0 0.0
    %2302 = vmatprep.subr.mxu0 0.0
    %2303 = vmatpush2.msra.mxu0 0.0
    %2304 = vmatprep.subr.mxu0 0.0
    %2305 = vmatpush2.msra.mxu0 0.0
    %2306 = vmatprep.subr.mxu0 0.0
    %2307 = vmatpush2.msra.mxu0 0.0
    %2308 = vmatprep.subr.mxu0 0.0
    %2309 = vmatpush2.msra.mxu0 0.0
    %2310 = vmatprep.subr.mxu0 0.0
    %2311 = vmatpush2.msra.mxu0 0.0
    %2312 = vmatprep.subr.mxu0 0.0
    %2313 = vmatpush2.msra.mxu0 0.0
    %2314 = vmatprep.subr.mxu0 0.0
    %2315 = vmatpush2.msra.mxu0 0.0
    %2316 = vmatprep.subr.mxu0 0.0
    %2317 = vmatpush2.msra.mxu0 0.0
    %2318 = vmatprep.mubr.f32.mxu0 0.0
    %2319 = vmatmul.mubr.f32.gmra.mxu0 %v2249
    %v2320 = vpop.f32.mrf.mxu0
    %v2321 = vadd.f32 0.0, %v2320
    %v2322 = vpop.f32.mrf.mxu0
    %2323 = vmatprep.mubr.f32.mxu0 0.0
    %2324 = vmatmul.mubr.f32.gmra.mxu0 %v2252
    %v2325 = vpop.f32.mrf.mxu0
    %v2326 = vadd.f32 0.0, %v2325
    %v2327 = vpop.f32.mrf.mxu0
    %2328 = vdwg.mxu0
    %v2330 = vsel %vm488, %v2018, 0
    %v2333 = vsel %vm488, %v2023, 0
    %2335 = vmatprep.subr.mxu0 0.0
    %2336 = vmatpush1.msra.mxu0 0.0
    %2337 = vmatprep.subr.mxu0 0.0
    %2338 = vmatpush1.msra.mxu0 0.0
    %2339 = vmatprep.subr.mxu0 0.0
    %2340 = vmatpush1.msra.mxu0 0.0
    %2341 = vmatprep.subr.mxu0 0.0
    %2342 = vmatpush1.msra.mxu0 0.0
    %2343 = vmatprep.subr.mxu0 0.0
    %2344 = vmatpush1.msra.mxu0 0.0
    %2345 = vmatprep.subr.mxu0 0.0
    %2346 = vmatpush1.msra.mxu0 0.0
    %2347 = vmatprep.subr.mxu0 0.0
    %2348 = vmatpush1.msra.mxu0 0.0
    %2349 = vmatprep.subr.mxu0 0.0
    %2350 = vmatpush1.msra.mxu0 0.0
    %2351 = vmatprep.subr.mxu0 0.0
    %2352 = vmatpush1.msra.mxu0 %v2033
    %2353 = vmatprep.subr.mxu0 0.0
    %2354 = vmatpush1.msra.mxu0 %v2032
    %2355 = vmatprep.subr.mxu0 0.0
    %2356 = vmatpush1.msra.mxu0 %v2031
    %2357 = vmatprep.subr.mxu0 0.0
    %2358 = vmatpush1.msra.mxu0 %v2030
    %2359 = vmatprep.subr.mxu0 0.0
    %2360 = vmatpush1.msra.mxu0 %v2029
    %2361 = vmatprep.subr.mxu0 0.0
    %2362 = vmatpush1.msra.mxu0 %v2028
    %2363 = vmatprep.subr.mxu0 0.0
    %2364 = vmatpush1.msra.mxu0 %v2027
    %2365 = vmatprep.subr.mxu0 0.0
    %2366 = vmatpush1.msra.mxu0 %v2026
    %2367 = vmatprep.subr.mxu0 0.0
    %2368 = vmatpush2.msra.mxu0 0.0
    %2369 = vmatprep.subr.mxu0 0.0
    %2370 = vmatpush2.msra.mxu0 0.0
    %2371 = vmatprep.subr.mxu0 0.0
    %2372 = vmatpush2.msra.mxu0 0.0
    %2373 = vmatprep.subr.mxu0 0.0
    %2374 = vmatpush2.msra.mxu0 0.0
    %2375 = vmatprep.subr.mxu0 0.0
    %2376 = vmatpush2.msra.mxu0 0.0
    %2377 = vmatprep.subr.mxu0 0.0
    %2378 = vmatpush2.msra.mxu0 0.0
    %2379 = vmatprep.subr.mxu0 0.0
    %2380 = vmatpush2.msra.mxu0 0.0
    %2381 = vmatprep.subr.mxu0 0.0
    %2382 = vmatpush2.msra.mxu0 0.0
    %2383 = vmatprep.subr.mxu0 0.0
    %2384 = vmatpush2.msra.mxu0 0.0
    %2385 = vmatprep.subr.mxu0 0.0
    %2386 = vmatpush2.msra.mxu0 0.0
    %2387 = vmatprep.subr.mxu0 0.0
    %2388 = vmatpush2.msra.mxu0 0.0
    %2389 = vmatprep.subr.mxu0 0.0
    %2390 = vmatpush2.msra.mxu0 0.0
    %2391 = vmatprep.subr.mxu0 0.0
    %2392 = vmatpush2.msra.mxu0 0.0
    %2393 = vmatprep.subr.mxu0 0.0
    %2394 = vmatpush2.msra.mxu0 0.0
    %2395 = vmatprep.subr.mxu0 0.0
    %2396 = vmatpush2.msra.mxu0 0.0
    %2397 = vmatprep.subr.mxu0 0.0
    %2398 = vmatpush2.msra.mxu0 0.0
    %2399 = vmatprep.mubr.f32.mxu0 0.0
    %2400 = vmatmul.mubr.f32.gmra.mxu0 %v2330
    %v2401 = vpop.f32.mrf.mxu0
    %v2402 = vadd.f32 %v2321, %v2401
    %v2403 = vpop.f32.mrf.mxu0
    %2404 = vmatprep.mubr.f32.mxu0 0.0
    %2405 = vmatmul.mubr.f32.gmra.mxu0 %v2333
    %v2406 = vpop.f32.mrf.mxu0
    %v2407 = vadd.f32 %v2326, %v2406
    %v2408 = vpop.f32.mrf.mxu0
    %2409 = vdwg.mxu0
    %v2410 = vadd.f32 %v1590, %v2402
    %v2411 = vadd.f32 %v1591, %v2407
    %v2412 = vld [vmem:[%s17] sm:$0x1]
    %v2414 = vlaneseq
    %v2415 = vshrl.u32 %v2414, 7
    %v2416 = vsub.s32 0, %v2415
    %v2417 = vrot.slane %v2412, %v2416
    %v2419 = vadd.f32 %v2410, %v2417
    %v2420 = vadd.f32 %v2411, %v2417
    %v2421 = vld [vmem:[%s18] sm:$0x1]
    %v2422 = vld [vmem:[%s19] sm:$0x1]
    %2423 = vadd.xlane.f32.xlu0 %v2419
    %v2424 = vpop.xlane.xlu0 %2423
    %2425 = vadd.xlane.f32.xlu0 %v2420
    %v2426 = vpop.xlane.xlu0 %2425
    %v2427 = vmul.f32 %v2424, %v253
    %v2428 = vmul.f32 %v2426, %v253
    %v2429 = vsub.f32 %v2419, %v2427
    %v2430 = vsub.f32 %v2420, %v2428
    %v2431 = vmul.f32 %v2429, %v2429
    %v2432 = vmul.f32 %v2430, %v2430
    %2433 = vadd.xlane.f32.xlu0 %v2431
    %v2434 = vpop.xlane.xlu0 %2433
    %2435 = vadd.xlane.f32.xlu0 %v2432
    %v2436 = vpop.xlane.xlu0 %2435
    %v2437 = vmul.f32 %v2434, %v253
    %v2438 = vmul.f32 %v2436, %v253
    %v2439 = vadd.f32 %v2437, 1e-05
    %v2440 = vadd.f32 %v2438, 1e-05
    %v2441 = vrsqrt.pop %v2439
    %v2442 = vrsqrt.pop %v2440
    %v2443 = vmul.f32 %v2429, %v2441
    %v2444 = vmul.f32 %v2430, %v2442
    %v2446 = vlaneseq
    %v2447 = vshrl.u32 %v2446, 7
    %v2448 = vsub.s32 0, %v2447
    %v2449 = vrot.slane %v2421, %v2448
    %v2451 = vmul.f32 %v2443, %v2449
    %v2452 = vmul.f32 %v2444, %v2449
    %v2454 = vlaneseq
    %v2455 = vshrl.u32 %v2454, 7
    %v2456 = vsub.s32 0, %v2455
    %v2457 = vrot.slane %v2422, %v2456
    %v2459 = vadd.f32 %v2451, %v2457
    %v2460 = vadd.f32 %v2452, %v2457
    %v2461 = vld [vmem:[#allocation17] sm:$0xff]
    %v2462 = vld [vmem:[#allocation17 + $0x8] sm:$0xff]
    %v2463 = vld [vmem:[#allocation17 + $0x10] sm:$0xff]
    %v2464 = vld [vmem:[#allocation17 + $0x18] sm:$0xff]
    %v2465 = vld [vmem:[#allocation17 + $0x20] sm:$0xff]
    %v2466 = vld [vmem:[#allocation17 + $0x28] sm:$0xff]
    %v2467 = vld [vmem:[#allocation17 + $0x30] sm:$0xff]
    %v2468 = vld [vmem:[#allocation17 + $0x38] sm:$0xff]
    %v2469 = vld [vmem:[#allocation17 + $0x40] sm:$0xff]
    %v2470 = vld [vmem:[#allocation17 + $0x48] sm:$0xff]
    %v2471 = vld [vmem:[#allocation17 + $0x50] sm:$0xff]
    %v2472 = vld [vmem:[#allocation17 + $0x58] sm:$0xff]
    %v2473 = vld [vmem:[#allocation17 + $0x60] sm:$0xff]
    %v2474 = vld [vmem:[#allocation17 + $0x68] sm:$0xff]
    %v2475 = vld [vmem:[#allocation17 + $0x70] sm:$0xff]
    %v2476 = vld [vmem:[#allocation17 + $0x78] sm:$0xff]
    %v2477 = vld [vmem:[#allocation17 + $0x80] sm:$0xff]
    %v2478 = vld [vmem:[#allocation17 + $0x88] sm:$0xff]
    %v2479 = vld [vmem:[#allocation17 + $0x90] sm:$0xff]
    %v2480 = vld [vmem:[#allocation17 + $0x98] sm:$0xff]
    %v2481 = vld [vmem:[#allocation17 + $0xa0] sm:$0xff]
    %v2482 = vld [vmem:[#allocation17 + $0xa8] sm:$0xff]
    %v2483 = vld [vmem:[#allocation17 + $0xb0] sm:$0xff]
    %v2484 = vld [vmem:[#allocation17 + $0xb8] sm:$0xff]
    %v2485 = vld [vmem:[#allocation17 + $0xc0] sm:$0xff]
    %v2486 = vld [vmem:[#allocation17 + $0xc8] sm:$0xff]
    %v2487 = vld [vmem:[#allocation17 + $0xd0] sm:$0xff]
    %v2488 = vld [vmem:[#allocation17 + $0xd8] sm:$0xff]
    %v2489 = vld [vmem:[#allocation17 + $0xe0] sm:$0xff]
    %v2490 = vld [vmem:[#allocation17 + $0xe8] sm:$0xff]
    %v2491 = vld [vmem:[#allocation17 + $0xf0] sm:$0xff]
    %v2492 = vld [vmem:[#allocation17 + $0xf8] sm:$0xff]
    %v2493 = vld [vmem:[#allocation17 + $0x100] sm:$0xff]
    %v2494 = vld [vmem:[#allocation17 + $0x108] sm:$0xff]
    %v2495 = vld [vmem:[#allocation17 + $0x110] sm:$0xff]
    %v2496 = vld [vmem:[#allocation17 + $0x118] sm:$0xff]
    %v2497 = vld [vmem:[#allocation17 + $0x120] sm:$0xff]
    %v2498 = vld [vmem:[#allocation17 + $0x128] sm:$0xff]
    %v2499 = vld [vmem:[#allocation17 + $0x130] sm:$0xff]
    %v2500 = vld [vmem:[#allocation17 + $0x138] sm:$0xff]
    %v2501 = vld [vmem:[#allocation17 + $0x140] sm:$0xff]
    %v2502 = vld [vmem:[#allocation17 + $0x148] sm:$0xff]
    %v2503 = vld [vmem:[#allocation17 + $0x150] sm:$0xff]
    %v2504 = vld [vmem:[#allocation17 + $0x158] sm:$0xff]
    %v2505 = vld [vmem:[#allocation17 + $0x160] sm:$0xff]
    %v2506 = vld [vmem:[#allocation17 + $0x168] sm:$0xff]
    %v2507 = vld [vmem:[#allocation17 + $0x170] sm:$0xff]
    %v2508 = vld [vmem:[#allocation17 + $0x178] sm:$0xff]
    %v2509 = vld [vmem:[#allocation17 + $0x180] sm:$0xff]
    %v2510 = vld [vmem:[#allocation17 + $0x188] sm:$0xff]
    %v2511 = vld [vmem:[#allocation17 + $0x190] sm:$0xff]
    %v2512 = vld [vmem:[#allocation17 + $0x198] sm:$0xff]
    %v2513 = vld [vmem:[#allocation17 + $0x1a0] sm:$0xff]
    %v2514 = vld [vmem:[#allocation17 + $0x1a8] sm:$0xff]
    %v2515 = vld [vmem:[#allocation17 + $0x1b0] sm:$0xff]
    %v2516 = vld [vmem:[#allocation17 + $0x1b8] sm:$0xff]
    %v2517 = vld [vmem:[#allocation17 + $0x1c0] sm:$0xff]
    %v2518 = vld [vmem:[#allocation17 + $0x1c8] sm:$0xff]
    %v2519 = vld [vmem:[#allocation17 + $0x1d0] sm:$0xff]
    %v2520 = vld [vmem:[#allocation17 + $0x1d8] sm:$0xff]
    %v2521 = vld [vmem:[#allocation17 + $0x1e0] sm:$0xff]
    %v2522 = vld [vmem:[#allocation17 + $0x1e8] sm:$0xff]
    %v2523 = vld [vmem:[#allocation17 + $0x1f0] sm:$0xff]
    %v2524 = vld [vmem:[#allocation17 + $0x1f8] sm:$0xff]
    %v2525 = vld [vmem:[%s21] sm:$0xf]
    %v2527 = vlaneseq
    %v2528 = vshrl.u32 %v2527, 7
    %v2529 = vsub.s32 0, %v2528
    %v2530 = vrot.slane %v2525, %v2529
    %v2531 = vlaneseq
    %v2532 = vshrl.u32 %v2531, 7
    %v2533 = vsub.s32 1, %v2532
    %v2534 = vrot.slane %v2525, %v2533
    %v2535 = vlaneseq
    %v2536 = vshrl.u32 %v2535, 7
    %v2537 = vsub.s32 2, %v2536
    %v2538 = vrot.slane %v2525, %v2537
    %v2539 = vlaneseq
    %v2540 = vshrl.u32 %v2539, 7
    %v2541 = vsub.s32 3, %v2540
    %v2542 = vrot.slane %v2525, %v2541
    %2547 = vmatprep.subr.mxu0 %v2522
    %2548 = vmatpush1.msra.mxu0 %v2521
    %2549 = vmatprep.subr.mxu0 %v2518
    %2550 = vmatpush1.msra.mxu0 %v2517
    %2551 = vmatprep.subr.mxu0 %v2514
    %2552 = vmatpush1.msra.mxu0 %v2513
    %2553 = vmatprep.subr.mxu0 %v2510
    %2554 = vmatpush1.msra.mxu0 %v2509
    %2555 = vmatprep.subr.mxu0 %v2506
    %2556 = vmatpush1.msra.mxu0 %v2505
    %2557 = vmatprep.subr.mxu0 %v2502
    %2558 = vmatpush1.msra.mxu0 %v2501
    %2559 = vmatprep.subr.mxu0 %v2498
    %2560 = vmatpush1.msra.mxu0 %v2497
    %2561 = vmatprep.subr.mxu0 %v2494
    %2562 = vmatpush1.msra.mxu0 %v2493
    %2563 = vmatprep.subr.mxu0 %v2490
    %2564 = vmatpush1.msra.mxu0 %v2489
    %2565 = vmatprep.subr.mxu0 %v2486
    %2566 = vmatpush1.msra.mxu0 %v2485
    %2567 = vmatprep.subr.mxu0 %v2482
    %2568 = vmatpush1.msra.mxu0 %v2481
    %2569 = vmatprep.subr.mxu0 %v2478
    %2570 = vmatpush1.msra.mxu0 %v2477
    %2571 = vmatprep.subr.mxu0 %v2474
    %2572 = vmatpush1.msra.mxu0 %v2473
    %2573 = vmatprep.subr.mxu0 %v2470
    %2574 = vmatpush1.msra.mxu0 %v2469
    %2575 = vmatprep.subr.mxu0 %v2466
    %2576 = vmatpush1.msra.mxu0 %v2465
    %2577 = vmatprep.subr.mxu0 %v2462
    %2578 = vmatpush1.msra.mxu0 %v2461
    %2579 = vmatprep.subr.mxu0 0.0
    %2580 = vmatpush2.msra.mxu0 0.0
    %2581 = vmatprep.subr.mxu0 0.0
    %2582 = vmatpush2.msra.mxu0 0.0
    %2583 = vmatprep.subr.mxu0 0.0
    %2584 = vmatpush2.msra.mxu0 0.0
    %2585 = vmatprep.subr.mxu0 0.0
    %2586 = vmatpush2.msra.mxu0 0.0
    %2587 = vmatprep.subr.mxu0 0.0
    %2588 = vmatpush2.msra.mxu0 0.0
    %2589 = vmatprep.subr.mxu0 0.0
    %2590 = vmatpush2.msra.mxu0 0.0
    %2591 = vmatprep.subr.mxu0 0.0
    %2592 = vmatpush2.msra.mxu0 0.0
    %2593 = vmatprep.subr.mxu0 0.0
    %2594 = vmatpush2.msra.mxu0 0.0
    %2595 = vmatprep.subr.mxu0 0.0
    %2596 = vmatpush2.msra.mxu0 0.0
    %2597 = vmatprep.subr.mxu0 0.0
    %2598 = vmatpush2.msra.mxu0 0.0
    %2599 = vmatprep.subr.mxu0 0.0
    %2600 = vmatpush2.msra.mxu0 0.0
    %2601 = vmatprep.subr.mxu0 0.0
    %2602 = vmatpush2.msra.mxu0 0.0
    %2603 = vmatprep.subr.mxu0 0.0
    %2604 = vmatpush2.msra.mxu0 0.0
    %2605 = vmatprep.subr.mxu0 0.0
    %2606 = vmatpush2.msra.mxu0 0.0
    %2607 = vmatprep.subr.mxu0 0.0
    %2608 = vmatpush2.msra.mxu0 0.0
    %2609 = vmatprep.subr.mxu0 0.0
    %2610 = vmatpush2.msra.mxu0 0.0
    %2611 = vmatprep.mubr.f32.mxu0 0.0
    %2612 = vmatmul.mubr.f32.gmra.mxu0 %v2459
    %v2613 = vpop.f32.mrf.mxu0
    %v2614 = vadd.f32 %v2530, %v2613
    %v2615 = vpop.f32.mrf.mxu0
    %v2616 = vadd.f32 %v2534, %v2615
    %2617 = vmatprep.mubr.f32.mxu0 0.0
    %2618 = vmatmul.mubr.f32.gmra.mxu0 %v2460
    %v2619 = vpop.f32.mrf.mxu0
    %v2620 = vadd.f32 %v2530, %v2619
    %v2621 = vpop.f32.mrf.mxu0
    %v2622 = vadd.f32 %v2534, %v2621
    %2623 = vdwg.mxu0
    %2624 = vmatprep.subr.mxu0 %v2524
    %2625 = vmatpush1.msra.mxu0 %v2523
    %2626 = vmatprep.subr.mxu0 %v2520
    %2627 = vmatpush1.msra.mxu0 %v2519
    %2628 = vmatprep.subr.mxu0 %v2516
    %2629 = vmatpush1.msra.mxu0 %v2515
    %2630 = vmatprep.subr.mxu0 %v2512
    %2631 = vmatpush1.msra.mxu0 %v2511
    %2632 = vmatprep.subr.mxu0 %v2508
    %2633 = vmatpush1.msra.mxu0 %v2507
    %2634 = vmatprep.subr.mxu0 %v2504
    %2635 = vmatpush1.msra.mxu0 %v2503
    %2636 = vmatprep.subr.mxu0 %v2500
    %2637 = vmatpush1.msra.mxu0 %v2499
    %2638 = vmatprep.subr.mxu0 %v2496
    %2639 = vmatpush1.msra.mxu0 %v2495
    %2640 = vmatprep.subr.mxu0 %v2492
    %2641 = vmatpush1.msra.mxu0 %v2491
    %2642 = vmatprep.subr.mxu0 %v2488
    %2643 = vmatpush1.msra.mxu0 %v2487
    %2644 = vmatprep.subr.mxu0 %v2484
    %2645 = vmatpush1.msra.mxu0 %v2483
    %2646 = vmatprep.subr.mxu0 %v2480
    %2647 = vmatpush1.msra.mxu0 %v2479
    %2648 = vmatprep.subr.mxu0 %v2476
    %2649 = vmatpush1.msra.mxu0 %v2475
    %2650 = vmatprep.subr.mxu0 %v2472
    %2651 = vmatpush1.msra.mxu0 %v2471
    %2652 = vmatprep.subr.mxu0 %v2468
    %2653 = vmatpush1.msra.mxu0 %v2467
    %2654 = vmatprep.subr.mxu0 %v2464
    %2655 = vmatpush1.msra.mxu0 %v2463
    %2656 = vmatprep.subr.mxu0 0.0
    %2657 = vmatpush2.msra.mxu0 0.0
    %2658 = vmatprep.subr.mxu0 0.0
    %2659 = vmatpush2.msra.mxu0 0.0
    %2660 = vmatprep.subr.mxu0 0.0
    %2661 = vmatpush2.msra.mxu0 0.0
    %2662 = vmatprep.subr.mxu0 0.0
    %2663 = vmatpush2.msra.mxu0 0.0
    %2664 = vmatprep.subr.mxu0 0.0
    %2665 = vmatpush2.msra.mxu0 0.0
    %2666 = vmatprep.subr.mxu0 0.0
    %2667 = vmatpush2.msra.mxu0 0.0
    %2668 = vmatprep.subr.mxu0 0.0
    %2669 = vmatpush2.msra.mxu0 0.0
    %2670 = vmatprep.subr.mxu0 0.0
    %2671 = vmatpush2.msra.mxu0 0.0
    %2672 = vmatprep.subr.mxu0 0.0
    %2673 = vmatpush2.msra.mxu0 0.0
    %2674 = vmatprep.subr.mxu0 0.0
    %2675 = vmatpush2.msra.mxu0 0.0
    %2676 = vmatprep.subr.mxu0 0.0
    %2677 = vmatpush2.msra.mxu0 0.0
    %2678 = vmatprep.subr.mxu0 0.0
    %2679 = vmatpush2.msra.mxu0 0.0
    %2680 = vmatprep.subr.mxu0 0.0
    %2681 = vmatpush2.msra.mxu0 0.0
    %2682 = vmatprep.subr.mxu0 0.0
    %2683 = vmatpush2.msra.mxu0 0.0
    %2684 = vmatprep.subr.mxu0 0.0
    %2685 = vmatpush2.msra.mxu0 0.0
    %2686 = vmatprep.subr.mxu0 0.0
    %2687 = vmatpush2.msra.mxu0 0.0
    %2688 = vmatprep.mubr.f32.mxu0 0.0
    %2689 = vmatmul.mubr.f32.gmra.mxu0 %v2459
    %v2690 = vpop.f32.mrf.mxu0
    %v2691 = vadd.f32 %v2538, %v2690
    %v2692 = vpop.f32.mrf.mxu0
    %v2693 = vadd.f32 %v2542, %v2692
    %2694 = vmatprep.mubr.f32.mxu0 0.0
    %2695 = vmatmul.mubr.f32.gmra.mxu0 %v2460
    %v2696 = vpop.f32.mrf.mxu0
    %v2697 = vadd.f32 %v2538, %v2696
    %v2698 = vpop.f32.mrf.mxu0
    %v2699 = vadd.f32 %v2542, %v2698
    %2700 = vdwg.mxu0
    %v2701 = vmax.f32 %v2614, 0.0
    %v2702 = vmax.f32 %v2616, 0.0
    %v2703 = vmax.f32 %v2691, 0.0
    %v2704 = vmax.f32 %v2693, 0.0
    %v2705 = vmax.f32 %v2620, 0.0
    %v2706 = vmax.f32 %v2622, 0.0
    %v2707 = vmax.f32 %v2697, 0.0
    %v2708 = vmax.f32 %v2699, 0.0
    %v2709 = vld [vmem:[#allocation19] sm:$0xff]
    %v2710 = vld [vmem:[#allocation19 + $0x8] sm:$0xff]
    %v2711 = vld [vmem:[#allocation19 + $0x10] sm:$0xff]
    %v2712 = vld [vmem:[#allocation19 + $0x18] sm:$0xff]
    %v2713 = vld [vmem:[#allocation19 + $0x20] sm:$0xff]
    %v2714 = vld [vmem:[#allocation19 + $0x28] sm:$0xff]
    %v2715 = vld [vmem:[#allocation19 + $0x30] sm:$0xff]
    %v2716 = vld [vmem:[#allocation19 + $0x38] sm:$0xff]
    %v2717 = vld [vmem:[#allocation19 + $0x40] sm:$0xff]
    %v2718 = vld [vmem:[#allocation19 + $0x48] sm:$0xff]
    %v2719 = vld [vmem:[#allocation19 + $0x50] sm:$0xff]
    %v2720 = vld [vmem:[#allocation19 + $0x58] sm:$0xff]
    %v2721 = vld [vmem:[#allocation19 + $0x60] sm:$0xff]
    %v2722 = vld [vmem:[#allocation19 + $0x68] sm:$0xff]
    %v2723 = vld [vmem:[#allocation19 + $0x70] sm:$0xff]
    %v2724 = vld [vmem:[#allocation19 + $0x78] sm:$0xff]
    %v2725 = vld [vmem:[#allocation19 + $0x80] sm:$0xff]
    %v2726 = vld [vmem:[#allocation19 + $0x88] sm:$0xff]
    %v2727 = vld [vmem:[#allocation19 + $0x90] sm:$0xff]
    %v2728 = vld [vmem:[#allocation19 + $0x98] sm:$0xff]
    %v2729 = vld [vmem:[#allocation19 + $0xa0] sm:$0xff]
    %v2730 = vld [vmem:[#allocation19 + $0xa8] sm:$0xff]
    %v2731 = vld [vmem:[#allocation19 + $0xb0] sm:$0xff]
    %v2732 = vld [vmem:[#allocation19 + $0xb8] sm:$0xff]
    %v2733 = vld [vmem:[#allocation19 + $0xc0] sm:$0xff]
    %v2734 = vld [vmem:[#allocation19 + $0xc8] sm:$0xff]
    %v2735 = vld [vmem:[#allocation19 + $0xd0] sm:$0xff]
    %v2736 = vld [vmem:[#allocation19 + $0xd8] sm:$0xff]
    %v2737 = vld [vmem:[#allocation19 + $0xe0] sm:$0xff]
    %v2738 = vld [vmem:[#allocation19 + $0xe8] sm:$0xff]
    %v2739 = vld [vmem:[#allocation19 + $0xf0] sm:$0xff]
    %v2740 = vld [vmem:[#allocation19 + $0xf8] sm:$0xff]
    %v2741 = vld [vmem:[#allocation19 + $0x100] sm:$0xff]
    %v2742 = vld [vmem:[#allocation19 + $0x108] sm:$0xff]
    %v2743 = vld [vmem:[#allocation19 + $0x110] sm:$0xff]
    %v2744 = vld [vmem:[#allocation19 + $0x118] sm:$0xff]
    %v2745 = vld [vmem:[#allocation19 + $0x120] sm:$0xff]
    %v2746 = vld [vmem:[#allocation19 + $0x128] sm:$0xff]
    %v2747 = vld [vmem:[#allocation19 + $0x130] sm:$0xff]
    %v2748 = vld [vmem:[#allocation19 + $0x138] sm:$0xff]
    %v2749 = vld [vmem:[#allocation19 + $0x140] sm:$0xff]
    %v2750 = vld [vmem:[#allocation19 + $0x148] sm:$0xff]
    %v2751 = vld [vmem:[#allocation19 + $0x150] sm:$0xff]
    %v2752 = vld [vmem:[#allocation19 + $0x158] sm:$0xff]
    %v2753 = vld [vmem:[#allocation19 + $0x160] sm:$0xff]
    %v2754 = vld [vmem:[#allocation19 + $0x168] sm:$0xff]
    %v2755 = vld [vmem:[#allocation19 + $0x170] sm:$0xff]
    %v2756 = vld [vmem:[#allocation19 + $0x178] sm:$0xff]
    %v2757 = vld [vmem:[#allocation19 + $0x180] sm:$0xff]
    %v2758 = vld [vmem:[#allocation19 + $0x188] sm:$0xff]
    %v2759 = vld [vmem:[#allocation19 + $0x190] sm:$0xff]
    %v2760 = vld [vmem:[#allocation19 + $0x198] sm:$0xff]
    %v2761 = vld [vmem:[#allocation19 + $0x1a0] sm:$0xff]
    %v2762 = vld [vmem:[#allocation19 + $0x1a8] sm:$0xff]
    %v2763 = vld [vmem:[#allocation19 + $0x1b0] sm:$0xff]
    %v2764 = vld [vmem:[#allocation19 + $0x1b8] sm:$0xff]
    %v2765 = vld [vmem:[#allocation19 + $0x1c0] sm:$0xff]
    %v2766 = vld [vmem:[#allocation19 + $0x1c8] sm:$0xff]
    %v2767 = vld [vmem:[#allocation19 + $0x1d0] sm:$0xff]
    %v2768 = vld [vmem:[#allocation19 + $0x1d8] sm:$0xff]
    %v2769 = vld [vmem:[#allocation19 + $0x1e0] sm:$0xff]
    %v2770 = vld [vmem:[#allocation19 + $0x1e8] sm:$0xff]
    %v2771 = vld [vmem:[#allocation19 + $0x1f0] sm:$0xff]
    %v2772 = vld [vmem:[#allocation19 + $0x1f8] sm:$0xff]
    %2773 = vmatprep.subr.mxu0 0.0
    %2774 = vmatpush1.msra.mxu0 %v2724
    %2775 = vmatprep.subr.mxu0 0.0
    %2776 = vmatpush1.msra.mxu0 %v2723
    %2777 = vmatprep.subr.mxu0 0.0
    %2778 = vmatpush1.msra.mxu0 %v2722
    %2779 = vmatprep.subr.mxu0 0.0
    %2780 = vmatpush1.msra.mxu0 %v2721
    %2781 = vmatprep.subr.mxu0 0.0
    %2782 = vmatpush1.msra.mxu0 %v2720
    %2783 = vmatprep.subr.mxu0 0.0
    %2784 = vmatpush1.msra.mxu0 %v2719
    %2785 = vmatprep.subr.mxu0 0.0
    %2786 = vmatpush1.msra.mxu0 %v2718
    %2787 = vmatprep.subr.mxu0 0.0
    %2788 = vmatpush1.msra.mxu0 %v2717
    %2789 = vmatprep.subr.mxu0 0.0
    %2790 = vmatpush1.msra.mxu0 %v2716
    %2791 = vmatprep.subr.mxu0 0.0
    %2792 = vmatpush1.msra.mxu0 %v2715
    %2793 = vmatprep.subr.mxu0 0.0
    %2794 = vmatpush1.msra.mxu0 %v2714
    %2795 = vmatprep.subr.mxu0 0.0
    %2796 = vmatpush1.msra.mxu0 %v2713
    %2797 = vmatprep.subr.mxu0 0.0
    %2798 = vmatpush1.msra.mxu0 %v2712
    %2799 = vmatprep.subr.mxu0 0.0
    %2800 = vmatpush1.msra.mxu0 %v2711
    %2801 = vmatprep.subr.mxu0 0.0
    %2802 = vmatpush1.msra.mxu0 %v2710
    %2803 = vmatprep.subr.mxu0 0.0
    %2804 = vmatpush1.msra.mxu0 %v2709
    %2805 = vmatprep.subr.mxu0 0.0
    %2806 = vmatpush2.msra.mxu0 %v2740
    %2807 = vmatprep.subr.mxu0 0.0
    %2808 = vmatpush2.msra.mxu0 %v2739
    %2809 = vmatprep.subr.mxu0 0.0
    %2810 = vmatpush2.msra.mxu0 %v2738
    %2811 = vmatprep.subr.mxu0 0.0
    %2812 = vmatpush2.msra.mxu0 %v2737
    %2813 = vmatprep.subr.mxu0 0.0
    %2814 = vmatpush2.msra.mxu0 %v2736
    %2815 = vmatprep.subr.mxu0 0.0
    %2816 = vmatpush2.msra.mxu0 %v2735
    %2817 = vmatprep.subr.mxu0 0.0
    %2818 = vmatpush2.msra.mxu0 %v2734
    %2819 = vmatprep.subr.mxu0 0.0
    %2820 = vmatpush2.msra.mxu0 %v2733
    %2821 = vmatprep.subr.mxu0 0.0
    %2822 = vmatpush2.msra.mxu0 %v2732
    %2823 = vmatprep.subr.mxu0 0.0
    %2824 = vmatpush2.msra.mxu0 %v2731
    %2825 = vmatprep.subr.mxu0 0.0
    %2826 = vmatpush2.msra.mxu0 %v2730
    %2827 = vmatprep.subr.mxu0 0.0
    %2828 = vmatpush2.msra.mxu0 %v2729
    %2829 = vmatprep.subr.mxu0 0.0
    %2830 = vmatpush2.msra.mxu0 %v2728
    %2831 = vmatprep.subr.mxu0 0.0
    %2832 = vmatpush2.msra.mxu0 %v2727
    %2833 = vmatprep.subr.mxu0 0.0
    %2834 = vmatpush2.msra.mxu0 %v2726
    %2835 = vmatprep.subr.mxu0 0.0
    %2836 = vmatpush2.msra.mxu0 %v2725
    %2837 = vmatprep.mubr.f32.mxu0 %v2702
    %2838 = vmatmul.mubr.f32.gmra.mxu0 %v2701
    %v2839 = vpop.f32.mrf.mxu0
    %v2840 = vadd.f32 0.0, %v2839
    %v2841 = vpop.f32.mrf.mxu0
    %2842 = vmatprep.mubr.f32.mxu0 %v2706
    %2843 = vmatmul.mubr.f32.gmra.mxu0 %v2705
    %v2844 = vpop.f32.mrf.mxu0
    %v2845 = vadd.f32 0.0, %v2844
    %v2846 = vpop.f32.mrf.mxu0
    %2847 = vdwg.mxu0
    %2848 = vmatprep.subr.mxu0 0.0
    %2849 = vmatpush1.msra.mxu0 %v2756
    %2850 = vmatprep.subr.mxu0 0.0
    %2851 = vmatpush1.msra.mxu0 %v2755
    %2852 = vmatprep.subr.mxu0 0.0
    %2853 = vmatpush1.msra.mxu0 %v2754
    %2854 = vmatprep.subr.mxu0 0.0
    %2855 = vmatpush1.msra.mxu0 %v2753
    %2856 = vmatprep.subr.mxu0 0.0
    %2857 = vmatpush1.msra.mxu0 %v2752
    %2858 = vmatprep.subr.mxu0 0.0
    %2859 = vmatpush1.msra.mxu0 %v2751
    %2860 = vmatprep.subr.mxu0 0.0
    %2861 = vmatpush1.msra.mxu0 %v2750
    %2862 = vmatprep.subr.mxu0 0.0
    %2863 = vmatpush1.msra.mxu0 %v2749
    %2864 = vmatprep.subr.mxu0 0.0
    %2865 = vmatpush1.msra.mxu0 %v2748
    %2866 = vmatprep.subr.mxu0 0.0
    %2867 = vmatpush1.msra.mxu0 %v2747
    %2868 = vmatprep.subr.mxu0 0.0
    %2869 = vmatpush1.msra.mxu0 %v2746
    %2870 = vmatprep.subr.mxu0 0.0
    %2871 = vmatpush1.msra.mxu0 %v2745
    %2872 = vmatprep.subr.mxu0 0.0
    %2873 = vmatpush1.msra.mxu0 %v2744
    %2874 = vmatprep.subr.mxu0 0.0
    %2875 = vmatpush1.msra.mxu0 %v2743
    %2876 = vmatprep.subr.mxu0 0.0
    %2877 = vmatpush1.msra.mxu0 %v2742
    %2878 = vmatprep.subr.mxu0 0.0
    %2879 = vmatpush1.msra.mxu0 %v2741
    %2880 = vmatprep.subr.mxu0 0.0
    %2881 = vmatpush2.msra.mxu0 %v2772
    %2882 = vmatprep.subr.mxu0 0.0
    %2883 = vmatpush2.msra.mxu0 %v2771
    %2884 = vmatprep.subr.mxu0 0.0
    %2885 = vmatpush2.msra.mxu0 %v2770
    %2886 = vmatprep.subr.mxu0 0.0
    %2887 = vmatpush2.msra.mxu0 %v2769
    %2888 = vmatprep.subr.mxu0 0.0
    %2889 = vmatpush2.msra.mxu0 %v2768
    %2890 = vmatprep.subr.mxu0 0.0
    %2891 = vmatpush2.msra.mxu0 %v2767
    %2892 = vmatprep.subr.mxu0 0.0
    %2893 = vmatpush2.msra.mxu0 %v2766
    %2894 = vmatprep.subr.mxu0 0.0
    %2895 = vmatpush2.msra.mxu0 %v2765
    %2896 = vmatprep.subr.mxu0 0.0
    %2897 = vmatpush2.msra.mxu0 %v2764
    %2898 = vmatprep.subr.mxu0 0.0
    %2899 = vmatpush2.msra.mxu0 %v2763
    %2900 = vmatprep.subr.mxu0 0.0
    %2901 = vmatpush2.msra.mxu0 %v2762
    %2902 = vmatprep.subr.mxu0 0.0
    %2903 = vmatpush2.msra.mxu0 %v2761
    %2904 = vmatprep.subr.mxu0 0.0
    %2905 = vmatpush2.msra.mxu0 %v2760
    %2906 = vmatprep.subr.mxu0 0.0
    %2907 = vmatpush2.msra.mxu0 %v2759
    %2908 = vmatprep.subr.mxu0 0.0
    %2909 = vmatpush2.msra.mxu0 %v2758
    %2910 = vmatprep.subr.mxu0 0.0
    %2911 = vmatpush2.msra.mxu0 %v2757
    %2912 = vmatprep.mubr.f32.mxu0 %v2704
    %2913 = vmatmul.mubr.f32.gmra.mxu0 %v2703
    %v2914 = vpop.f32.mrf.mxu0
    %v2915 = vadd.f32 %v2840, %v2914
    %v2916 = vpop.f32.mrf.mxu0
    %2917 = vmatprep.mubr.f32.mxu0 %v2708
    %2918 = vmatmul.mubr.f32.gmra.mxu0 %v2707
    %v2919 = vpop.f32.mrf.mxu0
    %v2920 = vadd.f32 %v2845, %v2919
    %v2921 = vpop.f32.mrf.mxu0
    %2922 = vdwg.mxu0
    %v2923 = vadd.f32 %v2419, %v2915
    %v2924 = vadd.f32 %v2420, %v2920
    %v2925 = vld [vmem:[%s23] sm:$0x1]
    %v2927 = vlaneseq
    %v2928 = vshrl.u32 %v2927, 7
    %v2929 = vsub.s32 0, %v2928
    %v2930 = vrot.slane %v2925, %v2929
    %v2932 = vadd.f32 %v2923, %v2930
    %v2933 = vadd.f32 %v2924, %v2930
    %v2934 = vld [vmem:[%s24] sm:$0x1]
    %v2935 = vld [vmem:[%s25] sm:$0x1]
    %2936 = vadd.xlane.f32.xlu0 %v2932
    %v2937 = vpop.xlane.xlu0 %2936
    %2938 = vadd.xlane.f32.xlu0 %v2933
    %v2939 = vpop.xlane.xlu0 %2938
    %v2940 = vmul.f32 %v2937, %v253
    %v2941 = vmul.f32 %v2939, %v253
    %v2942 = vsub.f32 %v2932, %v2940
    %v2943 = vsub.f32 %v2933, %v2941
    %v2944 = vmul.f32 %v2942, %v2942
    %v2945 = vmul.f32 %v2943, %v2943
    %2946 = vadd.xlane.f32.xlu0 %v2944
    %v2947 = vpop.xlane.xlu0 %2946
    %2948 = vadd.xlane.f32.xlu0 %v2945
    %v2949 = vpop.xlane.xlu0 %2948
    %v2950 = vmul.f32 %v2947, %v253
    %v2951 = vmul.f32 %v2949, %v253
    %v2952 = vadd.f32 %v2950, 1e-05
    %v2953 = vadd.f32 %v2951, 1e-05
    %v2954 = vrsqrt.pop %v2952
    %v2955 = vrsqrt.pop %v2953
    %v2956 = vmul.f32 %v2942, %v2954
    %v2957 = vmul.f32 %v2943, %v2955
    %v2959 = vlaneseq
    %v2960 = vshrl.u32 %v2959, 7
    %v2961 = vsub.s32 0, %v2960
    %v2962 = vrot.slane %v2934, %v2961
    %v2964 = vmul.f32 %v2956, %v2962
    %v2965 = vmul.f32 %v2957, %v2962
    %v2967 = vlaneseq
    %v2968 = vshrl.u32 %v2967, 7
    %v2969 = vsub.s32 0, %v2968
    %v2970 = vrot.slane %v2935, %v2969
    %v2972 = vadd.f32 %v2964, %v2970
    %v2973 = vadd.f32 %v2965, %v2970
    %v2974 = vld [vmem:[#allocation20] sm:$0xff]
    %v2975 = vld [vmem:[#allocation20 + $0x8] sm:$0xff]
    %v2976 = vld [vmem:[#allocation20 + $0x10] sm:$0xff]
    %v2977 = vld [vmem:[#allocation20 + $0x18] sm:$0xff]
    %v2978 = vld [vmem:[#allocation20 + $0x20] sm:$0xff]
    %v2979 = vld [vmem:[#allocation20 + $0x28] sm:$0xff]
    %v2980 = vld [vmem:[#allocation20 + $0x30] sm:$0xff]
    %v2981 = vld [vmem:[#allocation20 + $0x38] sm:$0xff]
    %v2982 = vld [vmem:[#allocation20 + $0x40] sm:$0xff]
    %v2983 = vld [vmem:[#allocation20 + $0x48] sm:$0xff]
    %v2984 = vld [vmem:[#allocation20 + $0x50] sm:$0xff]
    %v2985 = vld [vmem:[#allocation20 + $0x58] sm:$0xff]
    %v2986 = vld [vmem:[#allocation20 + $0x60] sm:$0xff]
    %v2987 = vld [vmem:[#allocation20 + $0x68] sm:$0xff]
    %v2988 = vld [vmem:[#allocation20 + $0x70] sm:$0xff]
    %v2989 = vld [vmem:[#allocation20 + $0x78] sm:$0xff]
    %v2990 = vld [vmem:[%s27] sm:$0x1]
    %v2992 = vlaneseq
    %v2993 = vshrl.u32 %v2992, 7
    %v2994 = vsub.s32 0, %v2993
    %v2995 = vrot.slane %v2990, %v2994
    %2997 = vmatprep.subr.mxu0 0.0
    %2998 = vmatpush1.msra.mxu0 %v2989
    %2999 = vmatprep.subr.mxu0 0.0
    %3000 = vmatpush1.msra.mxu0 %v2988
    %3001 = vmatprep.subr.mxu0 0.0
    %3002 = vmatpush1.msra.mxu0 %v2987
    %3003 = vmatprep.subr.mxu0 0.0
    %3004 = vmatpush1.msra.mxu0 %v2986
    %3005 = vmatprep.subr.mxu0 0.0
    %3006 = vmatpush1.msra.mxu0 %v2985
    %3007 = vmatprep.subr.mxu0 0.0
    %3008 = vmatpush1.msra.mxu0 %v2984
    %3009 = vmatprep.subr.mxu0 0.0
    %3010 = vmatpush1.msra.mxu0 %v2983
    %3011 = vmatprep.subr.mxu0 0.0
    %3012 = vmatpush1.msra.mxu0 %v2982
    %3013 = vmatprep.subr.mxu0 0.0
    %3014 = vmatpush1.msra.mxu0 %v2981
    %3015 = vmatprep.subr.mxu0 0.0
    %3016 = vmatpush1.msra.mxu0 %v2980
    %3017 = vmatprep.subr.mxu0 0.0
    %3018 = vmatpush1.msra.mxu0 %v2979
    %3019 = vmatprep.subr.mxu0 0.0
    %3020 = vmatpush1.msra.mxu0 %v2978
    %3021 = vmatprep.subr.mxu0 0.0
    %3022 = vmatpush1.msra.mxu0 %v2977
    %3023 = vmatprep.subr.mxu0 0.0
    %3024 = vmatpush1.msra.mxu0 %v2976
    %3025 = vmatprep.subr.mxu0 0.0
    %3026 = vmatpush1.msra.mxu0 %v2975
    %3027 = vmatprep.subr.mxu0 0.0
    %3028 = vmatpush1.msra.mxu0 %v2974
    %3029 = vmatprep.subr.mxu0 0.0
    %3030 = vmatpush2.msra.mxu0 0.0
    %3031 = vmatprep.subr.mxu0 0.0
    %3032 = vmatpush2.msra.mxu0 0.0
    %3033 = vmatprep.subr.mxu0 0.0
    %3034 = vmatpush2.msra.mxu0 0.0
    %3035 = vmatprep.subr.mxu0 0.0
    %3036 = vmatpush2.msra.mxu0 0.0
    %3037 = vmatprep.subr.mxu0 0.0
    %3038 = vmatpush2.msra.mxu0 0.0
    %3039 = vmatprep.subr.mxu0 0.0
    %3040 = vmatpush2.msra.mxu0 0.0
    %3041 = vmatprep.subr.mxu0 0.0
    %3042 = vmatpush2.msra.mxu0 0.0
    %3043 = vmatprep.subr.mxu0 0.0
    %3044 = vmatpush2.msra.mxu0 0.0
    %3045 = vmatprep.subr.mxu0 0.0
    %3046 = vmatpush2.msra.mxu0 0.0
    %3047 = vmatprep.subr.mxu0 0.0
    %3048 = vmatpush2.msra.mxu0 0.0
    %3049 = vmatprep.subr.mxu0 0.0
    %3050 = vmatpush2.msra.mxu0 0.0
    %3051 = vmatprep.subr.mxu0 0.0
    %3052 = vmatpush2.msra.mxu0 0.0
    %3053 = vmatprep.subr.mxu0 0.0
    %3054 = vmatpush2.msra.mxu0 0.0
    %3055 = vmatprep.subr.mxu0 0.0
    %3056 = vmatpush2.msra.mxu0 0.0
    %3057 = vmatprep.subr.mxu0 0.0
    %3058 = vmatpush2.msra.mxu0 0.0
    %3059 = vmatprep.subr.mxu0 0.0
    %3060 = vmatpush2.msra.mxu0 0.0
    %3061 = vmatprep.mubr.f32.mxu0 0.0
    %3062 = vmatmul.mubr.f32.gmra.mxu0 %v2972
    %v3063 = vpop.f32.mrf.mxu0
    %v3064 = vadd.f32 %v2995, %v3063
    %v3065 = vpop.f32.mrf.mxu0
    %3066 = vmatprep.mubr.f32.mxu0 0.0
    %3067 = vmatmul.mubr.f32.gmra.mxu0 %v2973
    %v3068 = vpop.f32.mrf.mxu0
    %v3069 = vadd.f32 %v2995, %v3068
    %v3070 = vpop.f32.mrf.mxu0
    %3071 = vdwg.mxu0
    %3072 = vst [vmem:[#allocation22] sm:$0xff] %v3064
    %3073 = vst [vmem:[#allocation22 + $0x8] sm:$0xff] %v3069
    // Predicated region
    $region162: #{language_model_forward.1} parent=1 // pred_check
      _
    $region163: #{language_model_forward.1} parent=1 // pred_check_branch
      %3075 = sbr.rel (0) target = $region165
    $region164: #{language_model_forward.1} parent=1 // pred_region
      %s3077 = ssub.s32 256, 256
      %3078 = vsyncadd [#allocation4], %s3077
      %s3079 = sshll.u32 [#allocation22], 4
      %s3080 = int_to_ptr.vmem [resolvable:$true] %s3079
      %3085 = dma.vmem_to_hbm [thread:$0]  %s3080, 256, %s28, [#allocation4], 128, 128, 8
    $region165: #{language_model_forward.1} parent=1 // pred_fallthru
      _
    // Predicated region
    $region166: #{language_model_forward.1} parent=1 // pred_check
      _
    $region167: #{language_model_forward.1} parent=1 // pred_check_branch
      %3087 = sbr.rel (0) target = $region169
    $region168: #{language_model_forward.1} parent=1 // pred_region
      %3088 = dma.done [#allocation4], 256
    $region169: #{language_model_forward.1} parent=1 // pred_fallthru
      _
    %3089 = vsyncpa [#allocation3], 1
    %3090 = vsyncpa [#allocation6], 1
    %3091 = vsyncpa [#allocation9], 1
    %3092 = vsyncpa [#allocation12], 1
    %3093 = vsyncpa [#allocation15], 1
    %3094 = vsyncpa [#allocation18], 1
    %3095 = vsyncpa [#allocation21], 1
    %3096 = vsyncpa [#allocation4], 1

</llo_original>
